<compile_context>
chip_gen: v6e
topology: v6e:2x2x1
jax: 0.10.0
libtpu: 0.0.40
codegen_flags: <defaults>
</compile_context>

<pallas_src>
import math

import jax
import jax.numpy as jnp
import numpy as np
from jax.experimental import pallas as pl
from jax.experimental.pallas import tpu as pltpu


def _round_up(n: int, m: int) -> int:
    return ((n + m - 1) // m) * m


# ----------------------------------------------------------------------------
# Pallas kernel
# ----------------------------------------------------------------------------
def _make_lstm_kernel(num_layers: int, Bt: int, T: int, H: int, matmul_dtype):
    """Kernel specialized to the static model structure; one batch tile/call."""
    G = 4 * H
    TB = T * Bt

    def kernel(*refs):
        # refs layout:
        #   [0]                         x_ref    (T, Bt, G)  layer-0 xproj (+bias)
        #   [1 .. L]                    w_hh_pad per layer   (G, G) rows[:H]=W_hh^T
        #   [1+L .. 1+L+2(L-1))         (w_ih_pad, bias) for layers 1..L-1
        #   [..]                        w_out_pad (T, G), b_out (1, 1)
        #   out_ref                     (1, Bt)
        #   xp_ref scratch (if L > 1)   (2*T*Bt, G) ping-pong inter-layer proj.
        x_ref = refs[0]
        idx = 1
        whh_refs = refs[idx:idx + num_layers]
        idx += num_layers
        proj_refs = refs[idx:idx + 2 * (num_layers - 1)]
        idx += 2 * (num_layers - 1)
        w_out_ref = refs[idx]
        b_out_ref = refs[idx + 1]
        idx += 2
        out_ref = refs[idx]
        idx += 1
        xp_ref = refs[idx] if num_layers > 1 else None

        fused = None
        for l in range(num_layers):
            is_last = l == num_layers - 1
            w_hh_ref = whh_refs[l]
            w_ih_n_ref = None if is_last else proj_refs[2 * l]
            b_n_ref = None if is_last else proj_refs[2 * l + 1]
            in_off = ((l - 1) % 2) * TB     # slot read by layer l   (l > 0)
            out_off = (l % 2) * TB          # slot written for layer l + 1

            def step(t, carry, l=l, is_last=is_last, w_hh_ref=w_hh_ref,
                     w_ih_n_ref=w_ih_n_ref, b_n_ref=b_n_ref,
                     in_off=in_off, out_off=out_off):
                if is_last:
                    h_mm, c, acc = carry
                else:
                    h_mm, c = carry
                if l == 0:
                    xp = x_ref[t]                                     # (Bt, G)
                else:
                    xp = xp_ref[pl.ds(pl.multiple_of(in_off + t * Bt, Bt), Bt), :]

                # Recurrent matmul: the only op on the serial h-chain.
                gates = xp + jnp.dot(h_mm, w_hh_ref[...],
                                     preferred_element_type=jnp.float32)

                # Full-width gate activations; XLU rolls (not lane slices) align
                # f / g / o onto lanes [:H].  Gate order is PyTorch i|f|g|o.
                sig = jax.nn.sigmoid(gates)
                tnh = jnp.tanh(gates)
                f_g = pltpu.roll(sig, 3 * H, axis=1)   # == shift -H
                g_g = pltpu.roll(tnh, 2 * H, axis=1)   # == shift -2H
                o_g = pltpu.roll(sig, 1 * H, axis=1)   # == shift -3H
                c_new = f_g * c + sig * g_g            # lanes[:H] exact; rest finite junk
                h_new = o_g * jnp.tanh(c_new)
                h_mm_new = h_new.astype(matmul_dtype)  # cast once, where h is produced

                if is_last:
                    # Fused output Linear: VPU multiply-accumulate (w_out cols[H:]=0).
                    acc_new = acc + h_new * w_out_ref[pl.ds(t, 1), :]
                    return h_mm_new, c_new, acc_new

                # Next layer's input projection on the fly: independent of the
                # h-chain (fills MXU idle cycles), full-128-lane (Bt, G) store.
                xp_ref[pl.ds(pl.multiple_of(out_off + t * Bt, Bt), Bt), :] = (
                    jnp.dot(h_mm_new, w_ih_n_ref[...],
                            preferred_element_type=jnp.float32) + b_n_ref[...])
                return h_mm_new, c_new

            h0 = jnp.zeros((Bt, G), matmul_dtype)
            c0 = jnp.zeros((Bt, G), jnp.float32)
            init = (h0, c0, jnp.zeros((Bt, G), jnp.float32)) if is_last else (h0, c0)
            # fori_loop carry bounds what crosses iterations; unroll=True keeps
            # LLO visibility so step t's projection matmul overlaps step t+1's
            # recurrent matmul.
            # TODO(synk): drop unroll (rolled loop) for long sequences / Bt=256
            #             if the bundle dump shows vreg spills.
            carry = jax.lax.fori_loop(0, T, step, init, unroll=True)
            if is_last:
                fused = carry[2]

        # Lane-dense (1, Bt) output: one dot_general folds the lane reduction
        # and leaves the result lane-major (no (Bt, 1) masked column stores).
        ones_row = jnp.ones((1, G), jnp.float32)
        row = jax.lax.dot_general(ones_row, fused, (((1,), (1,)), ((), ())),
                                  preferred_element_type=jnp.float32)   # (1, Bt)
        out_ref[...] = row + b_out_ref[...]

    return kernel


# ----------------------------------------------------------------------------
# Wrapper
# ----------------------------------------------------------------------------
def lstm_model_forward(x, params, *, hidden_size: int, num_layers: int,
                       matmul_dtype=jnp.float32, batch_tile: int | None = None):
    """Pallas implementation of LSTMModel.forward (zero initial hidden state)."""
    assert num_layers >= 1, "LSTMModel requires num_layers >= 1"
    B, T, F = x.shape
    H = hidden_size
    G = 4 * H

    rb = _round_up(max(B, 1), 8)
    if batch_tile is None:
        if rb <= 256:
            batch_tile = rb          # single tile
        elif rb <= 512:
            batch_tile = 128         # >= 2 tiles so both v7x TensorCores get work
        else:
            batch_tile = 256         # fill the 256-wide MXU M dim on v6e/v7x
    assert batch_tile % 8 == 0
    padded_B = _round_up(B, batch_tile)
    if padded_B != batch_tile:
        assert batch_tile % 128 == 0, (
            "multi-tile grids need 128-multiple tiles for the lane-dense output")

    # Pad the batch and fold the layer-0 input projection (+ bias) into one
    # wrapper-side XLA matmul: the kernel sees a lane-dense (T, Bt, 4H) block.
    x_p = jnp.zeros((padded_B, T, F), jnp.float32).at[:B].set(x.astype(jnp.float32))
    w_ih0, _, b_ih0, b_hh0 = params["layer0"]
    xproj0 = jnp.einsum("btf,gf->btg", x_p, w_ih0.astype(jnp.float32),
                        precision="highest") + (b_ih0 + b_hh0).astype(jnp.float32)
    x_in = jnp.transpose(xproj0, (1, 0, 2))              # (T, padded_B, G), time-major

    def resident(arr):
        # Full-array block, same block every grid step -> stays in VMEM.
        nd = arr.ndim
        return pl.BlockSpec(arr.shape, lambda i, _n=nd: (0,) * _n)

    inputs = [x_in]
    in_specs = [pl.BlockSpec((T, batch_tile, G), lambda i: (0, i, 0))]

    # Recurrent weights: contraction dim zero-padded H -> 4H so h can stay
    # full-width in the kernel (no per-step lane extraction); held in
    # matmul_dtype only.
    # TODO(synk): for large H (4H >> MXU K) the K-padding stops being free;
    #             fall back to sliced gates there.
    for l in range(num_layers):
        _, w_hh, _, _ = params[f"layer{l}"]
        w_hh_pad = jnp.zeros((G, G), jnp.float32).at[:H, :].set(
            jnp.transpose(w_hh)).astype(matmul_dtype)
        inputs.append(w_hh_pad)
        in_specs.append(resident(w_hh_pad))

    # Input-projection weights/biases for layers 1..L-1 (consumed on the fly
    # by the previous layer's time loop), same K-padding.
    for l in range(1, num_layers):
        w_ih, _, b_ih, b_hh = params[f"layer{l}"]
        w_ih_pad = jnp.zeros((G, G), jnp.float32).at[:H, :].set(
            jnp.transpose(w_ih)).astype(matmul_dtype)
        bias = (b_ih + b_hh).reshape(1, G).astype(jnp.float32)
        inputs += [w_ih_pad, bias]
        in_specs += [resident(w_ih_pad), resident(bias)]

    # Output Linear: row t = weights for h_t, zero-padded to 4H lanes so the
    # fused multiply-accumulate ignores the junk lanes of the full-width h.
    w_out, b_out = params["out"]
    w_out_pad = jnp.zeros((T, G), jnp.float32).at[:, :H].set(
        w_out.reshape(T, H).astype(jnp.float32))
    b_out_r = b_out.reshape(1, 1).astype(jnp.float32)
    inputs += [w_out_pad, b_out_r]
    in_specs += [resident(w_out_pad), resident(b_out_r)]

    scratch = []
    if num_layers > 1:
        # 2-slot ping-pong inter-layer projection buffer, 2-D and indexed with
        # pl.ds -> zero-cost views, no read-after-overwrite hazard.
        scratch.append(pltpu.VMEM((2 * T * batch_tile, G), jnp.float32))

    kernel = _make_lstm_kernel(num_layers, batch_tile, T, H, matmul_dtype)
    out_row = pl.pallas_call(
        kernel,
        out_shape=jax.ShapeDtypeStruct((1, padded_B), jnp.float32),
        grid_spec=pltpu.PrefetchScalarGridSpec(
            num_scalar_prefetch=0,
            grid=(padded_B // batch_tile,),
            in_specs=in_specs,
            out_specs=pl.BlockSpec((1, batch_tile), lambda i: (0, i)),
            scratch_shapes=scratch,
        ),
        compiler_params=pltpu.CompilerParams(
            dimension_semantics=("parallel",)),   # batch tiles: megacore / 2 TCs
    )(*inputs)
    return out_row[0, :B].reshape(B, 1)


# ----------------------------------------------------------------------------
# Pure-JAX reference (mirrors torch.nn.LSTM + nn.Linear semantics)
# ----------------------------------------------------------------------------
def lstm_model_reference(x, params, *, hidden_size: int, num_layers: int):
    B, T, _ = x.shape
    H = hidden_size
    layer_in = x
    for l in range(num_layers):
        w_ih, w_hh, b_ih, b_hh = params[f"layer{l}"]
        h = jnp.zeros((B, H), jnp.float32)
        c = jnp.zeros((B, H), jnp.float32)
        outs = []
        for t in range(T):
            gates = layer_in[:, t, :] @ w_ih.T + h @ w_hh.T + b_ih + b_hh
            i_g = jax.nn.sigmoid(gates[:, :H])
            f_g = jax.nn.sigmoid(gates[:, H:2 * H])
            g_g = jnp.tanh(gates[:, 2 * H:3 * H])
            o_g = jax.nn.sigmoid(gates[:, 3 * H:])
            c = f_g * c + i_g * g_g
            h = o_g * jnp.tanh(c)
            outs.append(h)
        layer_in = jnp.stack(outs, axis=1)
    flat = layer_in.reshape(B, T * H)
    w_out, b_out = params["out"]
    return flat @ w_out.T + b_out


# ----------------------------------------------------------------------------
# Deterministic parameter init (PyTorch-style U(-1/sqrt(fan), 1/sqrt(fan)))
# ----------------------------------------------------------------------------
def init_params(key, *, input_features, sequence_length, hidden_size, num_layers):
    params = {}
    H = hidden_size
    k_lstm = 1.0 / math.sqrt(H)
    for l in range(num_layers):
        in_l = input_features if l == 0 else H
        key, k1, k2, k3, k4 = jax.random.split(key, 5)
        params[f"layer{l}"] = (
            jax.random.uniform(k1, (4 * H, in_l), jnp.float32, -k_lstm, k_lstm),
            jax.random.uniform(k2, (4 * H, H), jnp.float32, -k_lstm, k_lstm),
            jax.random.uniform(k3, (4 * H,), jnp.float32, -k_lstm, k_lstm),
            jax.random.uniform(k4, (4 * H,), jnp.float32, -k_lstm, k_lstm),
        )
    in_out = H * sequence_length
    k_lin = 1.0 / math.sqrt(in_out)
    key, k1, k2 = jax.random.split(key, 3)
    params["out"] = (
        jax.random.uniform(k1, (1, in_out), jnp.float32, -k_lin, k_lin),
        jax.random.uniform(k2, (1,), jnp.float32, -k_lin, k_lin),
    )
    return params


# ----------------------------------------------------------------------------
if __name__ == "__main__":
    model_structure = dict(
        input_features=4, sequence_length=8, hidden_size=32, num_layers=2
    )
    B = 2
    T = model_structure["sequence_length"]
    F = model_structure["input_features"]
    H = model_structure["hidden_size"]
    L = model_structure["num_layers"]

    root = jax.random.PRNGKey(0)
    kp, kx = jax.random.split(root)
    params = init_params(kp, **model_structure)
    x = jax.random.normal(kx, (B, T, F), jnp.float32)

    # f32 path (matches the PyTorch-semantics reference tightly).
    out = lstm_model_forward(x, params, hidden_size=H, num_layers=L)
    out = jax.block_until_ready(out)

    ref = lstm_model_reference(x, params, hidden_size=H, num_layers=L)
    np.testing.assert_allclose(np.asarray(out), np.asarray(ref), rtol=1e-5, atol=2e-5)
    assert out.shape == (B, 1)

    # bf16 matmul-operand path (bf16-native MXUs on v5e/v6e/v7x); f32
    # accumulation and f32 gate/state math -> looser tolerance.
    out_bf16 = lstm_model_forward(x, params, hidden_size=H, num_layers=L,
                                  matmul_dtype=jnp.bfloat16)
    out_bf16 = jax.block_until_ready(out_bf16)
    np.testing.assert_allclose(np.asarray(out_bf16), np.asarray(ref),
                               rtol=5e-2, atol=5e-2)

    print("KERNEL_OK")
</pallas_src>

<mosaic_0001>
module attributes {stable_mosaic.version = 11 : i64} {
  func.func @kernel(%arg0: i32, %arg1: memref<8x8x128xf32, #tpu.memory_space<vmem>>, %arg2: memref<128x128xf32, #tpu.memory_space<vmem>>, %arg3: memref<128x128xf32, #tpu.memory_space<vmem>>, %arg4: memref<128x128xf32, #tpu.memory_space<vmem>>, %arg5: memref<1x128xf32, #tpu.memory_space<vmem>>, %arg6: memref<8x128xf32, #tpu.memory_space<vmem>>, %arg7: memref<1x1xf32, #tpu.memory_space<vmem>>, %arg8: memref<1x8xf32, #tpu.memory_space<vmem>>, %arg9: memref<128x128xf32, #tpu.memory_space<vmem>>) attributes {dimension_semantics = [#tpu.dimension_semantics<parallel>], iteration_bounds = array<i64: 1>, scalar_prefetch = 0 : i64, scratch_operands = 1 : i64, tpu.core_type = #tpu.core_type<tc>, window_params = [{transform_indices = @transform_0, window_bounds = array<i64: 8, 8, 128>}, {pipeline_mode = #tpu.pipeline_mode<synchronous>, transform_indices = @transform_1, window_bounds = array<i64: 128, 128>}, {pipeline_mode = #tpu.pipeline_mode<synchronous>, transform_indices = @transform_2, window_bounds = array<i64: 128, 128>}, {pipeline_mode = #tpu.pipeline_mode<synchronous>, transform_indices = @transform_3, window_bounds = array<i64: 128, 128>}, {pipeline_mode = #tpu.pipeline_mode<synchronous>, transform_indices = @transform_4, window_bounds = array<i64: 1, 128>}, {pipeline_mode = #tpu.pipeline_mode<synchronous>, transform_indices = @transform_5, window_bounds = array<i64: 8, 128>}, {pipeline_mode = #tpu.pipeline_mode<synchronous>, transform_indices = @transform_6, window_bounds = array<i64: 1, 1>}, {transform_indices = @transform_7, window_bounds = array<i64: 1, 8>}]} {
    %cst = arith.constant 0.000000e+00 : f32
    %0 = vector.broadcast %cst : f32 to vector<8x128xf32>
    %cst_0 = arith.constant 0.000000e+00 : f32
    %1 = vector.broadcast %cst_0 : f32 to vector<8x128xf32>
    %c0_i32 = arith.constant 0 : i32
    %2 = arith.index_cast %c0_i32 : i32 to index
    %c0 = arith.constant 0 : index
    %c0_1 = arith.constant 0 : index
    %3 = vector.load %arg1[%2, %c0, %c0_1] : memref<8x8x128xf32, #tpu.memory_space<vmem>>, vector<1x8x128xf32>
    %4 = vector.shape_cast %3 : vector<1x8x128xf32> to vector<8x128xf32>
    %c0_2 = arith.constant 0 : index
    %c0_3 = arith.constant 0 : index
    %5 = vector.load %arg2[%c0_2, %c0_3] : memref<128x128xf32, #tpu.memory_space<vmem>>, vector<128x128xf32>
    %cst_4 = arith.constant dense<0.000000e+00> : vector<8x128xf32>
    %6 = tpu.matmul %0, %5, %cst_4 {dimension_numbers = #tpu.dot_dimension_numbers<[1], [0], [0], [1], [0, 0, 1, 1], [], []>} : vector<8x128xf32>, vector<128x128xf32>, vector<8x128xf32> -> vector<8x128xf32>
    %7 = arith.addf %4, %6 : vector<8x128xf32>
    %8 = arith.negf %7 : vector<8x128xf32>
    %9 = math.exp %8 : vector<8x128xf32>
    %cst_5 = arith.constant 1.000000e+00 : f32
    %10 = vector.broadcast %cst_5 : f32 to vector<8x128xf32>
    %11 = arith.addf %10, %9 : vector<8x128xf32>
    %12 = arith.divf %10, %11 : vector<8x128xf32>
    %13 = math.tanh %7 : vector<8x128xf32>
    %c96_i32 = arith.constant 96 : i32
    %14 = tpu.dynamic_rotate %12 by %c96_i32 dim 1 : vector<8x128xf32>, i32 -> vector<8x128xf32>
    %c64_i32 = arith.constant 64 : i32
    %15 = tpu.dynamic_rotate %13 by %c64_i32 dim 1 : vector<8x128xf32>, i32 -> vector<8x128xf32>
    %c32_i32 = arith.constant 32 : i32
    %16 = tpu.dynamic_rotate %12 by %c32_i32 dim 1 : vector<8x128xf32>, i32 -> vector<8x128xf32>
    %17 = arith.mulf %14, %1 : vector<8x128xf32>
    %18 = arith.mulf %12, %15 : vector<8x128xf32>
    %19 = arith.addf %17, %18 : vector<8x128xf32>
    %20 = math.tanh %19 : vector<8x128xf32>
    %21 = arith.mulf %16, %20 : vector<8x128xf32>
    %c0_6 = arith.constant 0 : index
    %c0_7 = arith.constant 0 : index
    %22 = vector.load %arg4[%c0_6, %c0_7] : memref<128x128xf32, #tpu.memory_space<vmem>>, vector<128x128xf32>
    %cst_8 = arith.constant dense<0.000000e+00> : vector<8x128xf32>
    %23 = tpu.matmul %21, %22, %cst_8 {dimension_numbers = #tpu.dot_dimension_numbers<[1], [0], [0], [1], [0, 0, 1, 1], [], []>} : vector<8x128xf32>, vector<128x128xf32>, vector<8x128xf32> -> vector<8x128xf32>
    %c0_9 = arith.constant 0 : index
    %c0_10 = arith.constant 0 : index
    %24 = vector.load %arg5[%c0_9, %c0_10] : memref<1x128xf32, #tpu.memory_space<vmem>>, vector<1x128xf32>
    %25 = vector.broadcast %24 : vector<1x128xf32> to vector<8x128xf32>
    %26 = arith.addf %23, %25 : vector<8x128xf32>
    %c8_i32 = arith.constant 8 : i32
    %27 = arith.muli %c0_i32, %c8_i32 : i32
    %c0_i32_11 = arith.constant 0 : i32
    %28 = arith.addi %c0_i32_11, %27 : i32
    %29 = tpu.assume_multiple %28, 8 : i32
    %30 = arith.index_cast %29 : i32 to index
    %c0_12 = arith.constant 0 : index
    %31 = vector.load %arg9[%30, %c0_12] : memref<128x128xf32, #tpu.memory_space<vmem>>, vector<8x128xf32>
    tpu.vector_store %arg9[%30, %c0_12], %26 {strides = array<i32>} : memref<128x128xf32, #tpu.memory_space<vmem>>, vector<8x128xf32>,
    %c1_i32 = arith.constant 1 : i32
    %32 = arith.index_cast %c1_i32 : i32 to index
    %c0_13 = arith.constant 0 : index
    %c0_14 = arith.constant 0 : index
    %33 = vector.load %arg1[%32, %c0_13, %c0_14] : memref<8x8x128xf32, #tpu.memory_space<vmem>>, vector<1x8x128xf32>
    %34 = vector.shape_cast %33 : vector<1x8x128xf32> to vector<8x128xf32>
    %c0_15 = arith.constant 0 : index
    %c0_16 = arith.constant 0 : index
    %35 = vector.load %arg2[%c0_15, %c0_16] : memref<128x128xf32, #tpu.memory_space<vmem>>, vector<128x128xf32>
    %cst_17 = arith.constant dense<0.000000e+00> : vector<8x128xf32>
    %36 = tpu.matmul %21, %35, %cst_17 {dimension_numbers = #tpu.dot_dimension_numbers<[1], [0], [0], [1], [0, 0, 1, 1], [], []>} : vector<8x128xf32>, vector<128x128xf32>, vector<8x128xf32> -> vector<8x128xf32>
    %37 = arith.addf %34, %36 : vector<8x128xf32>
    %38 = arith.negf %37 : vector<8x128xf32>
    %39 = math.exp %38 : vector<8x128xf32>
    %cst_18 = arith.constant 1.000000e+00 : f32
    %40 = vector.broadcast %cst_18 : f32 to vector<8x128xf32>
    %41 = arith.addf %40, %39 : vector<8x128xf32>
    %42 = arith.divf %40, %41 : vector<8x128xf32>
    %43 = math.tanh %37 : vector<8x128xf32>
    %c96_i32_19 = arith.constant 96 : i32
    %44 = tpu.dynamic_rotate %42 by %c96_i32_19 dim 1 : vector<8x128xf32>, i32 -> vector<8x128xf32>
    %c64_i32_20 = arith.constant 64 : i32
    %45 = tpu.dynamic_rotate %43 by %c64_i32_20 dim 1 : vector<8x128xf32>, i32 -> vector<8x128xf32>
    %c32_i32_21 = arith.constant 32 : i32
    %46 = tpu.dynamic_rotate %42 by %c32_i32_21 dim 1 : vector<8x128xf32>, i32 -> vector<8x128xf32>
    %47 = arith.mulf %44, %19 : vector<8x128xf32>
    %48 = arith.mulf %42, %45 : vector<8x128xf32>
    %49 = arith.addf %47, %48 : vector<8x128xf32>
    %50 = math.tanh %49 : vector<8x128xf32>
    %51 = arith.mulf %46, %50 : vector<8x128xf32>
    %c0_22 = arith.constant 0 : index
    %c0_23 = arith.constant 0 : index
    %52 = vector.load %arg4[%c0_22, %c0_23] : memref<128x128xf32, #tpu.memory_space<vmem>>, vector<128x128xf32>
    %cst_24 = arith.constant dense<0.000000e+00> : vector<8x128xf32>
    %53 = tpu.matmul %51, %52, %cst_24 {dimension_numbers = #tpu.dot_dimension_numbers<[1], [0], [0], [1], [0, 0, 1, 1], [], []>} : vector<8x128xf32>, vector<128x128xf32>, vector<8x128xf32> -> vector<8x128xf32>
    %c0_25 = arith.constant 0 : index
    %c0_26 = arith.constant 0 : index
    %54 = vector.load %arg5[%c0_25, %c0_26] : memref<1x128xf32, #tpu.memory_space<vmem>>, vector<1x128xf32>
    %55 = vector.broadcast %54 : vector<1x128xf32> to vector<8x128xf32>
    %56 = arith.addf %53, %55 : vector<8x128xf32>
    %c8_i32_27 = arith.constant 8 : i32
    %57 = arith.muli %c1_i32, %c8_i32_27 : i32
    %c0_i32_28 = arith.constant 0 : i32
    %58 = arith.addi %c0_i32_28, %57 : i32
    %59 = tpu.assume_multiple %58, 8 : i32
    %60 = arith.index_cast %59 : i32 to index
    %c0_29 = arith.constant 0 : index
    %61 = vector.load %arg9[%60, %c0_29] : memref<128x128xf32, #tpu.memory_space<vmem>>, vector<8x128xf32>
    tpu.vector_store %arg9[%60, %c0_29], %56 {strides = array<i32>} : memref<128x128xf32, #tpu.memory_space<vmem>>, vector<8x128xf32>,
    %c2_i32 = arith.constant 2 : i32
    %62 = arith.index_cast %c2_i32 : i32 to index
    %c0_30 = arith.constant 0 : index
    %c0_31 = arith.constant 0 : index
    %63 = vector.load %arg1[%62, %c0_30, %c0_31] : memref<8x8x128xf32, #tpu.memory_space<vmem>>, vector<1x8x128xf32>
    %64 = vector.shape_cast %63 : vector<1x8x128xf32> to vector<8x128xf32>
    %c0_32 = arith.constant 0 : index
    %c0_33 = arith.constant 0 : index
    %65 = vector.load %arg2[%c0_32, %c0_33] : memref<128x128xf32, #tpu.memory_space<vmem>>, vector<128x128xf32>
    %cst_34 = arith.constant dense<0.000000e+00> : vector<8x128xf32>
    %66 = tpu.matmul %51, %65, %cst_34 {dimension_numbers = #tpu.dot_dimension_numbers<[1], [0], [0], [1], [0, 0, 1, 1], [], []>} : vector<8x128xf32>, vector<128x128xf32>, vector<8x128xf32> -> vector<8x128xf32>
    %67 = arith.addf %64, %66 : vector<8x128xf32>
    %68 = arith.negf %67 : vector<8x128xf32>
    %69 = math.exp %68 : vector<8x128xf32>
    %cst_35 = arith.constant 1.000000e+00 : f32
    %70 = vector.broadcast %cst_35 : f32 to vector<8x128xf32>
    %71 = arith.addf %70, %69 : vector<8x128xf32>
    %72 = arith.divf %70, %71 : vector<8x128xf32>
    %73 = math.tanh %67 : vector<8x128xf32>
    %c96_i32_36 = arith.constant 96 : i32
    %74 = tpu.dynamic_rotate %72 by %c96_i32_36 dim 1 : vector<8x128xf32>, i32 -> vector<8x128xf32>
    %c64_i32_37 = arith.constant 64 : i32
    %75 = tpu.dynamic_rotate %73 by %c64_i32_37 dim 1 : vector<8x128xf32>, i32 -> vector<8x128xf32>
    %c32_i32_38 = arith.constant 32 : i32
    %76 = tpu.dynamic_rotate %72 by %c32_i32_38 dim 1 : vector<8x128xf32>, i32 -> vector<8x128xf32>
    %77 = arith.mulf %74, %49 : vector<8x128xf32>
    %78 = arith.mulf %72, %75 : vector<8x128xf32>
    %79 = arith.addf %77, %78 : vector<8x128xf32>
    %80 = math.tanh %79 : vector<8x128xf32>
    %81 = arith.mulf %76, %80 : vector<8x128xf32>
    %c0_39 = arith.constant 0 : index
    %c0_40 = arith.constant 0 : index
    %82 = vector.load %arg4[%c0_39, %c0_40] : memref<128x128xf32, #tpu.memory_space<vmem>>, vector<128x128xf32>
    %cst_41 = arith.constant dense<0.000000e+00> : vector<8x128xf32>
    %83 = tpu.matmul %81, %82, %cst_41 {dimension_numbers = #tpu.dot_dimension_numbers<[1], [0], [0], [1], [0, 0, 1, 1], [], []>} : vector<8x128xf32>, vector<128x128xf32>, vector<8x128xf32> -> vector<8x128xf32>
    %c0_42 = arith.constant 0 : index
    %c0_43 = arith.constant 0 : index
    %84 = vector.load %arg5[%c0_42, %c0_43] : memref<1x128xf32, #tpu.memory_space<vmem>>, vector<1x128xf32>
    %85 = vector.broadcast %84 : vector<1x128xf32> to vector<8x128xf32>
    %86 = arith.addf %83, %85 : vector<8x128xf32>
    %c8_i32_44 = arith.constant 8 : i32
    %87 = arith.muli %c2_i32, %c8_i32_44 : i32
    %c0_i32_45 = arith.constant 0 : i32
    %88 = arith.addi %c0_i32_45, %87 : i32
    %89 = tpu.assume_multiple %88, 8 : i32
    %90 = arith.index_cast %89 : i32 to index
    %c0_46 = arith.constant 0 : index
    %91 = vector.load %arg9[%90, %c0_46] : memref<128x128xf32, #tpu.memory_space<vmem>>, vector<8x128xf32>
    tpu.vector_store %arg9[%90, %c0_46], %86 {strides = array<i32>} : memref<128x128xf32, #tpu.memory_space<vmem>>, vector<8x128xf32>,
    %c3_i32 = arith.constant 3 : i32
    %92 = arith.index_cast %c3_i32 : i32 to index
    %c0_47 = arith.constant 0 : index
    %c0_48 = arith.constant 0 : index
    %93 = vector.load %arg1[%92, %c0_47, %c0_48] : memref<8x8x128xf32, #tpu.memory_space<vmem>>, vector<1x8x128xf32>
    %94 = vector.shape_cast %93 : vector<1x8x128xf32> to vector<8x128xf32>
    %c0_49 = arith.constant 0 : index
    %c0_50 = arith.constant 0 : index
    %95 = vector.load %arg2[%c0_49, %c0_50] : memref<128x128xf32, #tpu.memory_space<vmem>>, vector<128x128xf32>
    %cst_51 = arith.constant dense<0.000000e+00> : vector<8x128xf32>
    %96 = tpu.matmul %81, %95, %cst_51 {dimension_numbers = #tpu.dot_dimension_numbers<[1], [0], [0], [1], [0, 0, 1, 1], [], []>} : vector<8x128xf32>, vector<128x128xf32>, vector<8x128xf32> -> vector<8x128xf32>
    %97 = arith.addf %94, %96 : vector<8x128xf32>
    %98 = arith.negf %97 : vector<8x128xf32>
    %99 = math.exp %98 : vector<8x128xf32>
    %cst_52 = arith.constant 1.000000e+00 : f32
    %100 = vector.broadcast %cst_52 : f32 to vector<8x128xf32>
    %101 = arith.addf %100, %99 : vector<8x128xf32>
    %102 = arith.divf %100, %101 : vector<8x128xf32>
    %103 = math.tanh %97 : vector<8x128xf32>
    %c96_i32_53 = arith.constant 96 : i32
    %104 = tpu.dynamic_rotate %102 by %c96_i32_53 dim 1 : vector<8x128xf32>, i32 -> vector<8x128xf32>
    %c64_i32_54 = arith.constant 64 : i32
    %105 = tpu.dynamic_rotate %103 by %c64_i32_54 dim 1 : vector<8x128xf32>, i32 -> vector<8x128xf32>
    %c32_i32_55 = arith.constant 32 : i32
    %106 = tpu.dynamic_rotate %102 by %c32_i32_55 dim 1 : vector<8x128xf32>, i32 -> vector<8x128xf32>
    %107 = arith.mulf %104, %79 : vector<8x128xf32>
    %108 = arith.mulf %102, %105 : vector<8x128xf32>
    %109 = arith.addf %107, %108 : vector<8x128xf32>
    %110 = math.tanh %109 : vector<8x128xf32>
    %111 = arith.mulf %106, %110 : vector<8x128xf32>
    %c0_56 = arith.constant 0 : index
    %c0_57 = arith.constant 0 : index
    %112 = vector.load %arg4[%c0_56, %c0_57] : memref<128x128xf32, #tpu.memory_space<vmem>>, vector<128x128xf32>
    %cst_58 = arith.constant dense<0.000000e+00> : vector<8x128xf32>
    %113 = tpu.matmul %111, %112, %cst_58 {dimension_numbers = #tpu.dot_dimension_numbers<[1], [0], [0], [1], [0, 0, 1, 1], [], []>} : vector<8x128xf32>, vector<128x128xf32>, vector<8x128xf32> -> vector<8x128xf32>
    %c0_59 = arith.constant 0 : index
    %c0_60 = arith.constant 0 : index
    %114 = vector.load %arg5[%c0_59, %c0_60] : memref<1x128xf32, #tpu.memory_space<vmem>>, vector<1x128xf32>
    %115 = vector.broadcast %114 : vector<1x128xf32> to vector<8x128xf32>
    %116 = arith.addf %113, %115 : vector<8x128xf32>
    %c8_i32_61 = arith.constant 8 : i32
    %117 = arith.muli %c3_i32, %c8_i32_61 : i32
    %c0_i32_62 = arith.constant 0 : i32
    %118 = arith.addi %c0_i32_62, %117 : i32
    %119 = tpu.assume_multiple %118, 8 : i32
    %120 = arith.index_cast %119 : i32 to index
    %c0_63 = arith.constant 0 : index
    %121 = vector.load %arg9[%120, %c0_63] : memref<128x128xf32, #tpu.memory_space<vmem>>, vector<8x128xf32>
    tpu.vector_store %arg9[%120, %c0_63], %116 {strides = array<i32>} : memref<128x128xf32, #tpu.memory_space<vmem>>, vector<8x128xf32>,
    %c4_i32 = arith.constant 4 : i32
    %122 = arith.index_cast %c4_i32 : i32 to index
    %c0_64 = arith.constant 0 : index
    %c0_65 = arith.constant 0 : index
    %123 = vector.load %arg1[%122, %c0_64, %c0_65] : memref<8x8x128xf32, #tpu.memory_space<vmem>>, vector<1x8x128xf32>
    %124 = vector.shape_cast %123 : vector<1x8x128xf32> to vector<8x128xf32>
    %c0_66 = arith.constant 0 : index
    %c0_67 = arith.constant 0 : index
    %125 = vector.load %arg2[%c0_66, %c0_67] : memref<128x128xf32, #tpu.memory_space<vmem>>, vector<128x128xf32>
    %cst_68 = arith.constant dense<0.000000e+00> : vector<8x128xf32>
    %126 = tpu.matmul %111, %125, %cst_68 {dimension_numbers = #tpu.dot_dimension_numbers<[1], [0], [0], [1], [0, 0, 1, 1], [], []>} : vector<8x128xf32>, vector<128x128xf32>, vector<8x128xf32> -> vector<8x128xf32>
    %127 = arith.addf %124, %126 : vector<8x128xf32>
    %128 = arith.negf %127 : vector<8x128xf32>
    %129 = math.exp %128 : vector<8x128xf32>
    %cst_69 = arith.constant 1.000000e+00 : f32
    %130 = vector.broadcast %cst_69 : f32 to vector<8x128xf32>
    %131 = arith.addf %130, %129 : vector<8x128xf32>
    %132 = arith.divf %130, %131 : vector<8x128xf32>
    %133 = math.tanh %127 : vector<8x128xf32>
    %c96_i32_70 = arith.constant 96 : i32
    %134 = tpu.dynamic_rotate %132 by %c96_i32_70 dim 1 : vector<8x128xf32>, i32 -> vector<8x128xf32>
    %c64_i32_71 = arith.constant 64 : i32
    %135 = tpu.dynamic_rotate %133 by %c64_i32_71 dim 1 : vector<8x128xf32>, i32 -> vector<8x128xf32>
    %c32_i32_72 = arith.constant 32 : i32
    %136 = tpu.dynamic_rotate %132 by %c32_i32_72 dim 1 : vector<8x128xf32>, i32 -> vector<8x128xf32>
    %137 = arith.mulf %134, %109 : vector<8x128xf32>
    %138 = arith.mulf %132, %135 : vector<8x128xf32>
    %139 = arith.addf %137, %138 : vector<8x128xf32>
    %140 = math.tanh %139 : vector<8x128xf32>
    %141 = arith.mulf %136, %140 : vector<8x128xf32>
    %c0_73 = arith.constant 0 : index
    %c0_74 = arith.constant 0 : index
    %142 = vector.load %arg4[%c0_73, %c0_74] : memref<128x128xf32, #tpu.memory_space<vmem>>, vector<128x128xf32>
    %cst_75 = arith.constant dense<0.000000e+00> : vector<8x128xf32>
    %143 = tpu.matmul %141, %142, %cst_75 {dimension_numbers = #tpu.dot_dimension_numbers<[1], [0], [0], [1], [0, 0, 1, 1], [], []>} : vector<8x128xf32>, vector<128x128xf32>, vector<8x128xf32> -> vector<8x128xf32>
    %c0_76 = arith.constant 0 : index
    %c0_77 = arith.constant 0 : index
    %144 = vector.load %arg5[%c0_76, %c0_77] : memref<1x128xf32, #tpu.memory_space<vmem>>, vector<1x128xf32>
    %145 = vector.broadcast %144 : vector<1x128xf32> to vector<8x128xf32>
    %146 = arith.addf %143, %145 : vector<8x128xf32>
    %c8_i32_78 = arith.constant 8 : i32
    %147 = arith.muli %c4_i32, %c8_i32_78 : i32
    %c0_i32_79 = arith.constant 0 : i32
    %148 = arith.addi %c0_i32_79, %147 : i32
    %149 = tpu.assume_multiple %148, 8 : i32
    %150 = arith.index_cast %149 : i32 to index
    %c0_80 = arith.constant 0 : index
    %151 = vector.load %arg9[%150, %c0_80] : memref<128x128xf32, #tpu.memory_space<vmem>>, vector<8x128xf32>
    tpu.vector_store %arg9[%150, %c0_80], %146 {strides = array<i32>} : memref<128x128xf32, #tpu.memory_space<vmem>>, vector<8x128xf32>,
    %c5_i32 = arith.constant 5 : i32
    %152 = arith.index_cast %c5_i32 : i32 to index
    %c0_81 = arith.constant 0 : index
    %c0_82 = arith.constant 0 : index
    %153 = vector.load %arg1[%152, %c0_81, %c0_82] : memref<8x8x128xf32, #tpu.memory_space<vmem>>, vector<1x8x128xf32>
    %154 = vector.shape_cast %153 : vector<1x8x128xf32> to vector<8x128xf32>
    %c0_83 = arith.constant 0 : index
    %c0_84 = arith.constant 0 : index
    %155 = vector.load %arg2[%c0_83, %c0_84] : memref<128x128xf32, #tpu.memory_space<vmem>>, vector<128x128xf32>
    %cst_85 = arith.constant dense<0.000000e+00> : vector<8x128xf32>
    %156 = tpu.matmul %141, %155, %cst_85 {dimension_numbers = #tpu.dot_dimension_numbers<[1], [0], [0], [1], [0, 0, 1, 1], [], []>} : vector<8x128xf32>, vector<128x128xf32>, vector<8x128xf32> -> vector<8x128xf32>
    %157 = arith.addf %154, %156 : vector<8x128xf32>
    %158 = arith.negf %157 : vector<8x128xf32>
    %159 = math.exp %158 : vector<8x128xf32>
    %cst_86 = arith.constant 1.000000e+00 : f32
    %160 = vector.broadcast %cst_86 : f32 to vector<8x128xf32>
    %161 = arith.addf %160, %159 : vector<8x128xf32>
    %162 = arith.divf %160, %161 : vector<8x128xf32>
    %163 = math.tanh %157 : vector<8x128xf32>
    %c96_i32_87 = arith.constant 96 : i32
    %164 = tpu.dynamic_rotate %162 by %c96_i32_87 dim 1 : vector<8x128xf32>, i32 -> vector<8x128xf32>
    %c64_i32_88 = arith.constant 64 : i32
    %165 = tpu.dynamic_rotate %163 by %c64_i32_88 dim 1 : vector<8x128xf32>, i32 -> vector<8x128xf32>
    %c32_i32_89 = arith.constant 32 : i32
    %166 = tpu.dynamic_rotate %162 by %c32_i32_89 dim 1 : vector<8x128xf32>, i32 -> vector<8x128xf32>
    %167 = arith.mulf %164, %139 : vector<8x128xf32>
    %168 = arith.mulf %162, %165 : vector<8x128xf32>
    %169 = arith.addf %167, %168 : vector<8x128xf32>
    %170 = math.tanh %169 : vector<8x128xf32>
    %171 = arith.mulf %166, %170 : vector<8x128xf32>
    %c0_90 = arith.constant 0 : index
    %c0_91 = arith.constant 0 : index
    %172 = vector.load %arg4[%c0_90, %c0_91] : memref<128x128xf32, #tpu.memory_space<vmem>>, vector<128x128xf32>
    %cst_92 = arith.constant dense<0.000000e+00> : vector<8x128xf32>
    %173 = tpu.matmul %171, %172, %cst_92 {dimension_numbers = #tpu.dot_dimension_numbers<[1], [0], [0], [1], [0, 0, 1, 1], [], []>} : vector<8x128xf32>, vector<128x128xf32>, vector<8x128xf32> -> vector<8x128xf32>
    %c0_93 = arith.constant 0 : index
    %c0_94 = arith.constant 0 : index
    %174 = vector.load %arg5[%c0_93, %c0_94] : memref<1x128xf32, #tpu.memory_space<vmem>>, vector<1x128xf32>
    %175 = vector.broadcast %174 : vector<1x128xf32> to vector<8x128xf32>
    %176 = arith.addf %173, %175 : vector<8x128xf32>
    %c8_i32_95 = arith.constant 8 : i32
    %177 = arith.muli %c5_i32, %c8_i32_95 : i32
    %c0_i32_96 = arith.constant 0 : i32
    %178 = arith.addi %c0_i32_96, %177 : i32
    %179 = tpu.assume_multiple %178, 8 : i32
    %180 = arith.index_cast %179 : i32 to index
    %c0_97 = arith.constant 0 : index
    %181 = vector.load %arg9[%180, %c0_97] : memref<128x128xf32, #tpu.memory_space<vmem>>, vector<8x128xf32>
    tpu.vector_store %arg9[%180, %c0_97], %176 {strides = array<i32>} : memref<128x128xf32, #tpu.memory_space<vmem>>, vector<8x128xf32>,
    %c6_i32 = arith.constant 6 : i32
    %182 = arith.index_cast %c6_i32 : i32 to index
    %c0_98 = arith.constant 0 : index
    %c0_99 = arith.constant 0 : index
    %183 = vector.load %arg1[%182, %c0_98, %c0_99] : memref<8x8x128xf32, #tpu.memory_space<vmem>>, vector<1x8x128xf32>
    %184 = vector.shape_cast %183 : vector<1x8x128xf32> to vector<8x128xf32>
    %c0_100 = arith.constant 0 : index
    %c0_101 = arith.constant 0 : index
    %185 = vector.load %arg2[%c0_100, %c0_101] : memref<128x128xf32, #tpu.memory_space<vmem>>, vector<128x128xf32>
    %cst_102 = arith.constant dense<0.000000e+00> : vector<8x128xf32>
    %186 = tpu.matmul %171, %185, %cst_102 {dimension_numbers = #tpu.dot_dimension_numbers<[1], [0], [0], [1], [0, 0, 1, 1], [], []>} : vector<8x128xf32>, vector<128x128xf32>, vector<8x128xf32> -> vector<8x128xf32>
    %187 = arith.addf %184, %186 : vector<8x128xf32>
    %188 = arith.negf %187 : vector<8x128xf32>
    %189 = math.exp %188 : vector<8x128xf32>
    %cst_103 = arith.constant 1.000000e+00 : f32
    %190 = vector.broadcast %cst_103 : f32 to vector<8x128xf32>
    %191 = arith.addf %190, %189 : vector<8x128xf32>
    %192 = arith.divf %190, %191 : vector<8x128xf32>
    %193 = math.tanh %187 : vector<8x128xf32>
    %c96_i32_104 = arith.constant 96 : i32
    %194 = tpu.dynamic_rotate %192 by %c96_i32_104 dim 1 : vector<8x128xf32>, i32 -> vector<8x128xf32>
    %c64_i32_105 = arith.constant 64 : i32
    %195 = tpu.dynamic_rotate %193 by %c64_i32_105 dim 1 : vector<8x128xf32>, i32 -> vector<8x128xf32>
    %c32_i32_106 = arith.constant 32 : i32
    %196 = tpu.dynamic_rotate %192 by %c32_i32_106 dim 1 : vector<8x128xf32>, i32 -> vector<8x128xf32>
    %197 = arith.mulf %194, %169 : vector<8x128xf32>
    %198 = arith.mulf %192, %195 : vector<8x128xf32>
    %199 = arith.addf %197, %198 : vector<8x128xf32>
    %200 = math.tanh %199 : vector<8x128xf32>
    %201 = arith.mulf %196, %200 : vector<8x128xf32>
    %c0_107 = arith.constant 0 : index
    %c0_108 = arith.constant 0 : index
    %202 = vector.load %arg4[%c0_107, %c0_108] : memref<128x128xf32, #tpu.memory_space<vmem>>, vector<128x128xf32>
    %cst_109 = arith.constant dense<0.000000e+00> : vector<8x128xf32>
    %203 = tpu.matmul %201, %202, %cst_109 {dimension_numbers = #tpu.dot_dimension_numbers<[1], [0], [0], [1], [0, 0, 1, 1], [], []>} : vector<8x128xf32>, vector<128x128xf32>, vector<8x128xf32> -> vector<8x128xf32>
    %c0_110 = arith.constant 0 : index
    %c0_111 = arith.constant 0 : index
    %204 = vector.load %arg5[%c0_110, %c0_111] : memref<1x128xf32, #tpu.memory_space<vmem>>, vector<1x128xf32>
    %205 = vector.broadcast %204 : vector<1x128xf32> to vector<8x128xf32>
    %206 = arith.addf %203, %205 : vector<8x128xf32>
    %c8_i32_112 = arith.constant 8 : i32
    %207 = arith.muli %c6_i32, %c8_i32_112 : i32
    %c0_i32_113 = arith.constant 0 : i32
    %208 = arith.addi %c0_i32_113, %207 : i32
    %209 = tpu.assume_multiple %208, 8 : i32
    %210 = arith.index_cast %209 : i32 to index
    %c0_114 = arith.constant 0 : index
    %211 = vector.load %arg9[%210, %c0_114] : memref<128x128xf32, #tpu.memory_space<vmem>>, vector<8x128xf32>
    tpu.vector_store %arg9[%210, %c0_114], %206 {strides = array<i32>} : memref<128x128xf32, #tpu.memory_space<vmem>>, vector<8x128xf32>,
    %c7_i32 = arith.constant 7 : i32
    %212 = arith.index_cast %c7_i32 : i32 to index
    %c0_115 = arith.constant 0 : index
    %c0_116 = arith.constant 0 : index
    %213 = vector.load %arg1[%212, %c0_115, %c0_116] : memref<8x8x128xf32, #tpu.memory_space<vmem>>, vector<1x8x128xf32>
    %214 = vector.shape_cast %213 : vector<1x8x128xf32> to vector<8x128xf32>
    %c0_117 = arith.constant 0 : index
    %c0_118 = arith.constant 0 : index
    %215 = vector.load %arg2[%c0_117, %c0_118] : memref<128x128xf32, #tpu.memory_space<vmem>>, vector<128x128xf32>
    %cst_119 = arith.constant dense<0.000000e+00> : vector<8x128xf32>
    %216 = tpu.matmul %201, %215, %cst_119 {dimension_numbers = #tpu.dot_dimension_numbers<[1], [0], [0], [1], [0, 0, 1, 1], [], []>} : vector<8x128xf32>, vector<128x128xf32>, vector<8x128xf32> -> vector<8x128xf32>
    %217 = arith.addf %214, %216 : vector<8x128xf32>
    %218 = arith.negf %217 : vector<8x128xf32>
    %219 = math.exp %218 : vector<8x128xf32>
    %cst_120 = arith.constant 1.000000e+00 : f32
    %220 = vector.broadcast %cst_120 : f32 to vector<8x128xf32>
    %221 = arith.addf %220, %219 : vector<8x128xf32>
    %222 = arith.divf %220, %221 : vector<8x128xf32>
    %223 = math.tanh %217 : vector<8x128xf32>
    %c96_i32_121 = arith.constant 96 : i32
    %224 = tpu.dynamic_rotate %222 by %c96_i32_121 dim 1 : vector<8x128xf32>, i32 -> vector<8x128xf32>
    %c64_i32_122 = arith.constant 64 : i32
    %225 = tpu.dynamic_rotate %223 by %c64_i32_122 dim 1 : vector<8x128xf32>, i32 -> vector<8x128xf32>
    %c32_i32_123 = arith.constant 32 : i32
    %226 = tpu.dynamic_rotate %222 by %c32_i32_123 dim 1 : vector<8x128xf32>, i32 -> vector<8x128xf32>
    %227 = arith.mulf %224, %199 : vector<8x128xf32>
    %228 = arith.mulf %222, %225 : vector<8x128xf32>
    %229 = arith.addf %227, %228 : vector<8x128xf32>
    %230 = math.tanh %229 : vector<8x128xf32>
    %231 = arith.mulf %226, %230 : vector<8x128xf32>
    %c0_124 = arith.constant 0 : index
    %c0_125 = arith.constant 0 : index
    %232 = vector.load %arg4[%c0_124, %c0_125] : memref<128x128xf32, #tpu.memory_space<vmem>>, vector<128x128xf32>
    %cst_126 = arith.constant dense<0.000000e+00> : vector<8x128xf32>
    %233 = tpu.matmul %231, %232, %cst_126 {dimension_numbers = #tpu.dot_dimension_numbers<[1], [0], [0], [1], [0, 0, 1, 1], [], []>} : vector<8x128xf32>, vector<128x128xf32>, vector<8x128xf32> -> vector<8x128xf32>
    %c0_127 = arith.constant 0 : index
    %c0_128 = arith.constant 0 : index
    %234 = vector.load %arg5[%c0_127, %c0_128] : memref<1x128xf32, #tpu.memory_space<vmem>>, vector<1x128xf32>
    %235 = vector.broadcast %234 : vector<1x128xf32> to vector<8x128xf32>
    %236 = arith.addf %233, %235 : vector<8x128xf32>
    %c8_i32_129 = arith.constant 8 : i32
    %237 = arith.muli %c7_i32, %c8_i32_129 : i32
    %c0_i32_130 = arith.constant 0 : i32
    %238 = arith.addi %c0_i32_130, %237 : i32
    %239 = tpu.assume_multiple %238, 8 : i32
    %240 = arith.index_cast %239 : i32 to index
    %c0_131 = arith.constant 0 : index
    %241 = vector.load %arg9[%240, %c0_131] : memref<128x128xf32, #tpu.memory_space<vmem>>, vector<8x128xf32>
    tpu.vector_store %arg9[%240, %c0_131], %236 {strides = array<i32>} : memref<128x128xf32, #tpu.memory_space<vmem>>, vector<8x128xf32>,
    %c8_i32_132 = arith.constant 8 : i32
    %cst_133 = arith.constant 0.000000e+00 : f32
    %242 = vector.broadcast %cst_133 : f32 to vector<8x128xf32>
    %cst_134 = arith.constant 0.000000e+00 : f32
    %243 = vector.broadcast %cst_134 : f32 to vector<8x128xf32>
    %cst_135 = arith.constant 0.000000e+00 : f32
    %244 = vector.broadcast %cst_135 : f32 to vector<8x128xf32>
    %c0_i32_136 = arith.constant 0 : i32
    %c8_i32_137 = arith.constant 8 : i32
    %245 = arith.muli %c0_i32_136, %c8_i32_137 : i32
    %c0_i32_138 = arith.constant 0 : i32
    %246 = arith.addi %c0_i32_138, %245 : i32
    %247 = tpu.assume_multiple %246, 8 : i32
    %248 = arith.index_cast %247 : i32 to index
    %c0_139 = arith.constant 0 : index
    %249 = vector.load %arg9[%248, %c0_139] : memref<128x128xf32, #tpu.memory_space<vmem>>, vector<8x128xf32>
    %c0_140 = arith.constant 0 : index
    %c0_141 = arith.constant 0 : index
    %250 = vector.load %arg3[%c0_140, %c0_141] : memref<128x128xf32, #tpu.memory_space<vmem>>, vector<128x128xf32>
    %cst_142 = arith.constant dense<0.000000e+00> : vector<8x128xf32>
    %251 = tpu.matmul %242, %250, %cst_142 {dimension_numbers = #tpu.dot_dimension_numbers<[1], [0], [0], [1], [0, 0, 1, 1], [], []>} : vector<8x128xf32>, vector<128x128xf32>, vector<8x128xf32> -> vector<8x128xf32>
    %252 = arith.addf %249, %251 : vector<8x128xf32>
    %253 = arith.negf %252 : vector<8x128xf32>
    %254 = math.exp %253 : vector<8x128xf32>
    %cst_143 = arith.constant 1.000000e+00 : f32
    %255 = vector.broadcast %cst_143 : f32 to vector<8x128xf32>
    %256 = arith.addf %255, %254 : vector<8x128xf32>
    %257 = arith.divf %255, %256 : vector<8x128xf32>
    %258 = math.tanh %252 : vector<8x128xf32>
    %c96_i32_144 = arith.constant 96 : i32
    %259 = tpu.dynamic_rotate %257 by %c96_i32_144 dim 1 : vector<8x128xf32>, i32 -> vector<8x128xf32>
    %c64_i32_145 = arith.constant 64 : i32
    %260 = tpu.dynamic_rotate %258 by %c64_i32_145 dim 1 : vector<8x128xf32>, i32 -> vector<8x128xf32>
    %c32_i32_146 = arith.constant 32 : i32
    %261 = tpu.dynamic_rotate %257 by %c32_i32_146 dim 1 : vector<8x128xf32>, i32 -> vector<8x128xf32>
    %262 = arith.mulf %259, %243 : vector<8x128xf32>
    %263 = arith.mulf %257, %260 : vector<8x128xf32>
    %264 = arith.addf %262, %263 : vector<8x128xf32>
    %265 = math.tanh %264 : vector<8x128xf32>
    %266 = arith.mulf %261, %265 : vector<8x128xf32>
    %267 = arith.index_cast %c0_i32_136 : i32 to index
    %c0_147 = arith.constant 0 : index
    %268 = vector.load %arg6[%267, %c0_147] : memref<8x128xf32, #tpu.memory_space<vmem>>, vector<1x128xf32>
    %269 = vector.broadcast %268 : vector<1x128xf32> to vector<8x128xf32>
    %270 = arith.mulf %266, %269 : vector<8x128xf32>
    %271 = arith.addf %244, %270 : vector<8x128xf32>
    %c1_i32_148 = arith.constant 1 : i32
    %c8_i32_149 = arith.constant 8 : i32
    %272 = arith.muli %c1_i32_148, %c8_i32_149 : i32
    %c0_i32_150 = arith.constant 0 : i32
    %273 = arith.addi %c0_i32_150, %272 : i32
    %274 = tpu.assume_multiple %273, 8 : i32
    %275 = arith.index_cast %274 : i32 to index
    %c0_151 = arith.constant 0 : index
    %276 = vector.load %arg9[%275, %c0_151] : memref<128x128xf32, #tpu.memory_space<vmem>>, vector<8x128xf32>
    %c0_152 = arith.constant 0 : index
    %c0_153 = arith.constant 0 : index
    %277 = vector.load %arg3[%c0_152, %c0_153] : memref<128x128xf32, #tpu.memory_space<vmem>>, vector<128x128xf32>
    %cst_154 = arith.constant dense<0.000000e+00> : vector<8x128xf32>
    %278 = tpu.matmul %266, %277, %cst_154 {dimension_numbers = #tpu.dot_dimension_numbers<[1], [0], [0], [1], [0, 0, 1, 1], [], []>} : vector<8x128xf32>, vector<128x128xf32>, vector<8x128xf32> -> vector<8x128xf32>
    %279 = arith.addf %276, %278 : vector<8x128xf32>
    %280 = arith.negf %279 : vector<8x128xf32>
    %281 = math.exp %280 : vector<8x128xf32>
    %cst_155 = arith.constant 1.000000e+00 : f32
    %282 = vector.broadcast %cst_155 : f32 to vector<8x128xf32>
    %283 = arith.addf %282, %281 : vector<8x128xf32>
    %284 = arith.divf %282, %283 : vector<8x128xf32>
    %285 = math.tanh %279 : vector<8x128xf32>
    %c96_i32_156 = arith.constant 96 : i32
    %286 = tpu.dynamic_rotate %284 by %c96_i32_156 dim 1 : vector<8x128xf32>, i32 -> vector<8x128xf32>
    %c64_i32_157 = arith.constant 64 : i32
    %287 = tpu.dynamic_rotate %285 by %c64_i32_157 dim 1 : vector<8x128xf32>, i32 -> vector<8x128xf32>
    %c32_i32_158 = arith.constant 32 : i32
    %288 = tpu.dynamic_rotate %284 by %c32_i32_158 dim 1 : vector<8x128xf32>, i32 -> vector<8x128xf32>
    %289 = arith.mulf %286, %264 : vector<8x128xf32>
    %290 = arith.mulf %284, %287 : vector<8x128xf32>
    %291 = arith.addf %289, %290 : vector<8x128xf32>
    %292 = math.tanh %291 : vector<8x128xf32>
    %293 = arith.mulf %288, %292 : vector<8x128xf32>
    %294 = arith.index_cast %c1_i32_148 : i32 to index
    %c0_159 = arith.constant 0 : index
    %295 = vector.load %arg6[%294, %c0_159] : memref<8x128xf32, #tpu.memory_space<vmem>>, vector<1x128xf32>
    %296 = vector.broadcast %295 : vector<1x128xf32> to vector<8x128xf32>
    %297 = arith.mulf %293, %296 : vector<8x128xf32>
    %298 = arith.addf %271, %297 : vector<8x128xf32>
    %c2_i32_160 = arith.constant 2 : i32
    %c8_i32_161 = arith.constant 8 : i32
    %299 = arith.muli %c2_i32_160, %c8_i32_161 : i32
    %c0_i32_162 = arith.constant 0 : i32
    %300 = arith.addi %c0_i32_162, %299 : i32
    %301 = tpu.assume_multiple %300, 8 : i32
    %302 = arith.index_cast %301 : i32 to index
    %c0_163 = arith.constant 0 : index
    %303 = vector.load %arg9[%302, %c0_163] : memref<128x128xf32, #tpu.memory_space<vmem>>, vector<8x128xf32>
    %c0_164 = arith.constant 0 : index
    %c0_165 = arith.constant 0 : index
    %304 = vector.load %arg3[%c0_164, %c0_165] : memref<128x128xf32, #tpu.memory_space<vmem>>, vector<128x128xf32>
    %cst_166 = arith.constant dense<0.000000e+00> : vector<8x128xf32>
    %305 = tpu.matmul %293, %304, %cst_166 {dimension_numbers = #tpu.dot_dimension_numbers<[1], [0], [0], [1], [0, 0, 1, 1], [], []>} : vector<8x128xf32>, vector<128x128xf32>, vector<8x128xf32> -> vector<8x128xf32>
    %306 = arith.addf %303, %305 : vector<8x128xf32>
    %307 = arith.negf %306 : vector<8x128xf32>
    %308 = math.exp %307 : vector<8x128xf32>
    %cst_167 = arith.constant 1.000000e+00 : f32
    %309 = vector.broadcast %cst_167 : f32 to vector<8x128xf32>
    %310 = arith.addf %309, %308 : vector<8x128xf32>
    %311 = arith.divf %309, %310 : vector<8x128xf32>
    %312 = math.tanh %306 : vector<8x128xf32>
    %c96_i32_168 = arith.constant 96 : i32
    %313 = tpu.dynamic_rotate %311 by %c96_i32_168 dim 1 : vector<8x128xf32>, i32 -> vector<8x128xf32>
    %c64_i32_169 = arith.constant 64 : i32
    %314 = tpu.dynamic_rotate %312 by %c64_i32_169 dim 1 : vector<8x128xf32>, i32 -> vector<8x128xf32>
    %c32_i32_170 = arith.constant 32 : i32
    %315 = tpu.dynamic_rotate %311 by %c32_i32_170 dim 1 : vector<8x128xf32>, i32 -> vector<8x128xf32>
    %316 = arith.mulf %313, %291 : vector<8x128xf32>
    %317 = arith.mulf %311, %314 : vector<8x128xf32>
    %318 = arith.addf %316, %317 : vector<8x128xf32>
    %319 = math.tanh %318 : vector<8x128xf32>
    %320 = arith.mulf %315, %319 : vector<8x128xf32>
    %321 = arith.index_cast %c2_i32_160 : i32 to index
    %c0_171 = arith.constant 0 : index
    %322 = vector.load %arg6[%321, %c0_171] : memref<8x128xf32, #tpu.memory_space<vmem>>, vector<1x128xf32>
    %323 = vector.broadcast %322 : vector<1x128xf32> to vector<8x128xf32>
    %324 = arith.mulf %320, %323 : vector<8x128xf32>
    %325 = arith.addf %298, %324 : vector<8x128xf32>
    %c3_i32_172 = arith.constant 3 : i32
    %c8_i32_173 = arith.constant 8 : i32
    %326 = arith.muli %c3_i32_172, %c8_i32_173 : i32
    %c0_i32_174 = arith.constant 0 : i32
    %327 = arith.addi %c0_i32_174, %326 : i32
    %328 = tpu.assume_multiple %327, 8 : i32
    %329 = arith.index_cast %328 : i32 to index
    %c0_175 = arith.constant 0 : index
    %330 = vector.load %arg9[%329, %c0_175] : memref<128x128xf32, #tpu.memory_space<vmem>>, vector<8x128xf32>
    %c0_176 = arith.constant 0 : index
    %c0_177 = arith.constant 0 : index
    %331 = vector.load %arg3[%c0_176, %c0_177] : memref<128x128xf32, #tpu.memory_space<vmem>>, vector<128x128xf32>
    %cst_178 = arith.constant dense<0.000000e+00> : vector<8x128xf32>
    %332 = tpu.matmul %320, %331, %cst_178 {dimension_numbers = #tpu.dot_dimension_numbers<[1], [0], [0], [1], [0, 0, 1, 1], [], []>} : vector<8x128xf32>, vector<128x128xf32>, vector<8x128xf32> -> vector<8x128xf32>
    %333 = arith.addf %330, %332 : vector<8x128xf32>
    %334 = arith.negf %333 : vector<8x128xf32>
    %335 = math.exp %334 : vector<8x128xf32>
    %cst_179 = arith.constant 1.000000e+00 : f32
    %336 = vector.broadcast %cst_179 : f32 to vector<8x128xf32>
    %337 = arith.addf %336, %335 : vector<8x128xf32>
    %338 = arith.divf %336, %337 : vector<8x128xf32>
    %339 = math.tanh %333 : vector<8x128xf32>
    %c96_i32_180 = arith.constant 96 : i32
    %340 = tpu.dynamic_rotate %338 by %c96_i32_180 dim 1 : vector<8x128xf32>, i32 -> vector<8x128xf32>
    %c64_i32_181 = arith.constant 64 : i32
    %341 = tpu.dynamic_rotate %339 by %c64_i32_181 dim 1 : vector<8x128xf32>, i32 -> vector<8x128xf32>
    %c32_i32_182 = arith.constant 32 : i32
    %342 = tpu.dynamic_rotate %338 by %c32_i32_182 dim 1 : vector<8x128xf32>, i32 -> vector<8x128xf32>
    %343 = arith.mulf %340, %318 : vector<8x128xf32>
    %344 = arith.mulf %338, %341 : vector<8x128xf32>
    %345 = arith.addf %343, %344 : vector<8x128xf32>
    %346 = math.tanh %345 : vector<8x128xf32>
    %347 = arith.mulf %342, %346 : vector<8x128xf32>
    %348 = arith.index_cast %c3_i32_172 : i32 to index
    %c0_183 = arith.constant 0 : index
    %349 = vector.load %arg6[%348, %c0_183] : memref<8x128xf32, #tpu.memory_space<vmem>>, vector<1x128xf32>
    %350 = vector.broadcast %349 : vector<1x128xf32> to vector<8x128xf32>
    %351 = arith.mulf %347, %350 : vector<8x128xf32>
    %352 = arith.addf %325, %351 : vector<8x128xf32>
    %c4_i32_184 = arith.constant 4 : i32
    %c8_i32_185 = arith.constant 8 : i32
    %353 = arith.muli %c4_i32_184, %c8_i32_185 : i32
    %c0_i32_186 = arith.constant 0 : i32
    %354 = arith.addi %c0_i32_186, %353 : i32
    %355 = tpu.assume_multiple %354, 8 : i32
    %356 = arith.index_cast %355 : i32 to index
    %c0_187 = arith.constant 0 : index
    %357 = vector.load %arg9[%356, %c0_187] : memref<128x128xf32, #tpu.memory_space<vmem>>, vector<8x128xf32>
    %c0_188 = arith.constant 0 : index
    %c0_189 = arith.constant 0 : index
    %358 = vector.load %arg3[%c0_188, %c0_189] : memref<128x128xf32, #tpu.memory_space<vmem>>, vector<128x128xf32>
    %cst_190 = arith.constant dense<0.000000e+00> : vector<8x128xf32>
    %359 = tpu.matmul %347, %358, %cst_190 {dimension_numbers = #tpu.dot_dimension_numbers<[1], [0], [0], [1], [0, 0, 1, 1], [], []>} : vector<8x128xf32>, vector<128x128xf32>, vector<8x128xf32> -> vector<8x128xf32>
    %360 = arith.addf %357, %359 : vector<8x128xf32>
    %361 = arith.negf %360 : vector<8x128xf32>
    %362 = math.exp %361 : vector<8x128xf32>
    %cst_191 = arith.constant 1.000000e+00 : f32
    %363 = vector.broadcast %cst_191 : f32 to vector<8x128xf32>
    %364 = arith.addf %363, %362 : vector<8x128xf32>
    %365 = arith.divf %363, %364 : vector<8x128xf32>
    %366 = math.tanh %360 : vector<8x128xf32>
    %c96_i32_192 = arith.constant 96 : i32
    %367 = tpu.dynamic_rotate %365 by %c96_i32_192 dim 1 : vector<8x128xf32>, i32 -> vector<8x128xf32>
    %c64_i32_193 = arith.constant 64 : i32
    %368 = tpu.dynamic_rotate %366 by %c64_i32_193 dim 1 : vector<8x128xf32>, i32 -> vector<8x128xf32>
    %c32_i32_194 = arith.constant 32 : i32
    %369 = tpu.dynamic_rotate %365 by %c32_i32_194 dim 1 : vector<8x128xf32>, i32 -> vector<8x128xf32>
    %370 = arith.mulf %367, %345 : vector<8x128xf32>
    %371 = arith.mulf %365, %368 : vector<8x128xf32>
    %372 = arith.addf %370, %371 : vector<8x128xf32>
    %373 = math.tanh %372 : vector<8x128xf32>
    %374 = arith.mulf %369, %373 : vector<8x128xf32>
    %375 = arith.index_cast %c4_i32_184 : i32 to index
    %c0_195 = arith.constant 0 : index
    %376 = vector.load %arg6[%375, %c0_195] : memref<8x128xf32, #tpu.memory_space<vmem>>, vector<1x128xf32>
    %377 = vector.broadcast %376 : vector<1x128xf32> to vector<8x128xf32>
    %378 = arith.mulf %374, %377 : vector<8x128xf32>
    %379 = arith.addf %352, %378 : vector<8x128xf32>
    %c5_i32_196 = arith.constant 5 : i32
    %c8_i32_197 = arith.constant 8 : i32
    %380 = arith.muli %c5_i32_196, %c8_i32_197 : i32
    %c0_i32_198 = arith.constant 0 : i32
    %381 = arith.addi %c0_i32_198, %380 : i32
    %382 = tpu.assume_multiple %381, 8 : i32
    %383 = arith.index_cast %382 : i32 to index
    %c0_199 = arith.constant 0 : index
    %384 = vector.load %arg9[%383, %c0_199] : memref<128x128xf32, #tpu.memory_space<vmem>>, vector<8x128xf32>
    %c0_200 = arith.constant 0 : index
    %c0_201 = arith.constant 0 : index
    %385 = vector.load %arg3[%c0_200, %c0_201] : memref<128x128xf32, #tpu.memory_space<vmem>>, vector<128x128xf32>
    %cst_202 = arith.constant dense<0.000000e+00> : vector<8x128xf32>
    %386 = tpu.matmul %374, %385, %cst_202 {dimension_numbers = #tpu.dot_dimension_numbers<[1], [0], [0], [1], [0, 0, 1, 1], [], []>} : vector<8x128xf32>, vector<128x128xf32>, vector<8x128xf32> -> vector<8x128xf32>
    %387 = arith.addf %384, %386 : vector<8x128xf32>
    %388 = arith.negf %387 : vector<8x128xf32>
    %389 = math.exp %388 : vector<8x128xf32>
    %cst_203 = arith.constant 1.000000e+00 : f32
    %390 = vector.broadcast %cst_203 : f32 to vector<8x128xf32>
    %391 = arith.addf %390, %389 : vector<8x128xf32>
    %392 = arith.divf %390, %391 : vector<8x128xf32>
    %393 = math.tanh %387 : vector<8x128xf32>
    %c96_i32_204 = arith.constant 96 : i32
    %394 = tpu.dynamic_rotate %392 by %c96_i32_204 dim 1 : vector<8x128xf32>, i32 -> vector<8x128xf32>
    %c64_i32_205 = arith.constant 64 : i32
    %395 = tpu.dynamic_rotate %393 by %c64_i32_205 dim 1 : vector<8x128xf32>, i32 -> vector<8x128xf32>
    %c32_i32_206 = arith.constant 32 : i32
    %396 = tpu.dynamic_rotate %392 by %c32_i32_206 dim 1 : vector<8x128xf32>, i32 -> vector<8x128xf32>
    %397 = arith.mulf %394, %372 : vector<8x128xf32>
    %398 = arith.mulf %392, %395 : vector<8x128xf32>
    %399 = arith.addf %397, %398 : vector<8x128xf32>
    %400 = math.tanh %399 : vector<8x128xf32>
    %401 = arith.mulf %396, %400 : vector<8x128xf32>
    %402 = arith.index_cast %c5_i32_196 : i32 to index
    %c0_207 = arith.constant 0 : index
    %403 = vector.load %arg6[%402, %c0_207] : memref<8x128xf32, #tpu.memory_space<vmem>>, vector<1x128xf32>
    %404 = vector.broadcast %403 : vector<1x128xf32> to vector<8x128xf32>
    %405 = arith.mulf %401, %404 : vector<8x128xf32>
    %406 = arith.addf %379, %405 : vector<8x128xf32>
    %c6_i32_208 = arith.constant 6 : i32
    %c8_i32_209 = arith.constant 8 : i32
    %407 = arith.muli %c6_i32_208, %c8_i32_209 : i32
    %c0_i32_210 = arith.constant 0 : i32
    %408 = arith.addi %c0_i32_210, %407 : i32
    %409 = tpu.assume_multiple %408, 8 : i32
    %410 = arith.index_cast %409 : i32 to index
    %c0_211 = arith.constant 0 : index
    %411 = vector.load %arg9[%410, %c0_211] : memref<128x128xf32, #tpu.memory_space<vmem>>, vector<8x128xf32>
    %c0_212 = arith.constant 0 : index
    %c0_213 = arith.constant 0 : index
    %412 = vector.load %arg3[%c0_212, %c0_213] : memref<128x128xf32, #tpu.memory_space<vmem>>, vector<128x128xf32>
    %cst_214 = arith.constant dense<0.000000e+00> : vector<8x128xf32>
    %413 = tpu.matmul %401, %412, %cst_214 {dimension_numbers = #tpu.dot_dimension_numbers<[1], [0], [0], [1], [0, 0, 1, 1], [], []>} : vector<8x128xf32>, vector<128x128xf32>, vector<8x128xf32> -> vector<8x128xf32>
    %414 = arith.addf %411, %413 : vector<8x128xf32>
    %415 = arith.negf %414 : vector<8x128xf32>
    %416 = math.exp %415 : vector<8x128xf32>
    %cst_215 = arith.constant 1.000000e+00 : f32
    %417 = vector.broadcast %cst_215 : f32 to vector<8x128xf32>
    %418 = arith.addf %417, %416 : vector<8x128xf32>
    %419 = arith.divf %417, %418 : vector<8x128xf32>
    %420 = math.tanh %414 : vector<8x128xf32>
    %c96_i32_216 = arith.constant 96 : i32
    %421 = tpu.dynamic_rotate %419 by %c96_i32_216 dim 1 : vector<8x128xf32>, i32 -> vector<8x128xf32>
    %c64_i32_217 = arith.constant 64 : i32
    %422 = tpu.dynamic_rotate %420 by %c64_i32_217 dim 1 : vector<8x128xf32>, i32 -> vector<8x128xf32>
    %c32_i32_218 = arith.constant 32 : i32
    %423 = tpu.dynamic_rotate %419 by %c32_i32_218 dim 1 : vector<8x128xf32>, i32 -> vector<8x128xf32>
    %424 = arith.mulf %421, %399 : vector<8x128xf32>
    %425 = arith.mulf %419, %422 : vector<8x128xf32>
    %426 = arith.addf %424, %425 : vector<8x128xf32>
    %427 = math.tanh %426 : vector<8x128xf32>
    %428 = arith.mulf %423, %427 : vector<8x128xf32>
    %429 = arith.index_cast %c6_i32_208 : i32 to index
    %c0_219 = arith.constant 0 : index
    %430 = vector.load %arg6[%429, %c0_219] : memref<8x128xf32, #tpu.memory_space<vmem>>, vector<1x128xf32>
    %431 = vector.broadcast %430 : vector<1x128xf32> to vector<8x128xf32>
    %432 = arith.mulf %428, %431 : vector<8x128xf32>
    %433 = arith.addf %406, %432 : vector<8x128xf32>
    %c7_i32_220 = arith.constant 7 : i32
    %c8_i32_221 = arith.constant 8 : i32
    %434 = arith.muli %c7_i32_220, %c8_i32_221 : i32
    %c0_i32_222 = arith.constant 0 : i32
    %435 = arith.addi %c0_i32_222, %434 : i32
    %436 = tpu.assume_multiple %435, 8 : i32
    %437 = arith.index_cast %436 : i32 to index
    %c0_223 = arith.constant 0 : index
    %438 = vector.load %arg9[%437, %c0_223] : memref<128x128xf32, #tpu.memory_space<vmem>>, vector<8x128xf32>
    %c0_224 = arith.constant 0 : index
    %c0_225 = arith.constant 0 : index
    %439 = vector.load %arg3[%c0_224, %c0_225] : memref<128x128xf32, #tpu.memory_space<vmem>>, vector<128x128xf32>
    %cst_226 = arith.constant dense<0.000000e+00> : vector<8x128xf32>
    %440 = tpu.matmul %428, %439, %cst_226 {dimension_numbers = #tpu.dot_dimension_numbers<[1], [0], [0], [1], [0, 0, 1, 1], [], []>} : vector<8x128xf32>, vector<128x128xf32>, vector<8x128xf32> -> vector<8x128xf32>
    %441 = arith.addf %438, %440 : vector<8x128xf32>
    %442 = arith.negf %441 : vector<8x128xf32>
    %443 = math.exp %442 : vector<8x128xf32>
    %cst_227 = arith.constant 1.000000e+00 : f32
    %444 = vector.broadcast %cst_227 : f32 to vector<8x128xf32>
    %445 = arith.addf %444, %443 : vector<8x128xf32>
    %446 = arith.divf %444, %445 : vector<8x128xf32>
    %447 = math.tanh %441 : vector<8x128xf32>
    %c96_i32_228 = arith.constant 96 : i32
    %448 = tpu.dynamic_rotate %446 by %c96_i32_228 dim 1 : vector<8x128xf32>, i32 -> vector<8x128xf32>
    %c64_i32_229 = arith.constant 64 : i32
    %449 = tpu.dynamic_rotate %447 by %c64_i32_229 dim 1 : vector<8x128xf32>, i32 -> vector<8x128xf32>
    %c32_i32_230 = arith.constant 32 : i32
    %450 = tpu.dynamic_rotate %446 by %c32_i32_230 dim 1 : vector<8x128xf32>, i32 -> vector<8x128xf32>
    %451 = arith.mulf %448, %426 : vector<8x128xf32>
    %452 = arith.mulf %446, %449 : vector<8x128xf32>
    %453 = arith.addf %451, %452 : vector<8x128xf32>
    %454 = math.tanh %453 : vector<8x128xf32>
    %455 = arith.mulf %450, %454 : vector<8x128xf32>
    %456 = arith.index_cast %c7_i32_220 : i32 to index
    %c0_231 = arith.constant 0 : index
    %457 = vector.load %arg6[%456, %c0_231] : memref<8x128xf32, #tpu.memory_space<vmem>>, vector<1x128xf32>
    %458 = vector.broadcast %457 : vector<1x128xf32> to vector<8x128xf32>
    %459 = arith.mulf %455, %458 : vector<8x128xf32>
    %460 = arith.addf %433, %459 : vector<8x128xf32>
    %c8_i32_232 = arith.constant 8 : i32
    %cst_233 = arith.constant 1.000000e+00 : f32
    %461 = vector.broadcast %cst_233 : f32 to vector<1x128xf32>
    %cst_234 = arith.constant dense<0.000000e+00> : vector<1x8xf32>
    %462 = tpu.matmul %461, %460, %cst_234 {dimension_numbers = #tpu.dot_dimension_numbers<[1], [1], [0], [0], [0, 0, 1, 0], [], []>} : vector<1x128xf32>, vector<8x128xf32>, vector<1x8xf32> -> vector<1x8xf32>
    %c0_235 = arith.constant 0 : index
    %c0_236 = arith.constant 0 : index
    %463 = vector.load %arg7[%c0_235, %c0_236] : memref<1x1xf32, #tpu.memory_space<vmem>>, vector<1x1xf32>
    %464 = vector.broadcast %463 : vector<1x1xf32> to vector<1x8xf32>
    %465 = arith.addf %462, %464 : vector<1x8xf32>
    %c0_237 = arith.constant 0 : index
    %c0_238 = arith.constant 0 : index
    %466 = vector.load %arg8[%c0_237, %c0_238] : memref<1x8xf32, #tpu.memory_space<vmem>>, vector<1x8xf32>
    tpu.vector_store %arg8[%c0_237, %c0_238], %465 {strides = array<i32>} : memref<1x8xf32, #tpu.memory_space<vmem>>, vector<1x8xf32>,
    return
  }
  func.func @transform_0(%arg0: i32) -> (i32, i32, i32) {
    %c0_i32 = arith.constant 0 : i32
    %c0_i32_0 = arith.constant 0 : i32
    %c0_i32_1 = arith.constant 0 : i32
    return %c0_i32, %arg0, %c0_i32_0 : i32, i32, i32
  }
  func.func @transform_1(%arg0: i32) -> (i32, i32) {
    %c0_i32 = arith.constant 0 : i32
    %c0_i32_0 = arith.constant 0 : i32
    %c0_i32_1 = arith.constant 0 : i32
    return %c0_i32, %c0_i32_0 : i32, i32
  }
  func.func @transform_2(%arg0: i32) -> (i32, i32) {
    %c0_i32 = arith.constant 0 : i32
    %c0_i32_0 = arith.constant 0 : i32
    %c0_i32_1 = arith.constant 0 : i32
    return %c0_i32, %c0_i32_0 : i32, i32
  }
  func.func @transform_3(%arg0: i32) -> (i32, i32) {
    %c0_i32 = arith.constant 0 : i32
    %c0_i32_0 = arith.constant 0 : i32
    %c0_i32_1 = arith.constant 0 : i32
    return %c0_i32, %c0_i32_0 : i32, i32
  }
  func.func @transform_4(%arg0: i32) -> (i32, i32) {
    %c0_i32 = arith.constant 0 : i32
    %c0_i32_0 = arith.constant 0 : i32
    %c0_i32_1 = arith.constant 0 : i32
    return %c0_i32, %c0_i32_0 : i32, i32
  }
  func.func @transform_5(%arg0: i32) -> (i32, i32) {
    %c0_i32 = arith.constant 0 : i32
    %c0_i32_0 = arith.constant 0 : i32
    %c0_i32_1 = arith.constant 0 : i32
    return %c0_i32, %c0_i32_0 : i32, i32
  }
  func.func @transform_6(%arg0: i32) -> (i32, i32) {
    %c0_i32 = arith.constant 0 : i32
    %c0_i32_0 = arith.constant 0 : i32
    %c0_i32_1 = arith.constant 0 : i32
    return %c0_i32, %c0_i32_0 : i32, i32
  }
  func.func @transform_7(%arg0: i32) -> (i32, i32) {
    %c0_i32 = arith.constant 0 : i32
    %c0_i32_0 = arith.constant 0 : i32
    return %c0_i32, %arg0 : i32, i32
  }
}

</mosaic_0001>

<llo_original>
// kernel: tpu_custom_call.1
$region0: #{tpu_custom_call.1}
  #allocation0 [shape = 'u32[]', space=smem, size = 0x4, offset = 0x4, fixed_abs, tag = 'smem constant byte address 0x4 - core index']
  #allocation1 [shape = 'u32[144,128]{1,0:T(1,128)}', space=vmem, size = 0x12000, scoped, tag = 'internal scratch']
  #allocation2 [shape = 'f32[128,128]{1,0:T(8,128)}', space=vmem, size = 0x10000, scoped, tag = 'scratch operand']
  #allocation3 [shape = 'f32[1,1]{1,0:T(1,128)S(1)}', space=vmem, size = 0x200, scoped, tag = 'scoped memory for tpu_custom_call.1']
  %s0 = inlined_call_operand.hbm [shape: f32[8,8,128], index: 0, kind: input, shape index: {}]
  %s1 = inlined_call_operand.hbm [shape: f32[128,128], index: 1, kind: input, shape index: {}]
  %s2 = inlined_call_operand.hbm [shape: f32[128,128], index: 2, kind: input, shape index: {}]
  %s3 = inlined_call_operand.hbm [shape: f32[128,128], index: 3, kind: input, shape index: {}]
  %s4 = inlined_call_operand.vmem [shape: f32[1,128], index: 4, kind: input, shape index: {}]
  %s5 = inlined_call_operand.vmem [shape: f32[8,128], index: 5, kind: input, shape index: {}]
  %s6 = inlined_call_operand.<no memory space> [shape: f32[1,1], index: 6, kind: input, shape index: {}]
  %s7 = inlined_call_operand.hbm [shape: f32[1,8], index: 7, kind: output, shape index: {}]
  %s8 = sld [smem:[#allocation0]]
  $region54: #{tpu_custom_call.1} parent=0
    _
  %s10 = ssub.s32 1, %s8
  %s11 = scalar_select 0, %s10, %s8
  %v12 = vstv %s6
  %13 = vst [vmem:[#allocation3] sm:$0x1] %v12
  $region1: #{tpu_custom_call.1} parent=0
    #allocation4 [shape = 'u8[32768]{0}', space=vmem, size = 0x8000, scoped, tag = 'input window, operand 0, single buffered']
    #allocation5 [shape = 's32[1]{0}', space=sflag, size = 0x4, scoped, tag = 'scoped memory for tpu_custom_call.1']
    #allocation6 [shape = 's32[1]{0}', space=sflag, size = 0x4, scoped, tag = 'scoped memory for tpu_custom_call.1']
    #allocation7 [shape = 'u8[65536]{0}', space=vmem, size = 0x10000, scoped, tag = 'input window, operand 1, single buffered']
    #allocation8 [shape = 's32[1]{0}', space=sflag, size = 0x4, scoped, tag = 'scoped memory for tpu_custom_call.1']
    #allocation9 [shape = 'u8[65536]{0}', space=vmem, size = 0x10000, scoped, tag = 'input window, operand 2, single buffered']
    #allocation10 [shape = 'u8[65536]{0}', space=vmem, size = 0x10000, scoped, tag = 'input window, operand 3, single buffered']
    #allocation11 [shape = 's32[1]{0}', space=sflag, size = 0x4, scoped, tag = 'scoped memory for tpu_custom_call.1']
    #allocation12 [shape = 'u8[512]{0}', space=vmem, size = 0x400, scoped, tag = 'output window, operand 0, single buffered']
    %14 = vsyncpa [#allocation5], 0
    %15 = vsyncpa [#allocation8], 0
    %16 = vsyncpa [#allocation11], 0
    %17 = vsyncpa [#allocation6], 0
    // Predicated region
    $region2: #{tpu_custom_call.1} parent=1 // pred_check
      _
    $region3: #{tpu_custom_call.1} parent=1 // pred_check_branch
      %19 = sbr.rel (0) target = $region5
    $region4: #{tpu_custom_call.1} parent=1 // pred_region
      %s21 = ssub.s32 1024, 1024
      %22 = vsyncadd [#allocation5], %s21
      %s23 = sshll.u32 [#allocation4], 4
      %s24 = int_to_ptr.vmem [resolvable:$true] %s23
      %29 = dma.hbm_to_vmem [thread:$0]  %s0, 1024, %s24, [#allocation5], 128, 128, 8
    $region5: #{tpu_custom_call.1} parent=1 // pred_fallthru
      _
    // Predicated region
    $region6: #{tpu_custom_call.1} parent=1 // pred_check
      _
    $region7: #{tpu_custom_call.1} parent=1 // pred_check_branch
      %31 = sbr.rel (0) target = $region9
    $region8: #{tpu_custom_call.1} parent=1 // pred_region
      %s33 = ssub.s32 2048, 2048
      %34 = vsyncadd [#allocation8], %s33
      %s35 = sshll.u32 [#allocation7], 4
      %s36 = int_to_ptr.vmem [resolvable:$true] %s35
      %41 = dma.hbm_to_vmem [thread:$0]  %s1, 2048, %s36, [#allocation8], 128, 128, 8
    $region9: #{tpu_custom_call.1} parent=1 // pred_fallthru
      _
    // Predicated region
    $region10: #{tpu_custom_call.1} parent=1 // pred_check
      _
    $region11: #{tpu_custom_call.1} parent=1 // pred_check_branch
      %43 = sbr.rel (0) target = $region13
    $region12: #{tpu_custom_call.1} parent=1 // pred_region
      %s45 = ssub.s32 2048, 2048
      %46 = vsyncadd [#allocation8], %s45
      %s47 = sshll.u32 [#allocation9], 4
      %s48 = int_to_ptr.vmem [resolvable:$true] %s47
      %53 = dma.hbm_to_vmem [thread:$0]  %s2, 2048, %s48, [#allocation8], 128, 128, 8
    $region13: #{tpu_custom_call.1} parent=1 // pred_fallthru
      _
    // Predicated region
    $region14: #{tpu_custom_call.1} parent=1 // pred_check
      _
    $region15: #{tpu_custom_call.1} parent=1 // pred_check_branch
      %55 = sbr.rel (0) target = $region17
    $region16: #{tpu_custom_call.1} parent=1 // pred_region
      %s57 = ssub.s32 2048, 2048
      %58 = vsyncadd [#allocation11], %s57
      %s59 = sshll.u32 [#allocation10], 4
      %s60 = int_to_ptr.vmem [resolvable:$true] %s59
      %65 = dma.hbm_to_vmem [thread:$0]  %s3, 2048, %s60, [#allocation11], 128, 128, 8
    $region17: #{tpu_custom_call.1} parent=1 // pred_fallthru
      _
    // Predicated region
    $region18: #{tpu_custom_call.1} parent=1 // pred_check
      _
    $region19: #{tpu_custom_call.1} parent=1 // pred_check_branch
      %67 = sbr.rel (0) target = $region21
    $region20: #{tpu_custom_call.1} parent=1 // pred_region
      _
    $region21: #{tpu_custom_call.1} parent=1 // pred_fallthru
      _
    // Predicated region
    $region22: #{tpu_custom_call.1} parent=1 // pred_check
      _
    $region23: #{tpu_custom_call.1} parent=1 // pred_check_branch
      %69 = sbr.rel (0) target = $region25
    $region24: #{tpu_custom_call.1} parent=1 // pred_region
      _
    $region25: #{tpu_custom_call.1} parent=1 // pred_fallthru
      _
    // Predicated region
    $region26: #{tpu_custom_call.1} parent=1 // pred_check
      _
    $region27: #{tpu_custom_call.1} parent=1 // pred_check_branch
      %71 = sbr.rel (0) target = $region29
    $region28: #{tpu_custom_call.1} parent=1 // pred_region
      _
    $region29: #{tpu_custom_call.1} parent=1 // pred_fallthru
      _
    // Predicated region
    $region30: #{tpu_custom_call.1} parent=1 // pred_check
      _
    $region31: #{tpu_custom_call.1} parent=1 // pred_check_branch
      %73 = sbr.rel (0) target = $region33
    $region32: #{tpu_custom_call.1} parent=1 // pred_region
      %74 = dma.done [#allocation5], 1024
    $region33: #{tpu_custom_call.1} parent=1 // pred_fallthru
      _
    // Predicated region
    $region34: #{tpu_custom_call.1} parent=1 // pred_check
      _
    $region35: #{tpu_custom_call.1} parent=1 // pred_check_branch
      %76 = sbr.rel (0) target = $region37
    $region36: #{tpu_custom_call.1} parent=1 // pred_region
      %77 = dma.done [#allocation8], 2048
    $region37: #{tpu_custom_call.1} parent=1 // pred_fallthru
      _
    // Predicated region
    $region38: #{tpu_custom_call.1} parent=1 // pred_check
      _
    $region39: #{tpu_custom_call.1} parent=1 // pred_check_branch
      %79 = sbr.rel (0) target = $region41
    $region40: #{tpu_custom_call.1} parent=1 // pred_region
      %80 = dma.done [#allocation8], 2048
    $region41: #{tpu_custom_call.1} parent=1 // pred_fallthru
      _
    // Predicated region
    $region42: #{tpu_custom_call.1} parent=1 // pred_check
      _
    $region43: #{tpu_custom_call.1} parent=1 // pred_check_branch
      %82 = sbr.rel (0) target = $region45
    $region44: #{tpu_custom_call.1} parent=1 // pred_region
      %83 = dma.done [#allocation11], 2048
    $region45: #{tpu_custom_call.1} parent=1 // pred_fallthru
      _
    %v84 = vld [vmem:[#allocation4] sm:$0xff]
    %v85 = vld [vmem:[#allocation7] sm:$0xff]
    %v86 = vld [vmem:[#allocation7 + $0x8] sm:$0xff]
    %v87 = vld [vmem:[#allocation7 + $0x10] sm:$0xff]
    %v88 = vld [vmem:[#allocation7 + $0x18] sm:$0xff]
    %v89 = vld [vmem:[#allocation7 + $0x20] sm:$0xff]
    %v90 = vld [vmem:[#allocation7 + $0x28] sm:$0xff]
    %v91 = vld [vmem:[#allocation7 + $0x30] sm:$0xff]
    %v92 = vld [vmem:[#allocation7 + $0x38] sm:$0xff]
    %v93 = vld [vmem:[#allocation7 + $0x40] sm:$0xff]
    %v94 = vld [vmem:[#allocation7 + $0x48] sm:$0xff]
    %v95 = vld [vmem:[#allocation7 + $0x50] sm:$0xff]
    %v96 = vld [vmem:[#allocation7 + $0x58] sm:$0xff]
    %v97 = vld [vmem:[#allocation7 + $0x60] sm:$0xff]
    %v98 = vld [vmem:[#allocation7 + $0x68] sm:$0xff]
    %v99 = vld [vmem:[#allocation7 + $0x70] sm:$0xff]
    %v100 = vld [vmem:[#allocation7 + $0x78] sm:$0xff]
    %101 = vmatprep.subr.mxu0 0.0
    %102 = vmatpush1.msra.mxu0 %v100
    %103 = vmatprep.subr.mxu0 0.0
    %104 = vmatpush1.msra.mxu0 %v99
    %105 = vmatprep.subr.mxu0 0.0
    %106 = vmatpush1.msra.mxu0 %v98
    %107 = vmatprep.subr.mxu0 0.0
    %108 = vmatpush1.msra.mxu0 %v97
    %109 = vmatprep.subr.mxu0 0.0
    %110 = vmatpush1.msra.mxu0 %v96
    %111 = vmatprep.subr.mxu0 0.0
    %112 = vmatpush1.msra.mxu0 %v95
    %113 = vmatprep.subr.mxu0 0.0
    %114 = vmatpush1.msra.mxu0 %v94
    %115 = vmatprep.subr.mxu0 0.0
    %116 = vmatpush1.msra.mxu0 %v93
    %117 = vmatprep.subr.mxu0 0.0
    %118 = vmatpush1.msra.mxu0 %v92
    %119 = vmatprep.subr.mxu0 0.0
    %120 = vmatpush1.msra.mxu0 %v91
    %121 = vmatprep.subr.mxu0 0.0
    %122 = vmatpush1.msra.mxu0 %v90
    %123 = vmatprep.subr.mxu0 0.0
    %124 = vmatpush1.msra.mxu0 %v89
    %125 = vmatprep.subr.mxu0 0.0
    %126 = vmatpush1.msra.mxu0 %v88
    %127 = vmatprep.subr.mxu0 0.0
    %128 = vmatpush1.msra.mxu0 %v87
    %129 = vmatprep.subr.mxu0 0.0
    %130 = vmatpush1.msra.mxu0 %v86
    %131 = vmatprep.subr.mxu0 0.0
    %132 = vmatpush1.msra.mxu0 %v85
    %133 = vmatprep.subr.mxu0 0.0
    %134 = vmatpush2.msra.mxu0 0.0
    %135 = vmatprep.subr.mxu0 0.0
    %136 = vmatpush2.msra.mxu0 0.0
    %137 = vmatprep.subr.mxu0 0.0
    %138 = vmatpush2.msra.mxu0 0.0
    %139 = vmatprep.subr.mxu0 0.0
    %140 = vmatpush2.msra.mxu0 0.0
    %141 = vmatprep.subr.mxu0 0.0
    %142 = vmatpush2.msra.mxu0 0.0
    %143 = vmatprep.subr.mxu0 0.0
    %144 = vmatpush2.msra.mxu0 0.0
    %145 = vmatprep.subr.mxu0 0.0
    %146 = vmatpush2.msra.mxu0 0.0
    %147 = vmatprep.subr.mxu0 0.0
    %148 = vmatpush2.msra.mxu0 0.0
    %149 = vmatprep.subr.mxu0 0.0
    %150 = vmatpush2.msra.mxu0 0.0
    %151 = vmatprep.subr.mxu0 0.0
    %152 = vmatpush2.msra.mxu0 0.0
    %153 = vmatprep.subr.mxu0 0.0
    %154 = vmatpush2.msra.mxu0 0.0
    %155 = vmatprep.subr.mxu0 0.0
    %156 = vmatpush2.msra.mxu0 0.0
    %157 = vmatprep.subr.mxu0 0.0
    %158 = vmatpush2.msra.mxu0 0.0
    %159 = vmatprep.subr.mxu0 0.0
    %160 = vmatpush2.msra.mxu0 0.0
    %161 = vmatprep.subr.mxu0 0.0
    %162 = vmatpush2.msra.mxu0 0.0
    %163 = vmatprep.subr.mxu0 0.0
    %164 = vmatpush2.msra.mxu0 0.0
    %165 = vmatprep.mubr.f32.mxu0 0.0
    %166 = vmatmul.mubr.f32.gmra.mxu0 0.0
    %v167 = vpop.f32.mrf.mxu0
    %v168 = vadd.f32 0.0, %v167
    %v169 = vpop.f32.mrf.mxu0
    %170 = vdwg.mxu0
    %v171 = vadd.f32 %v84, %v168
    %v172 = vxor.u32 %v171, 2147483648
    %v173 = vmul.f32 %v172, 1.442695
    %v174 = vpow.pop %v173
    %v175 = vadd.f32 %v174, 1.0
    %v176 = vrcp.pop %v175
    %v177 = vmul.f32 1.0, %v176
    %v178 = vtanh.pop %v171
    %179 = vrot.lane.b32.xlu0 %v177, 96
    %v180 = vpop.permute.xlu0 %179
    %181 = vrot.lane.b32.xlu0 %v178, 64
    %v182 = vpop.permute.xlu0 %181
    %183 = vrot.lane.b32.xlu0 %v177, 32
    %v184 = vpop.permute.xlu0 %183
    %v185 = vmul.f32 %v180, 0.0
    %v186 = vmul.f32 %v177, %v182
    %v187 = vadd.f32 %v185, %v186
    %v188 = vtanh.pop %v187
    %v189 = vmul.f32 %v184, %v188
    %v190 = vld [vmem:[#allocation10] sm:$0xff]
    %v191 = vld [vmem:[#allocation10 + $0x8] sm:$0xff]
    %v192 = vld [vmem:[#allocation10 + $0x10] sm:$0xff]
    %v193 = vld [vmem:[#allocation10 + $0x18] sm:$0xff]
    %v194 = vld [vmem:[#allocation10 + $0x20] sm:$0xff]
    %v195 = vld [vmem:[#allocation10 + $0x28] sm:$0xff]
    %v196 = vld [vmem:[#allocation10 + $0x30] sm:$0xff]
    %v197 = vld [vmem:[#allocation10 + $0x38] sm:$0xff]
    %v198 = vld [vmem:[#allocation10 + $0x40] sm:$0xff]
    %v199 = vld [vmem:[#allocation10 + $0x48] sm:$0xff]
    %v200 = vld [vmem:[#allocation10 + $0x50] sm:$0xff]
    %v201 = vld [vmem:[#allocation10 + $0x58] sm:$0xff]
    %v202 = vld [vmem:[#allocation10 + $0x60] sm:$0xff]
    %v203 = vld [vmem:[#allocation10 + $0x68] sm:$0xff]
    %v204 = vld [vmem:[#allocation10 + $0x70] sm:$0xff]
    %v205 = vld [vmem:[#allocation10 + $0x78] sm:$0xff]
    %v206 = vld [vmem:[%s4] sm:$0x1]
    %v208 = vlaneseq
    %v209 = vshrl.u32 %v208, 7
    %v210 = vsub.s32 0, %v209
    %v211 = vrot.slane %v206, %v210
    %213 = vmatprep.subr.mxu0 0.0
    %214 = vmatpush1.msra.mxu0 %v205
    %215 = vmatprep.subr.mxu0 0.0
    %216 = vmatpush1.msra.mxu0 %v204
    %217 = vmatprep.subr.mxu0 0.0
    %218 = vmatpush1.msra.mxu0 %v203
    %219 = vmatprep.subr.mxu0 0.0
    %220 = vmatpush1.msra.mxu0 %v202
    %221 = vmatprep.subr.mxu0 0.0
    %222 = vmatpush1.msra.mxu0 %v201
    %223 = vmatprep.subr.mxu0 0.0
    %224 = vmatpush1.msra.mxu0 %v200
    %225 = vmatprep.subr.mxu0 0.0
    %226 = vmatpush1.msra.mxu0 %v199
    %227 = vmatprep.subr.mxu0 0.0
    %228 = vmatpush1.msra.mxu0 %v198
    %229 = vmatprep.subr.mxu0 0.0
    %230 = vmatpush1.msra.mxu0 %v197
    %231 = vmatprep.subr.mxu0 0.0
    %232 = vmatpush1.msra.mxu0 %v196
    %233 = vmatprep.subr.mxu0 0.0
    %234 = vmatpush1.msra.mxu0 %v195
    %235 = vmatprep.subr.mxu0 0.0
    %236 = vmatpush1.msra.mxu0 %v194
    %237 = vmatprep.subr.mxu0 0.0
    %238 = vmatpush1.msra.mxu0 %v193
    %239 = vmatprep.subr.mxu0 0.0
    %240 = vmatpush1.msra.mxu0 %v192
    %241 = vmatprep.subr.mxu0 0.0
    %242 = vmatpush1.msra.mxu0 %v191
    %243 = vmatprep.subr.mxu0 0.0
    %244 = vmatpush1.msra.mxu0 %v190
    %245 = vmatprep.subr.mxu0 0.0
    %246 = vmatpush2.msra.mxu0 0.0
    %247 = vmatprep.subr.mxu0 0.0
    %248 = vmatpush2.msra.mxu0 0.0
    %249 = vmatprep.subr.mxu0 0.0
    %250 = vmatpush2.msra.mxu0 0.0
    %251 = vmatprep.subr.mxu0 0.0
    %252 = vmatpush2.msra.mxu0 0.0
    %253 = vmatprep.subr.mxu0 0.0
    %254 = vmatpush2.msra.mxu0 0.0
    %255 = vmatprep.subr.mxu0 0.0
    %256 = vmatpush2.msra.mxu0 0.0
    %257 = vmatprep.subr.mxu0 0.0
    %258 = vmatpush2.msra.mxu0 0.0
    %259 = vmatprep.subr.mxu0 0.0
    %260 = vmatpush2.msra.mxu0 0.0
    %261 = vmatprep.subr.mxu0 0.0
    %262 = vmatpush2.msra.mxu0 0.0
    %263 = vmatprep.subr.mxu0 0.0
    %264 = vmatpush2.msra.mxu0 0.0
    %265 = vmatprep.subr.mxu0 0.0
    %266 = vmatpush2.msra.mxu0 0.0
    %267 = vmatprep.subr.mxu0 0.0
    %268 = vmatpush2.msra.mxu0 0.0
    %269 = vmatprep.subr.mxu0 0.0
    %270 = vmatpush2.msra.mxu0 0.0
    %271 = vmatprep.subr.mxu0 0.0
    %272 = vmatpush2.msra.mxu0 0.0
    %273 = vmatprep.subr.mxu0 0.0
    %274 = vmatpush2.msra.mxu0 0.0
    %275 = vmatprep.subr.mxu0 0.0
    %276 = vmatpush2.msra.mxu0 0.0
    %277 = vmatprep.mubr.f32.mxu0 0.0
    %278 = vmatmul.mubr.f32.gmra.mxu0 %v189
    %v279 = vpop.f32.mrf.mxu0
    %v280 = vadd.f32 %v211, %v279
    %v281 = vpop.f32.mrf.mxu0
    %282 = vdwg.mxu0
    %283 = vst [vmem:[#allocation2] sm:$0xff] %v280
    %s284 = scalar_lea.vmem [#allocation4], 8
    %v285 = vld [vmem:[%s284] sm:$0xff]
    %v286 = vld [vmem:[#allocation7] sm:$0xff]
    %v287 = vld [vmem:[#allocation7 + $0x8] sm:$0xff]
    %v288 = vld [vmem:[#allocation7 + $0x10] sm:$0xff]
    %v289 = vld [vmem:[#allocation7 + $0x18] sm:$0xff]
    %v290 = vld [vmem:[#allocation7 + $0x20] sm:$0xff]
    %v291 = vld [vmem:[#allocation7 + $0x28] sm:$0xff]
    %v292 = vld [vmem:[#allocation7 + $0x30] sm:$0xff]
    %v293 = vld [vmem:[#allocation7 + $0x38] sm:$0xff]
    %v294 = vld [vmem:[#allocation7 + $0x40] sm:$0xff]
    %v295 = vld [vmem:[#allocation7 + $0x48] sm:$0xff]
    %v296 = vld [vmem:[#allocation7 + $0x50] sm:$0xff]
    %v297 = vld [vmem:[#allocation7 + $0x58] sm:$0xff]
    %v298 = vld [vmem:[#allocation7 + $0x60] sm:$0xff]
    %v299 = vld [vmem:[#allocation7 + $0x68] sm:$0xff]
    %v300 = vld [vmem:[#allocation7 + $0x70] sm:$0xff]
    %v301 = vld [vmem:[#allocation7 + $0x78] sm:$0xff]
    %302 = vmatprep.subr.mxu0 0.0
    %303 = vmatpush1.msra.mxu0 %v301
    %304 = vmatprep.subr.mxu0 0.0
    %305 = vmatpush1.msra.mxu0 %v300
    %306 = vmatprep.subr.mxu0 0.0
    %307 = vmatpush1.msra.mxu0 %v299
    %308 = vmatprep.subr.mxu0 0.0
    %309 = vmatpush1.msra.mxu0 %v298
    %310 = vmatprep.subr.mxu0 0.0
    %311 = vmatpush1.msra.mxu0 %v297
    %312 = vmatprep.subr.mxu0 0.0
    %313 = vmatpush1.msra.mxu0 %v296
    %314 = vmatprep.subr.mxu0 0.0
    %315 = vmatpush1.msra.mxu0 %v295
    %316 = vmatprep.subr.mxu0 0.0
    %317 = vmatpush1.msra.mxu0 %v294
    %318 = vmatprep.subr.mxu0 0.0
    %319 = vmatpush1.msra.mxu0 %v293
    %320 = vmatprep.subr.mxu0 0.0
    %321 = vmatpush1.msra.mxu0 %v292
    %322 = vmatprep.subr.mxu0 0.0
    %323 = vmatpush1.msra.mxu0 %v291
    %324 = vmatprep.subr.mxu0 0.0
    %325 = vmatpush1.msra.mxu0 %v290
    %326 = vmatprep.subr.mxu0 0.0
    %327 = vmatpush1.msra.mxu0 %v289
    %328 = vmatprep.subr.mxu0 0.0
    %329 = vmatpush1.msra.mxu0 %v288
    %330 = vmatprep.subr.mxu0 0.0
    %331 = vmatpush1.msra.mxu0 %v287
    %332 = vmatprep.subr.mxu0 0.0
    %333 = vmatpush1.msra.mxu0 %v286
    %334 = vmatprep.subr.mxu0 0.0
    %335 = vmatpush2.msra.mxu0 0.0
    %336 = vmatprep.subr.mxu0 0.0
    %337 = vmatpush2.msra.mxu0 0.0
    %338 = vmatprep.subr.mxu0 0.0
    %339 = vmatpush2.msra.mxu0 0.0
    %340 = vmatprep.subr.mxu0 0.0
    %341 = vmatpush2.msra.mxu0 0.0
    %342 = vmatprep.subr.mxu0 0.0
    %343 = vmatpush2.msra.mxu0 0.0
    %344 = vmatprep.subr.mxu0 0.0
    %345 = vmatpush2.msra.mxu0 0.0
    %346 = vmatprep.subr.mxu0 0.0
    %347 = vmatpush2.msra.mxu0 0.0
    %348 = vmatprep.subr.mxu0 0.0
    %349 = vmatpush2.msra.mxu0 0.0
    %350 = vmatprep.subr.mxu0 0.0
    %351 = vmatpush2.msra.mxu0 0.0
    %352 = vmatprep.subr.mxu0 0.0
    %353 = vmatpush2.msra.mxu0 0.0
    %354 = vmatprep.subr.mxu0 0.0
    %355 = vmatpush2.msra.mxu0 0.0
    %356 = vmatprep.subr.mxu0 0.0
    %357 = vmatpush2.msra.mxu0 0.0
    %358 = vmatprep.subr.mxu0 0.0
    %359 = vmatpush2.msra.mxu0 0.0
    %360 = vmatprep.subr.mxu0 0.0
    %361 = vmatpush2.msra.mxu0 0.0
    %362 = vmatprep.subr.mxu0 0.0
    %363 = vmatpush2.msra.mxu0 0.0
    %364 = vmatprep.subr.mxu0 0.0
    %365 = vmatpush2.msra.mxu0 0.0
    %366 = vmatprep.mubr.f32.mxu0 0.0
    %367 = vmatmul.mubr.f32.gmra.mxu0 %v189
    %v368 = vpop.f32.mrf.mxu0
    %v369 = vadd.f32 0.0, %v368
    %v370 = vpop.f32.mrf.mxu0
    %371 = vdwg.mxu0
    %v372 = vadd.f32 %v285, %v369
    %v373 = vxor.u32 %v372, 2147483648
    %v374 = vmul.f32 %v373, 1.442695
    %v375 = vpow.pop %v374
    %v376 = vadd.f32 %v375, 1.0
    %v377 = vrcp.pop %v376
    %v378 = vmul.f32 1.0, %v377
    %v379 = vtanh.pop %v372
    %380 = vrot.lane.b32.xlu0 %v378, 96
    %v381 = vpop.permute.xlu0 %380
    %382 = vrot.lane.b32.xlu0 %v379, 64
    %v383 = vpop.permute.xlu0 %382
    %384 = vrot.lane.b32.xlu0 %v378, 32
    %v385 = vpop.permute.xlu0 %384
    %v386 = vmul.f32 %v381, %v187
    %v387 = vmul.f32 %v378, %v383
    %v388 = vadd.f32 %v386, %v387
    %v389 = vtanh.pop %v388
    %v390 = vmul.f32 %v385, %v389
    %v391 = vld [vmem:[#allocation10] sm:$0xff]
    %v392 = vld [vmem:[#allocation10 + $0x8] sm:$0xff]
    %v393 = vld [vmem:[#allocation10 + $0x10] sm:$0xff]
    %v394 = vld [vmem:[#allocation10 + $0x18] sm:$0xff]
    %v395 = vld [vmem:[#allocation10 + $0x20] sm:$0xff]
    %v396 = vld [vmem:[#allocation10 + $0x28] sm:$0xff]
    %v397 = vld [vmem:[#allocation10 + $0x30] sm:$0xff]
    %v398 = vld [vmem:[#allocation10 + $0x38] sm:$0xff]
    %v399 = vld [vmem:[#allocation10 + $0x40] sm:$0xff]
    %v400 = vld [vmem:[#allocation10 + $0x48] sm:$0xff]
    %v401 = vld [vmem:[#allocation10 + $0x50] sm:$0xff]
    %v402 = vld [vmem:[#allocation10 + $0x58] sm:$0xff]
    %v403 = vld [vmem:[#allocation10 + $0x60] sm:$0xff]
    %v404 = vld [vmem:[#allocation10 + $0x68] sm:$0xff]
    %v405 = vld [vmem:[#allocation10 + $0x70] sm:$0xff]
    %v406 = vld [vmem:[#allocation10 + $0x78] sm:$0xff]
    %v407 = vld [vmem:[%s4] sm:$0x1]
    %v409 = vlaneseq
    %v410 = vshrl.u32 %v409, 7
    %v411 = vsub.s32 0, %v410
    %v412 = vrot.slane %v407, %v411
    %414 = vmatprep.subr.mxu0 0.0
    %415 = vmatpush1.msra.mxu0 %v406
    %416 = vmatprep.subr.mxu0 0.0
    %417 = vmatpush1.msra.mxu0 %v405
    %418 = vmatprep.subr.mxu0 0.0
    %419 = vmatpush1.msra.mxu0 %v404
    %420 = vmatprep.subr.mxu0 0.0
    %421 = vmatpush1.msra.mxu0 %v403
    %422 = vmatprep.subr.mxu0 0.0
    %423 = vmatpush1.msra.mxu0 %v402
    %424 = vmatprep.subr.mxu0 0.0
    %425 = vmatpush1.msra.mxu0 %v401
    %426 = vmatprep.subr.mxu0 0.0
    %427 = vmatpush1.msra.mxu0 %v400
    %428 = vmatprep.subr.mxu0 0.0
    %429 = vmatpush1.msra.mxu0 %v399
    %430 = vmatprep.subr.mxu0 0.0
    %431 = vmatpush1.msra.mxu0 %v398
    %432 = vmatprep.subr.mxu0 0.0
    %433 = vmatpush1.msra.mxu0 %v397
    %434 = vmatprep.subr.mxu0 0.0
    %435 = vmatpush1.msra.mxu0 %v396
    %436 = vmatprep.subr.mxu0 0.0
    %437 = vmatpush1.msra.mxu0 %v395
    %438 = vmatprep.subr.mxu0 0.0
    %439 = vmatpush1.msra.mxu0 %v394
    %440 = vmatprep.subr.mxu0 0.0
    %441 = vmatpush1.msra.mxu0 %v393
    %442 = vmatprep.subr.mxu0 0.0
    %443 = vmatpush1.msra.mxu0 %v392
    %444 = vmatprep.subr.mxu0 0.0
    %445 = vmatpush1.msra.mxu0 %v391
    %446 = vmatprep.subr.mxu0 0.0
    %447 = vmatpush2.msra.mxu0 0.0
    %448 = vmatprep.subr.mxu0 0.0
    %449 = vmatpush2.msra.mxu0 0.0
    %450 = vmatprep.subr.mxu0 0.0
    %451 = vmatpush2.msra.mxu0 0.0
    %452 = vmatprep.subr.mxu0 0.0
    %453 = vmatpush2.msra.mxu0 0.0
    %454 = vmatprep.subr.mxu0 0.0
    %455 = vmatpush2.msra.mxu0 0.0
    %456 = vmatprep.subr.mxu0 0.0
    %457 = vmatpush2.msra.mxu0 0.0
    %458 = vmatprep.subr.mxu0 0.0
    %459 = vmatpush2.msra.mxu0 0.0
    %460 = vmatprep.subr.mxu0 0.0
    %461 = vmatpush2.msra.mxu0 0.0
    %462 = vmatprep.subr.mxu0 0.0
    %463 = vmatpush2.msra.mxu0 0.0
    %464 = vmatprep.subr.mxu0 0.0
    %465 = vmatpush2.msra.mxu0 0.0
    %466 = vmatprep.subr.mxu0 0.0
    %467 = vmatpush2.msra.mxu0 0.0
    %468 = vmatprep.subr.mxu0 0.0
    %469 = vmatpush2.msra.mxu0 0.0
    %470 = vmatprep.subr.mxu0 0.0
    %471 = vmatpush2.msra.mxu0 0.0
    %472 = vmatprep.subr.mxu0 0.0
    %473 = vmatpush2.msra.mxu0 0.0
    %474 = vmatprep.subr.mxu0 0.0
    %475 = vmatpush2.msra.mxu0 0.0
    %476 = vmatprep.subr.mxu0 0.0
    %477 = vmatpush2.msra.mxu0 0.0
    %478 = vmatprep.mubr.f32.mxu0 0.0
    %479 = vmatmul.mubr.f32.gmra.mxu0 %v390
    %v480 = vpop.f32.mrf.mxu0
    %v481 = vadd.f32 %v412, %v480
    %v482 = vpop.f32.mrf.mxu0
    %483 = vdwg.mxu0
    %s484 = scalar_lea.vmem [#allocation2], 8
    %485 = vst [vmem:[%s484] sm:$0xff] %v481
    %s486 = scalar_lea.vmem [#allocation4], 16
    %v487 = vld [vmem:[%s486] sm:$0xff]
    %v488 = vld [vmem:[#allocation7] sm:$0xff]
    %v489 = vld [vmem:[#allocation7 + $0x8] sm:$0xff]
    %v490 = vld [vmem:[#allocation7 + $0x10] sm:$0xff]
    %v491 = vld [vmem:[#allocation7 + $0x18] sm:$0xff]
    %v492 = vld [vmem:[#allocation7 + $0x20] sm:$0xff]
    %v493 = vld [vmem:[#allocation7 + $0x28] sm:$0xff]
    %v494 = vld [vmem:[#allocation7 + $0x30] sm:$0xff]
    %v495 = vld [vmem:[#allocation7 + $0x38] sm:$0xff]
    %v496 = vld [vmem:[#allocation7 + $0x40] sm:$0xff]
    %v497 = vld [vmem:[#allocation7 + $0x48] sm:$0xff]
    %v498 = vld [vmem:[#allocation7 + $0x50] sm:$0xff]
    %v499 = vld [vmem:[#allocation7 + $0x58] sm:$0xff]
    %v500 = vld [vmem:[#allocation7 + $0x60] sm:$0xff]
    %v501 = vld [vmem:[#allocation7 + $0x68] sm:$0xff]
    %v502 = vld [vmem:[#allocation7 + $0x70] sm:$0xff]
    %v503 = vld [vmem:[#allocation7 + $0x78] sm:$0xff]
    %504 = vmatprep.subr.mxu0 0.0
    %505 = vmatpush1.msra.mxu0 %v503
    %506 = vmatprep.subr.mxu0 0.0
    %507 = vmatpush1.msra.mxu0 %v502
    %508 = vmatprep.subr.mxu0 0.0
    %509 = vmatpush1.msra.mxu0 %v501
    %510 = vmatprep.subr.mxu0 0.0
    %511 = vmatpush1.msra.mxu0 %v500
    %512 = vmatprep.subr.mxu0 0.0
    %513 = vmatpush1.msra.mxu0 %v499
    %514 = vmatprep.subr.mxu0 0.0
    %515 = vmatpush1.msra.mxu0 %v498
    %516 = vmatprep.subr.mxu0 0.0
    %517 = vmatpush1.msra.mxu0 %v497
    %518 = vmatprep.subr.mxu0 0.0
    %519 = vmatpush1.msra.mxu0 %v496
    %520 = vmatprep.subr.mxu0 0.0
    %521 = vmatpush1.msra.mxu0 %v495
    %522 = vmatprep.subr.mxu0 0.0
    %523 = vmatpush1.msra.mxu0 %v494
    %524 = vmatprep.subr.mxu0 0.0
    %525 = vmatpush1.msra.mxu0 %v493
    %526 = vmatprep.subr.mxu0 0.0
    %527 = vmatpush1.msra.mxu0 %v492
    %528 = vmatprep.subr.mxu0 0.0
    %529 = vmatpush1.msra.mxu0 %v491
    %530 = vmatprep.subr.mxu0 0.0
    %531 = vmatpush1.msra.mxu0 %v490
    %532 = vmatprep.subr.mxu0 0.0
    %533 = vmatpush1.msra.mxu0 %v489
    %534 = vmatprep.subr.mxu0 0.0
    %535 = vmatpush1.msra.mxu0 %v488
    %536 = vmatprep.subr.mxu0 0.0
    %537 = vmatpush2.msra.mxu0 0.0
    %538 = vmatprep.subr.mxu0 0.0
    %539 = vmatpush2.msra.mxu0 0.0
    %540 = vmatprep.subr.mxu0 0.0
    %541 = vmatpush2.msra.mxu0 0.0
    %542 = vmatprep.subr.mxu0 0.0
    %543 = vmatpush2.msra.mxu0 0.0
    %544 = vmatprep.subr.mxu0 0.0
    %545 = vmatpush2.msra.mxu0 0.0
    %546 = vmatprep.subr.mxu0 0.0
    %547 = vmatpush2.msra.mxu0 0.0
    %548 = vmatprep.subr.mxu0 0.0
    %549 = vmatpush2.msra.mxu0 0.0
    %550 = vmatprep.subr.mxu0 0.0
    %551 = vmatpush2.msra.mxu0 0.0
    %552 = vmatprep.subr.mxu0 0.0
    %553 = vmatpush2.msra.mxu0 0.0
    %554 = vmatprep.subr.mxu0 0.0
    %555 = vmatpush2.msra.mxu0 0.0
    %556 = vmatprep.subr.mxu0 0.0
    %557 = vmatpush2.msra.mxu0 0.0
    %558 = vmatprep.subr.mxu0 0.0
    %559 = vmatpush2.msra.mxu0 0.0
    %560 = vmatprep.subr.mxu0 0.0
    %561 = vmatpush2.msra.mxu0 0.0
    %562 = vmatprep.subr.mxu0 0.0
    %563 = vmatpush2.msra.mxu0 0.0
    %564 = vmatprep.subr.mxu0 0.0
    %565 = vmatpush2.msra.mxu0 0.0
    %566 = vmatprep.subr.mxu0 0.0
    %567 = vmatpush2.msra.mxu0 0.0
    %568 = vmatprep.mubr.f32.mxu0 0.0
    %569 = vmatmul.mubr.f32.gmra.mxu0 %v390
    %v570 = vpop.f32.mrf.mxu0
    %v571 = vadd.f32 0.0, %v570
    %v572 = vpop.f32.mrf.mxu0
    %573 = vdwg.mxu0
    %v574 = vadd.f32 %v487, %v571
    %v575 = vxor.u32 %v574, 2147483648
    %v576 = vmul.f32 %v575, 1.442695
    %v577 = vpow.pop %v576
    %v578 = vadd.f32 %v577, 1.0
    %v579 = vrcp.pop %v578
    %v580 = vmul.f32 1.0, %v579
    %v581 = vtanh.pop %v574
    %582 = vrot.lane.b32.xlu0 %v580, 96
    %v583 = vpop.permute.xlu0 %582
    %584 = vrot.lane.b32.xlu0 %v581, 64
    %v585 = vpop.permute.xlu0 %584
    %586 = vrot.lane.b32.xlu0 %v580, 32
    %v587 = vpop.permute.xlu0 %586
    %v588 = vmul.f32 %v583, %v388
    %v589 = vmul.f32 %v580, %v585
    %v590 = vadd.f32 %v588, %v589
    %v591 = vtanh.pop %v590
    %v592 = vmul.f32 %v587, %v591
    %v593 = vld [vmem:[#allocation10] sm:$0xff]
    %v594 = vld [vmem:[#allocation10 + $0x8] sm:$0xff]
    %v595 = vld [vmem:[#allocation10 + $0x10] sm:$0xff]
    %v596 = vld [vmem:[#allocation10 + $0x18] sm:$0xff]
    %v597 = vld [vmem:[#allocation10 + $0x20] sm:$0xff]
    %v598 = vld [vmem:[#allocation10 + $0x28] sm:$0xff]
    %v599 = vld [vmem:[#allocation10 + $0x30] sm:$0xff]
    %v600 = vld [vmem:[#allocation10 + $0x38] sm:$0xff]
    %v601 = vld [vmem:[#allocation10 + $0x40] sm:$0xff]
    %v602 = vld [vmem:[#allocation10 + $0x48] sm:$0xff]
    %v603 = vld [vmem:[#allocation10 + $0x50] sm:$0xff]
    %v604 = vld [vmem:[#allocation10 + $0x58] sm:$0xff]
    %v605 = vld [vmem:[#allocation10 + $0x60] sm:$0xff]
    %v606 = vld [vmem:[#allocation10 + $0x68] sm:$0xff]
    %v607 = vld [vmem:[#allocation10 + $0x70] sm:$0xff]
    %v608 = vld [vmem:[#allocation10 + $0x78] sm:$0xff]
    %v609 = vld [vmem:[%s4] sm:$0x1]
    %v611 = vlaneseq
    %v612 = vshrl.u32 %v611, 7
    %v613 = vsub.s32 0, %v612
    %v614 = vrot.slane %v609, %v613
    %616 = vmatprep.subr.mxu0 0.0
    %617 = vmatpush1.msra.mxu0 %v608
    %618 = vmatprep.subr.mxu0 0.0
    %619 = vmatpush1.msra.mxu0 %v607
    %620 = vmatprep.subr.mxu0 0.0
    %621 = vmatpush1.msra.mxu0 %v606
    %622 = vmatprep.subr.mxu0 0.0
    %623 = vmatpush1.msra.mxu0 %v605
    %624 = vmatprep.subr.mxu0 0.0
    %625 = vmatpush1.msra.mxu0 %v604
    %626 = vmatprep.subr.mxu0 0.0
    %627 = vmatpush1.msra.mxu0 %v603
    %628 = vmatprep.subr.mxu0 0.0
    %629 = vmatpush1.msra.mxu0 %v602
    %630 = vmatprep.subr.mxu0 0.0
    %631 = vmatpush1.msra.mxu0 %v601
    %632 = vmatprep.subr.mxu0 0.0
    %633 = vmatpush1.msra.mxu0 %v600
    %634 = vmatprep.subr.mxu0 0.0
    %635 = vmatpush1.msra.mxu0 %v599
    %636 = vmatprep.subr.mxu0 0.0
    %637 = vmatpush1.msra.mxu0 %v598
    %638 = vmatprep.subr.mxu0 0.0
    %639 = vmatpush1.msra.mxu0 %v597
    %640 = vmatprep.subr.mxu0 0.0
    %641 = vmatpush1.msra.mxu0 %v596
    %642 = vmatprep.subr.mxu0 0.0
    %643 = vmatpush1.msra.mxu0 %v595
    %644 = vmatprep.subr.mxu0 0.0
    %645 = vmatpush1.msra.mxu0 %v594
    %646 = vmatprep.subr.mxu0 0.0
    %647 = vmatpush1.msra.mxu0 %v593
    %648 = vmatprep.subr.mxu0 0.0
    %649 = vmatpush2.msra.mxu0 0.0
    %650 = vmatprep.subr.mxu0 0.0
    %651 = vmatpush2.msra.mxu0 0.0
    %652 = vmatprep.subr.mxu0 0.0
    %653 = vmatpush2.msra.mxu0 0.0
    %654 = vmatprep.subr.mxu0 0.0
    %655 = vmatpush2.msra.mxu0 0.0
    %656 = vmatprep.subr.mxu0 0.0
    %657 = vmatpush2.msra.mxu0 0.0
    %658 = vmatprep.subr.mxu0 0.0
    %659 = vmatpush2.msra.mxu0 0.0
    %660 = vmatprep.subr.mxu0 0.0
    %661 = vmatpush2.msra.mxu0 0.0
    %662 = vmatprep.subr.mxu0 0.0
    %663 = vmatpush2.msra.mxu0 0.0
    %664 = vmatprep.subr.mxu0 0.0
    %665 = vmatpush2.msra.mxu0 0.0
    %666 = vmatprep.subr.mxu0 0.0
    %667 = vmatpush2.msra.mxu0 0.0
    %668 = vmatprep.subr.mxu0 0.0
    %669 = vmatpush2.msra.mxu0 0.0
    %670 = vmatprep.subr.mxu0 0.0
    %671 = vmatpush2.msra.mxu0 0.0
    %672 = vmatprep.subr.mxu0 0.0
    %673 = vmatpush2.msra.mxu0 0.0
    %674 = vmatprep.subr.mxu0 0.0
    %675 = vmatpush2.msra.mxu0 0.0
    %676 = vmatprep.subr.mxu0 0.0
    %677 = vmatpush2.msra.mxu0 0.0
    %678 = vmatprep.subr.mxu0 0.0
    %679 = vmatpush2.msra.mxu0 0.0
    %680 = vmatprep.mubr.f32.mxu0 0.0
    %681 = vmatmul.mubr.f32.gmra.mxu0 %v592
    %v682 = vpop.f32.mrf.mxu0
    %v683 = vadd.f32 %v614, %v682
    %v684 = vpop.f32.mrf.mxu0
    %685 = vdwg.mxu0
    %s686 = scalar_lea.vmem [#allocation2], 16
    %687 = vst [vmem:[%s686] sm:$0xff] %v683
    %s688 = scalar_lea.vmem [#allocation4], 24
    %v689 = vld [vmem:[%s688] sm:$0xff]
    %v690 = vld [vmem:[#allocation7] sm:$0xff]
    %v691 = vld [vmem:[#allocation7 + $0x8] sm:$0xff]
    %v692 = vld [vmem:[#allocation7 + $0x10] sm:$0xff]
    %v693 = vld [vmem:[#allocation7 + $0x18] sm:$0xff]
    %v694 = vld [vmem:[#allocation7 + $0x20] sm:$0xff]
    %v695 = vld [vmem:[#allocation7 + $0x28] sm:$0xff]
    %v696 = vld [vmem:[#allocation7 + $0x30] sm:$0xff]
    %v697 = vld [vmem:[#allocation7 + $0x38] sm:$0xff]
    %v698 = vld [vmem:[#allocation7 + $0x40] sm:$0xff]
    %v699 = vld [vmem:[#allocation7 + $0x48] sm:$0xff]
    %v700 = vld [vmem:[#allocation7 + $0x50] sm:$0xff]
    %v701 = vld [vmem:[#allocation7 + $0x58] sm:$0xff]
    %v702 = vld [vmem:[#allocation7 + $0x60] sm:$0xff]
    %v703 = vld [vmem:[#allocation7 + $0x68] sm:$0xff]
    %v704 = vld [vmem:[#allocation7 + $0x70] sm:$0xff]
    %v705 = vld [vmem:[#allocation7 + $0x78] sm:$0xff]
    %706 = vmatprep.subr.mxu0 0.0
    %707 = vmatpush1.msra.mxu0 %v705
    %708 = vmatprep.subr.mxu0 0.0
    %709 = vmatpush1.msra.mxu0 %v704
    %710 = vmatprep.subr.mxu0 0.0
    %711 = vmatpush1.msra.mxu0 %v703
    %712 = vmatprep.subr.mxu0 0.0
    %713 = vmatpush1.msra.mxu0 %v702
    %714 = vmatprep.subr.mxu0 0.0
    %715 = vmatpush1.msra.mxu0 %v701
    %716 = vmatprep.subr.mxu0 0.0
    %717 = vmatpush1.msra.mxu0 %v700
    %718 = vmatprep.subr.mxu0 0.0
    %719 = vmatpush1.msra.mxu0 %v699
    %720 = vmatprep.subr.mxu0 0.0
    %721 = vmatpush1.msra.mxu0 %v698
    %722 = vmatprep.subr.mxu0 0.0
    %723 = vmatpush1.msra.mxu0 %v697
    %724 = vmatprep.subr.mxu0 0.0
    %725 = vmatpush1.msra.mxu0 %v696
    %726 = vmatprep.subr.mxu0 0.0
    %727 = vmatpush1.msra.mxu0 %v695
    %728 = vmatprep.subr.mxu0 0.0
    %729 = vmatpush1.msra.mxu0 %v694
    %730 = vmatprep.subr.mxu0 0.0
    %731 = vmatpush1.msra.mxu0 %v693
    %732 = vmatprep.subr.mxu0 0.0
    %733 = vmatpush1.msra.mxu0 %v692
    %734 = vmatprep.subr.mxu0 0.0
    %735 = vmatpush1.msra.mxu0 %v691
    %736 = vmatprep.subr.mxu0 0.0
    %737 = vmatpush1.msra.mxu0 %v690
    %738 = vmatprep.subr.mxu0 0.0
    %739 = vmatpush2.msra.mxu0 0.0
    %740 = vmatprep.subr.mxu0 0.0
    %741 = vmatpush2.msra.mxu0 0.0
    %742 = vmatprep.subr.mxu0 0.0
    %743 = vmatpush2.msra.mxu0 0.0
    %744 = vmatprep.subr.mxu0 0.0
    %745 = vmatpush2.msra.mxu0 0.0
    %746 = vmatprep.subr.mxu0 0.0
    %747 = vmatpush2.msra.mxu0 0.0
    %748 = vmatprep.subr.mxu0 0.0
    %749 = vmatpush2.msra.mxu0 0.0
    %750 = vmatprep.subr.mxu0 0.0
    %751 = vmatpush2.msra.mxu0 0.0
    %752 = vmatprep.subr.mxu0 0.0
    %753 = vmatpush2.msra.mxu0 0.0
    %754 = vmatprep.subr.mxu0 0.0
    %755 = vmatpush2.msra.mxu0 0.0
    %756 = vmatprep.subr.mxu0 0.0
    %757 = vmatpush2.msra.mxu0 0.0
    %758 = vmatprep.subr.mxu0 0.0
    %759 = vmatpush2.msra.mxu0 0.0
    %760 = vmatprep.subr.mxu0 0.0
    %761 = vmatpush2.msra.mxu0 0.0
    %762 = vmatprep.subr.mxu0 0.0
    %763 = vmatpush2.msra.mxu0 0.0
    %764 = vmatprep.subr.mxu0 0.0
    %765 = vmatpush2.msra.mxu0 0.0
    %766 = vmatprep.subr.mxu0 0.0
    %767 = vmatpush2.msra.mxu0 0.0
    %768 = vmatprep.subr.mxu0 0.0
    %769 = vmatpush2.msra.mxu0 0.0
    %770 = vmatprep.mubr.f32.mxu0 0.0
    %771 = vmatmul.mubr.f32.gmra.mxu0 %v592
    %v772 = vpop.f32.mrf.mxu0
    %v773 = vadd.f32 0.0, %v772
    %v774 = vpop.f32.mrf.mxu0
    %775 = vdwg.mxu0
    %v776 = vadd.f32 %v689, %v773
    %v777 = vxor.u32 %v776, 2147483648
    %v778 = vmul.f32 %v777, 1.442695
    %v779 = vpow.pop %v778
    %v780 = vadd.f32 %v779, 1.0
    %v781 = vrcp.pop %v780
    %v782 = vmul.f32 1.0, %v781
    %v783 = vtanh.pop %v776
    %784 = vrot.lane.b32.xlu0 %v782, 96
    %v785 = vpop.permute.xlu0 %784
    %786 = vrot.lane.b32.xlu0 %v783, 64
    %v787 = vpop.permute.xlu0 %786
    %788 = vrot.lane.b32.xlu0 %v782, 32
    %v789 = vpop.permute.xlu0 %788
    %v790 = vmul.f32 %v785, %v590
    %v791 = vmul.f32 %v782, %v787
    %v792 = vadd.f32 %v790, %v791
    %v793 = vtanh.pop %v792
    %v794 = vmul.f32 %v789, %v793
    %v795 = vld [vmem:[#allocation10] sm:$0xff]
    %v796 = vld [vmem:[#allocation10 + $0x8] sm:$0xff]
    %v797 = vld [vmem:[#allocation10 + $0x10] sm:$0xff]
    %v798 = vld [vmem:[#allocation10 + $0x18] sm:$0xff]
    %v799 = vld [vmem:[#allocation10 + $0x20] sm:$0xff]
    %v800 = vld [vmem:[#allocation10 + $0x28] sm:$0xff]
    %v801 = vld [vmem:[#allocation10 + $0x30] sm:$0xff]
    %v802 = vld [vmem:[#allocation10 + $0x38] sm:$0xff]
    %v803 = vld [vmem:[#allocation10 + $0x40] sm:$0xff]
    %v804 = vld [vmem:[#allocation10 + $0x48] sm:$0xff]
    %v805 = vld [vmem:[#allocation10 + $0x50] sm:$0xff]
    %v806 = vld [vmem:[#allocation10 + $0x58] sm:$0xff]
    %v807 = vld [vmem:[#allocation10 + $0x60] sm:$0xff]
    %v808 = vld [vmem:[#allocation10 + $0x68] sm:$0xff]
    %v809 = vld [vmem:[#allocation10 + $0x70] sm:$0xff]
    %v810 = vld [vmem:[#allocation10 + $0x78] sm:$0xff]
    %v811 = vld [vmem:[%s4] sm:$0x1]
    %v813 = vlaneseq
    %v814 = vshrl.u32 %v813, 7
    %v815 = vsub.s32 0, %v814
    %v816 = vrot.slane %v811, %v815
    %818 = vmatprep.subr.mxu0 0.0
    %819 = vmatpush1.msra.mxu0 %v810
    %820 = vmatprep.subr.mxu0 0.0
    %821 = vmatpush1.msra.mxu0 %v809
    %822 = vmatprep.subr.mxu0 0.0
    %823 = vmatpush1.msra.mxu0 %v808
    %824 = vmatprep.subr.mxu0 0.0
    %825 = vmatpush1.msra.mxu0 %v807
    %826 = vmatprep.subr.mxu0 0.0
    %827 = vmatpush1.msra.mxu0 %v806
    %828 = vmatprep.subr.mxu0 0.0
    %829 = vmatpush1.msra.mxu0 %v805
    %830 = vmatprep.subr.mxu0 0.0
    %831 = vmatpush1.msra.mxu0 %v804
    %832 = vmatprep.subr.mxu0 0.0
    %833 = vmatpush1.msra.mxu0 %v803
    %834 = vmatprep.subr.mxu0 0.0
    %835 = vmatpush1.msra.mxu0 %v802
    %836 = vmatprep.subr.mxu0 0.0
    %837 = vmatpush1.msra.mxu0 %v801
    %838 = vmatprep.subr.mxu0 0.0
    %839 = vmatpush1.msra.mxu0 %v800
    %840 = vmatprep.subr.mxu0 0.0
    %841 = vmatpush1.msra.mxu0 %v799
    %842 = vmatprep.subr.mxu0 0.0
    %843 = vmatpush1.msra.mxu0 %v798
    %844 = vmatprep.subr.mxu0 0.0
    %845 = vmatpush1.msra.mxu0 %v797
    %846 = vmatprep.subr.mxu0 0.0
    %847 = vmatpush1.msra.mxu0 %v796
    %848 = vmatprep.subr.mxu0 0.0
    %849 = vmatpush1.msra.mxu0 %v795
    %850 = vmatprep.subr.mxu0 0.0
    %851 = vmatpush2.msra.mxu0 0.0
    %852 = vmatprep.subr.mxu0 0.0
    %853 = vmatpush2.msra.mxu0 0.0
    %854 = vmatprep.subr.mxu0 0.0
    %855 = vmatpush2.msra.mxu0 0.0
    %856 = vmatprep.subr.mxu0 0.0
    %857 = vmatpush2.msra.mxu0 0.0
    %858 = vmatprep.subr.mxu0 0.0
    %859 = vmatpush2.msra.mxu0 0.0
    %860 = vmatprep.subr.mxu0 0.0
    %861 = vmatpush2.msra.mxu0 0.0
    %862 = vmatprep.subr.mxu0 0.0
    %863 = vmatpush2.msra.mxu0 0.0
    %864 = vmatprep.subr.mxu0 0.0
    %865 = vmatpush2.msra.mxu0 0.0
    %866 = vmatprep.subr.mxu0 0.0
    %867 = vmatpush2.msra.mxu0 0.0
    %868 = vmatprep.subr.mxu0 0.0
    %869 = vmatpush2.msra.mxu0 0.0
    %870 = vmatprep.subr.mxu0 0.0
    %871 = vmatpush2.msra.mxu0 0.0
    %872 = vmatprep.subr.mxu0 0.0
    %873 = vmatpush2.msra.mxu0 0.0
    %874 = vmatprep.subr.mxu0 0.0
    %875 = vmatpush2.msra.mxu0 0.0
    %876 = vmatprep.subr.mxu0 0.0
    %877 = vmatpush2.msra.mxu0 0.0
    %878 = vmatprep.subr.mxu0 0.0
    %879 = vmatpush2.msra.mxu0 0.0
    %880 = vmatprep.subr.mxu0 0.0
    %881 = vmatpush2.msra.mxu0 0.0
    %882 = vmatprep.mubr.f32.mxu0 0.0
    %883 = vmatmul.mubr.f32.gmra.mxu0 %v794
    %v884 = vpop.f32.mrf.mxu0
    %v885 = vadd.f32 %v816, %v884
    %v886 = vpop.f32.mrf.mxu0
    %887 = vdwg.mxu0
    %s888 = scalar_lea.vmem [#allocation2], 24
    %889 = vst [vmem:[%s888] sm:$0xff] %v885
    %s890 = scalar_lea.vmem [#allocation4], 32
    %v891 = vld [vmem:[%s890] sm:$0xff]
    %v892 = vld [vmem:[#allocation7] sm:$0xff]
    %v893 = vld [vmem:[#allocation7 + $0x8] sm:$0xff]
    %v894 = vld [vmem:[#allocation7 + $0x10] sm:$0xff]
    %v895 = vld [vmem:[#allocation7 + $0x18] sm:$0xff]
    %v896 = vld [vmem:[#allocation7 + $0x20] sm:$0xff]
    %v897 = vld [vmem:[#allocation7 + $0x28] sm:$0xff]
    %v898 = vld [vmem:[#allocation7 + $0x30] sm:$0xff]
    %v899 = vld [vmem:[#allocation7 + $0x38] sm:$0xff]
    %v900 = vld [vmem:[#allocation7 + $0x40] sm:$0xff]
    %v901 = vld [vmem:[#allocation7 + $0x48] sm:$0xff]
    %v902 = vld [vmem:[#allocation7 + $0x50] sm:$0xff]
    %v903 = vld [vmem:[#allocation7 + $0x58] sm:$0xff]
    %v904 = vld [vmem:[#allocation7 + $0x60] sm:$0xff]
    %v905 = vld [vmem:[#allocation7 + $0x68] sm:$0xff]
    %v906 = vld [vmem:[#allocation7 + $0x70] sm:$0xff]
    %v907 = vld [vmem:[#allocation7 + $0x78] sm:$0xff]
    %908 = vmatprep.subr.mxu0 0.0
    %909 = vmatpush1.msra.mxu0 %v907
    %910 = vmatprep.subr.mxu0 0.0
    %911 = vmatpush1.msra.mxu0 %v906
    %912 = vmatprep.subr.mxu0 0.0
    %913 = vmatpush1.msra.mxu0 %v905
    %914 = vmatprep.subr.mxu0 0.0
    %915 = vmatpush1.msra.mxu0 %v904
    %916 = vmatprep.subr.mxu0 0.0
    %917 = vmatpush1.msra.mxu0 %v903
    %918 = vmatprep.subr.mxu0 0.0
    %919 = vmatpush1.msra.mxu0 %v902
    %920 = vmatprep.subr.mxu0 0.0
    %921 = vmatpush1.msra.mxu0 %v901
    %922 = vmatprep.subr.mxu0 0.0
    %923 = vmatpush1.msra.mxu0 %v900
    %924 = vmatprep.subr.mxu0 0.0
    %925 = vmatpush1.msra.mxu0 %v899
    %926 = vmatprep.subr.mxu0 0.0
    %927 = vmatpush1.msra.mxu0 %v898
    %928 = vmatprep.subr.mxu0 0.0
    %929 = vmatpush1.msra.mxu0 %v897
    %930 = vmatprep.subr.mxu0 0.0
    %931 = vmatpush1.msra.mxu0 %v896
    %932 = vmatprep.subr.mxu0 0.0
    %933 = vmatpush1.msra.mxu0 %v895
    %934 = vmatprep.subr.mxu0 0.0
    %935 = vmatpush1.msra.mxu0 %v894
    %936 = vmatprep.subr.mxu0 0.0
    %937 = vmatpush1.msra.mxu0 %v893
    %938 = vmatprep.subr.mxu0 0.0
    %939 = vmatpush1.msra.mxu0 %v892
    %940 = vmatprep.subr.mxu0 0.0
    %941 = vmatpush2.msra.mxu0 0.0
    %942 = vmatprep.subr.mxu0 0.0
    %943 = vmatpush2.msra.mxu0 0.0
    %944 = vmatprep.subr.mxu0 0.0
    %945 = vmatpush2.msra.mxu0 0.0
    %946 = vmatprep.subr.mxu0 0.0
    %947 = vmatpush2.msra.mxu0 0.0
    %948 = vmatprep.subr.mxu0 0.0
    %949 = vmatpush2.msra.mxu0 0.0
    %950 = vmatprep.subr.mxu0 0.0
    %951 = vmatpush2.msra.mxu0 0.0
    %952 = vmatprep.subr.mxu0 0.0
    %953 = vmatpush2.msra.mxu0 0.0
    %954 = vmatprep.subr.mxu0 0.0
    %955 = vmatpush2.msra.mxu0 0.0
    %956 = vmatprep.subr.mxu0 0.0
    %957 = vmatpush2.msra.mxu0 0.0
    %958 = vmatprep.subr.mxu0 0.0
    %959 = vmatpush2.msra.mxu0 0.0
    %960 = vmatprep.subr.mxu0 0.0
    %961 = vmatpush2.msra.mxu0 0.0
    %962 = vmatprep.subr.mxu0 0.0
    %963 = vmatpush2.msra.mxu0 0.0
    %964 = vmatprep.subr.mxu0 0.0
    %965 = vmatpush2.msra.mxu0 0.0
    %966 = vmatprep.subr.mxu0 0.0
    %967 = vmatpush2.msra.mxu0 0.0
    %968 = vmatprep.subr.mxu0 0.0
    %969 = vmatpush2.msra.mxu0 0.0
    %970 = vmatprep.subr.mxu0 0.0
    %971 = vmatpush2.msra.mxu0 0.0
    %972 = vmatprep.mubr.f32.mxu0 0.0
    %973 = vmatmul.mubr.f32.gmra.mxu0 %v794
    %v974 = vpop.f32.mrf.mxu0
    %v975 = vadd.f32 0.0, %v974
    %v976 = vpop.f32.mrf.mxu0
    %977 = vdwg.mxu0
    %v978 = vadd.f32 %v891, %v975
    %v979 = vxor.u32 %v978, 2147483648
    %v980 = vmul.f32 %v979, 1.442695
    %v981 = vpow.pop %v980
    %v982 = vadd.f32 %v981, 1.0
    %v983 = vrcp.pop %v982
    %v984 = vmul.f32 1.0, %v983
    %v985 = vtanh.pop %v978
    %986 = vrot.lane.b32.xlu0 %v984, 96
    %v987 = vpop.permute.xlu0 %986
    %988 = vrot.lane.b32.xlu0 %v985, 64
    %v989 = vpop.permute.xlu0 %988
    %990 = vrot.lane.b32.xlu0 %v984, 32
    %v991 = vpop.permute.xlu0 %990
    %v992 = vmul.f32 %v987, %v792
    %v993 = vmul.f32 %v984, %v989
    %v994 = vadd.f32 %v992, %v993
    %v995 = vtanh.pop %v994
    %v996 = vmul.f32 %v991, %v995
    %v997 = vld [vmem:[#allocation10] sm:$0xff]
    %v998 = vld [vmem:[#allocation10 + $0x8] sm:$0xff]
    %v999 = vld [vmem:[#allocation10 + $0x10] sm:$0xff]
    %v1000 = vld [vmem:[#allocation10 + $0x18] sm:$0xff]
    %v1001 = vld [vmem:[#allocation10 + $0x20] sm:$0xff]
    %v1002 = vld [vmem:[#allocation10 + $0x28] sm:$0xff]
    %v1003 = vld [vmem:[#allocation10 + $0x30] sm:$0xff]
    %v1004 = vld [vmem:[#allocation10 + $0x38] sm:$0xff]
    %v1005 = vld [vmem:[#allocation10 + $0x40] sm:$0xff]
    %v1006 = vld [vmem:[#allocation10 + $0x48] sm:$0xff]
    %v1007 = vld [vmem:[#allocation10 + $0x50] sm:$0xff]
    %v1008 = vld [vmem:[#allocation10 + $0x58] sm:$0xff]
    %v1009 = vld [vmem:[#allocation10 + $0x60] sm:$0xff]
    %v1010 = vld [vmem:[#allocation10 + $0x68] sm:$0xff]
    %v1011 = vld [vmem:[#allocation10 + $0x70] sm:$0xff]
    %v1012 = vld [vmem:[#allocation10 + $0x78] sm:$0xff]
    %v1013 = vld [vmem:[%s4] sm:$0x1]
    %v1015 = vlaneseq
    %v1016 = vshrl.u32 %v1015, 7
    %v1017 = vsub.s32 0, %v1016
    %v1018 = vrot.slane %v1013, %v1017
    %1020 = vmatprep.subr.mxu0 0.0
    %1021 = vmatpush1.msra.mxu0 %v1012
    %1022 = vmatprep.subr.mxu0 0.0
    %1023 = vmatpush1.msra.mxu0 %v1011
    %1024 = vmatprep.subr.mxu0 0.0
    %1025 = vmatpush1.msra.mxu0 %v1010
    %1026 = vmatprep.subr.mxu0 0.0
    %1027 = vmatpush1.msra.mxu0 %v1009
    %1028 = vmatprep.subr.mxu0 0.0
    %1029 = vmatpush1.msra.mxu0 %v1008
    %1030 = vmatprep.subr.mxu0 0.0
    %1031 = vmatpush1.msra.mxu0 %v1007
    %1032 = vmatprep.subr.mxu0 0.0
    %1033 = vmatpush1.msra.mxu0 %v1006
    %1034 = vmatprep.subr.mxu0 0.0
    %1035 = vmatpush1.msra.mxu0 %v1005
    %1036 = vmatprep.subr.mxu0 0.0
    %1037 = vmatpush1.msra.mxu0 %v1004
    %1038 = vmatprep.subr.mxu0 0.0
    %1039 = vmatpush1.msra.mxu0 %v1003
    %1040 = vmatprep.subr.mxu0 0.0
    %1041 = vmatpush1.msra.mxu0 %v1002
    %1042 = vmatprep.subr.mxu0 0.0
    %1043 = vmatpush1.msra.mxu0 %v1001
    %1044 = vmatprep.subr.mxu0 0.0
    %1045 = vmatpush1.msra.mxu0 %v1000
    %1046 = vmatprep.subr.mxu0 0.0
    %1047 = vmatpush1.msra.mxu0 %v999
    %1048 = vmatprep.subr.mxu0 0.0
    %1049 = vmatpush1.msra.mxu0 %v998
    %1050 = vmatprep.subr.mxu0 0.0
    %1051 = vmatpush1.msra.mxu0 %v997
    %1052 = vmatprep.subr.mxu0 0.0
    %1053 = vmatpush2.msra.mxu0 0.0
    %1054 = vmatprep.subr.mxu0 0.0
    %1055 = vmatpush2.msra.mxu0 0.0
    %1056 = vmatprep.subr.mxu0 0.0
    %1057 = vmatpush2.msra.mxu0 0.0
    %1058 = vmatprep.subr.mxu0 0.0
    %1059 = vmatpush2.msra.mxu0 0.0
    %1060 = vmatprep.subr.mxu0 0.0
    %1061 = vmatpush2.msra.mxu0 0.0
    %1062 = vmatprep.subr.mxu0 0.0
    %1063 = vmatpush2.msra.mxu0 0.0
    %1064 = vmatprep.subr.mxu0 0.0
    %1065 = vmatpush2.msra.mxu0 0.0
    %1066 = vmatprep.subr.mxu0 0.0
    %1067 = vmatpush2.msra.mxu0 0.0
    %1068 = vmatprep.subr.mxu0 0.0
    %1069 = vmatpush2.msra.mxu0 0.0
    %1070 = vmatprep.subr.mxu0 0.0
    %1071 = vmatpush2.msra.mxu0 0.0
    %1072 = vmatprep.subr.mxu0 0.0
    %1073 = vmatpush2.msra.mxu0 0.0
    %1074 = vmatprep.subr.mxu0 0.0
    %1075 = vmatpush2.msra.mxu0 0.0
    %1076 = vmatprep.subr.mxu0 0.0
    %1077 = vmatpush2.msra.mxu0 0.0
    %1078 = vmatprep.subr.mxu0 0.0
    %1079 = vmatpush2.msra.mxu0 0.0
    %1080 = vmatprep.subr.mxu0 0.0
    %1081 = vmatpush2.msra.mxu0 0.0
    %1082 = vmatprep.subr.mxu0 0.0
    %1083 = vmatpush2.msra.mxu0 0.0
    %1084 = vmatprep.mubr.f32.mxu0 0.0
    %1085 = vmatmul.mubr.f32.gmra.mxu0 %v996
    %v1086 = vpop.f32.mrf.mxu0
    %v1087 = vadd.f32 %v1018, %v1086
    %v1088 = vpop.f32.mrf.mxu0
    %1089 = vdwg.mxu0
    %s1090 = scalar_lea.vmem [#allocation2], 32
    %1091 = vst [vmem:[%s1090] sm:$0xff] %v1087
    %s1092 = scalar_lea.vmem [#allocation4], 40
    %v1093 = vld [vmem:[%s1092] sm:$0xff]
    %v1094 = vld [vmem:[#allocation7] sm:$0xff]
    %v1095 = vld [vmem:[#allocation7 + $0x8] sm:$0xff]
    %v1096 = vld [vmem:[#allocation7 + $0x10] sm:$0xff]
    %v1097 = vld [vmem:[#allocation7 + $0x18] sm:$0xff]
    %v1098 = vld [vmem:[#allocation7 + $0x20] sm:$0xff]
    %v1099 = vld [vmem:[#allocation7 + $0x28] sm:$0xff]
    %v1100 = vld [vmem:[#allocation7 + $0x30] sm:$0xff]
    %v1101 = vld [vmem:[#allocation7 + $0x38] sm:$0xff]
    %v1102 = vld [vmem:[#allocation7 + $0x40] sm:$0xff]
    %v1103 = vld [vmem:[#allocation7 + $0x48] sm:$0xff]
    %v1104 = vld [vmem:[#allocation7 + $0x50] sm:$0xff]
    %v1105 = vld [vmem:[#allocation7 + $0x58] sm:$0xff]
    %v1106 = vld [vmem:[#allocation7 + $0x60] sm:$0xff]
    %v1107 = vld [vmem:[#allocation7 + $0x68] sm:$0xff]
    %v1108 = vld [vmem:[#allocation7 + $0x70] sm:$0xff]
    %v1109 = vld [vmem:[#allocation7 + $0x78] sm:$0xff]
    %1110 = vmatprep.subr.mxu0 0.0
    %1111 = vmatpush1.msra.mxu0 %v1109
    %1112 = vmatprep.subr.mxu0 0.0
    %1113 = vmatpush1.msra.mxu0 %v1108
    %1114 = vmatprep.subr.mxu0 0.0
    %1115 = vmatpush1.msra.mxu0 %v1107
    %1116 = vmatprep.subr.mxu0 0.0
    %1117 = vmatpush1.msra.mxu0 %v1106
    %1118 = vmatprep.subr.mxu0 0.0
    %1119 = vmatpush1.msra.mxu0 %v1105
    %1120 = vmatprep.subr.mxu0 0.0
    %1121 = vmatpush1.msra.mxu0 %v1104
    %1122 = vmatprep.subr.mxu0 0.0
    %1123 = vmatpush1.msra.mxu0 %v1103
    %1124 = vmatprep.subr.mxu0 0.0
    %1125 = vmatpush1.msra.mxu0 %v1102
    %1126 = vmatprep.subr.mxu0 0.0
    %1127 = vmatpush1.msra.mxu0 %v1101
    %1128 = vmatprep.subr.mxu0 0.0
    %1129 = vmatpush1.msra.mxu0 %v1100
    %1130 = vmatprep.subr.mxu0 0.0
    %1131 = vmatpush1.msra.mxu0 %v1099
    %1132 = vmatprep.subr.mxu0 0.0
    %1133 = vmatpush1.msra.mxu0 %v1098
    %1134 = vmatprep.subr.mxu0 0.0
    %1135 = vmatpush1.msra.mxu0 %v1097
    %1136 = vmatprep.subr.mxu0 0.0
    %1137 = vmatpush1.msra.mxu0 %v1096
    %1138 = vmatprep.subr.mxu0 0.0
    %1139 = vmatpush1.msra.mxu0 %v1095
    %1140 = vmatprep.subr.mxu0 0.0
    %1141 = vmatpush1.msra.mxu0 %v1094
    %1142 = vmatprep.subr.mxu0 0.0
    %1143 = vmatpush2.msra.mxu0 0.0
    %1144 = vmatprep.subr.mxu0 0.0
    %1145 = vmatpush2.msra.mxu0 0.0
    %1146 = vmatprep.subr.mxu0 0.0
    %1147 = vmatpush2.msra.mxu0 0.0
    %1148 = vmatprep.subr.mxu0 0.0
    %1149 = vmatpush2.msra.mxu0 0.0
    %1150 = vmatprep.subr.mxu0 0.0
    %1151 = vmatpush2.msra.mxu0 0.0
    %1152 = vmatprep.subr.mxu0 0.0
    %1153 = vmatpush2.msra.mxu0 0.0
    %1154 = vmatprep.subr.mxu0 0.0
    %1155 = vmatpush2.msra.mxu0 0.0
    %1156 = vmatprep.subr.mxu0 0.0
    %1157 = vmatpush2.msra.mxu0 0.0
    %1158 = vmatprep.subr.mxu0 0.0
    %1159 = vmatpush2.msra.mxu0 0.0
    %1160 = vmatprep.subr.mxu0 0.0
    %1161 = vmatpush2.msra.mxu0 0.0
    %1162 = vmatprep.subr.mxu0 0.0
    %1163 = vmatpush2.msra.mxu0 0.0
    %1164 = vmatprep.subr.mxu0 0.0
    %1165 = vmatpush2.msra.mxu0 0.0
    %1166 = vmatprep.subr.mxu0 0.0
    %1167 = vmatpush2.msra.mxu0 0.0
    %1168 = vmatprep.subr.mxu0 0.0
    %1169 = vmatpush2.msra.mxu0 0.0
    %1170 = vmatprep.subr.mxu0 0.0
    %1171 = vmatpush2.msra.mxu0 0.0
    %1172 = vmatprep.subr.mxu0 0.0
    %1173 = vmatpush2.msra.mxu0 0.0
    %1174 = vmatprep.mubr.f32.mxu0 0.0
    %1175 = vmatmul.mubr.f32.gmra.mxu0 %v996
    %v1176 = vpop.f32.mrf.mxu0
    %v1177 = vadd.f32 0.0, %v1176
    %v1178 = vpop.f32.mrf.mxu0
    %1179 = vdwg.mxu0
    %v1180 = vadd.f32 %v1093, %v1177
    %v1181 = vxor.u32 %v1180, 2147483648
    %v1182 = vmul.f32 %v1181, 1.442695
    %v1183 = vpow.pop %v1182
    %v1184 = vadd.f32 %v1183, 1.0
    %v1185 = vrcp.pop %v1184
    %v1186 = vmul.f32 1.0, %v1185
    %v1187 = vtanh.pop %v1180
    %1188 = vrot.lane.b32.xlu0 %v1186, 96
    %v1189 = vpop.permute.xlu0 %1188
    %1190 = vrot.lane.b32.xlu0 %v1187, 64
    %v1191 = vpop.permute.xlu0 %1190
    %1192 = vrot.lane.b32.xlu0 %v1186, 32
    %v1193 = vpop.permute.xlu0 %1192
    %v1194 = vmul.f32 %v1189, %v994
    %v1195 = vmul.f32 %v1186, %v1191
    %v1196 = vadd.f32 %v1194, %v1195
    %v1197 = vtanh.pop %v1196
    %v1198 = vmul.f32 %v1193, %v1197
    %v1199 = vld [vmem:[#allocation10] sm:$0xff]
    %v1200 = vld [vmem:[#allocation10 + $0x8] sm:$0xff]
    %v1201 = vld [vmem:[#allocation10 + $0x10] sm:$0xff]
    %v1202 = vld [vmem:[#allocation10 + $0x18] sm:$0xff]
    %v1203 = vld [vmem:[#allocation10 + $0x20] sm:$0xff]
    %v1204 = vld [vmem:[#allocation10 + $0x28] sm:$0xff]
    %v1205 = vld [vmem:[#allocation10 + $0x30] sm:$0xff]
    %v1206 = vld [vmem:[#allocation10 + $0x38] sm:$0xff]
    %v1207 = vld [vmem:[#allocation10 + $0x40] sm:$0xff]
    %v1208 = vld [vmem:[#allocation10 + $0x48] sm:$0xff]
    %v1209 = vld [vmem:[#allocation10 + $0x50] sm:$0xff]
    %v1210 = vld [vmem:[#allocation10 + $0x58] sm:$0xff]
    %v1211 = vld [vmem:[#allocation10 + $0x60] sm:$0xff]
    %v1212 = vld [vmem:[#allocation10 + $0x68] sm:$0xff]
    %v1213 = vld [vmem:[#allocation10 + $0x70] sm:$0xff]
    %v1214 = vld [vmem:[#allocation10 + $0x78] sm:$0xff]
    %v1215 = vld [vmem:[%s4] sm:$0x1]
    %v1217 = vlaneseq
    %v1218 = vshrl.u32 %v1217, 7
    %v1219 = vsub.s32 0, %v1218
    %v1220 = vrot.slane %v1215, %v1219
    %1222 = vmatprep.subr.mxu0 0.0
    %1223 = vmatpush1.msra.mxu0 %v1214
    %1224 = vmatprep.subr.mxu0 0.0
    %1225 = vmatpush1.msra.mxu0 %v1213
    %1226 = vmatprep.subr.mxu0 0.0
    %1227 = vmatpush1.msra.mxu0 %v1212
    %1228 = vmatprep.subr.mxu0 0.0
    %1229 = vmatpush1.msra.mxu0 %v1211
    %1230 = vmatprep.subr.mxu0 0.0
    %1231 = vmatpush1.msra.mxu0 %v1210
    %1232 = vmatprep.subr.mxu0 0.0
    %1233 = vmatpush1.msra.mxu0 %v1209
    %1234 = vmatprep.subr.mxu0 0.0
    %1235 = vmatpush1.msra.mxu0 %v1208
    %1236 = vmatprep.subr.mxu0 0.0
    %1237 = vmatpush1.msra.mxu0 %v1207
    %1238 = vmatprep.subr.mxu0 0.0
    %1239 = vmatpush1.msra.mxu0 %v1206
    %1240 = vmatprep.subr.mxu0 0.0
    %1241 = vmatpush1.msra.mxu0 %v1205
    %1242 = vmatprep.subr.mxu0 0.0
    %1243 = vmatpush1.msra.mxu0 %v1204
    %1244 = vmatprep.subr.mxu0 0.0
    %1245 = vmatpush1.msra.mxu0 %v1203
    %1246 = vmatprep.subr.mxu0 0.0
    %1247 = vmatpush1.msra.mxu0 %v1202
    %1248 = vmatprep.subr.mxu0 0.0
    %1249 = vmatpush1.msra.mxu0 %v1201
    %1250 = vmatprep.subr.mxu0 0.0
    %1251 = vmatpush1.msra.mxu0 %v1200
    %1252 = vmatprep.subr.mxu0 0.0
    %1253 = vmatpush1.msra.mxu0 %v1199
    %1254 = vmatprep.subr.mxu0 0.0
    %1255 = vmatpush2.msra.mxu0 0.0
    %1256 = vmatprep.subr.mxu0 0.0
    %1257 = vmatpush2.msra.mxu0 0.0
    %1258 = vmatprep.subr.mxu0 0.0
    %1259 = vmatpush2.msra.mxu0 0.0
    %1260 = vmatprep.subr.mxu0 0.0
    %1261 = vmatpush2.msra.mxu0 0.0
    %1262 = vmatprep.subr.mxu0 0.0
    %1263 = vmatpush2.msra.mxu0 0.0
    %1264 = vmatprep.subr.mxu0 0.0
    %1265 = vmatpush2.msra.mxu0 0.0
    %1266 = vmatprep.subr.mxu0 0.0
    %1267 = vmatpush2.msra.mxu0 0.0
    %1268 = vmatprep.subr.mxu0 0.0
    %1269 = vmatpush2.msra.mxu0 0.0
    %1270 = vmatprep.subr.mxu0 0.0
    %1271 = vmatpush2.msra.mxu0 0.0
    %1272 = vmatprep.subr.mxu0 0.0
    %1273 = vmatpush2.msra.mxu0 0.0
    %1274 = vmatprep.subr.mxu0 0.0
    %1275 = vmatpush2.msra.mxu0 0.0
    %1276 = vmatprep.subr.mxu0 0.0
    %1277 = vmatpush2.msra.mxu0 0.0
    %1278 = vmatprep.subr.mxu0 0.0
    %1279 = vmatpush2.msra.mxu0 0.0
    %1280 = vmatprep.subr.mxu0 0.0
    %1281 = vmatpush2.msra.mxu0 0.0
    %1282 = vmatprep.subr.mxu0 0.0
    %1283 = vmatpush2.msra.mxu0 0.0
    %1284 = vmatprep.subr.mxu0 0.0
    %1285 = vmatpush2.msra.mxu0 0.0
    %1286 = vmatprep.mubr.f32.mxu0 0.0
    %1287 = vmatmul.mubr.f32.gmra.mxu0 %v1198
    %v1288 = vpop.f32.mrf.mxu0
    %v1289 = vadd.f32 %v1220, %v1288
    %v1290 = vpop.f32.mrf.mxu0
    %1291 = vdwg.mxu0
    %s1292 = scalar_lea.vmem [#allocation2], 40
    %1293 = vst [vmem:[%s1292] sm:$0xff] %v1289
    %s1294 = scalar_lea.vmem [#allocation4], 48
    %v1295 = vld [vmem:[%s1294] sm:$0xff]
    %v1296 = vld [vmem:[#allocation7] sm:$0xff]
    %v1297 = vld [vmem:[#allocation7 + $0x8] sm:$0xff]
    %v1298 = vld [vmem:[#allocation7 + $0x10] sm:$0xff]
    %v1299 = vld [vmem:[#allocation7 + $0x18] sm:$0xff]
    %v1300 = vld [vmem:[#allocation7 + $0x20] sm:$0xff]
    %v1301 = vld [vmem:[#allocation7 + $0x28] sm:$0xff]
    %v1302 = vld [vmem:[#allocation7 + $0x30] sm:$0xff]
    %v1303 = vld [vmem:[#allocation7 + $0x38] sm:$0xff]
    %v1304 = vld [vmem:[#allocation7 + $0x40] sm:$0xff]
    %v1305 = vld [vmem:[#allocation7 + $0x48] sm:$0xff]
    %v1306 = vld [vmem:[#allocation7 + $0x50] sm:$0xff]
    %v1307 = vld [vmem:[#allocation7 + $0x58] sm:$0xff]
    %v1308 = vld [vmem:[#allocation7 + $0x60] sm:$0xff]
    %v1309 = vld [vmem:[#allocation7 + $0x68] sm:$0xff]
    %v1310 = vld [vmem:[#allocation7 + $0x70] sm:$0xff]
    %v1311 = vld [vmem:[#allocation7 + $0x78] sm:$0xff]
    %1312 = vmatprep.subr.mxu0 0.0
    %1313 = vmatpush1.msra.mxu0 %v1311
    %1314 = vmatprep.subr.mxu0 0.0
    %1315 = vmatpush1.msra.mxu0 %v1310
    %1316 = vmatprep.subr.mxu0 0.0
    %1317 = vmatpush1.msra.mxu0 %v1309
    %1318 = vmatprep.subr.mxu0 0.0
    %1319 = vmatpush1.msra.mxu0 %v1308
    %1320 = vmatprep.subr.mxu0 0.0
    %1321 = vmatpush1.msra.mxu0 %v1307
    %1322 = vmatprep.subr.mxu0 0.0
    %1323 = vmatpush1.msra.mxu0 %v1306
    %1324 = vmatprep.subr.mxu0 0.0
    %1325 = vmatpush1.msra.mxu0 %v1305
    %1326 = vmatprep.subr.mxu0 0.0
    %1327 = vmatpush1.msra.mxu0 %v1304
    %1328 = vmatprep.subr.mxu0 0.0
    %1329 = vmatpush1.msra.mxu0 %v1303
    %1330 = vmatprep.subr.mxu0 0.0
    %1331 = vmatpush1.msra.mxu0 %v1302
    %1332 = vmatprep.subr.mxu0 0.0
    %1333 = vmatpush1.msra.mxu0 %v1301
    %1334 = vmatprep.subr.mxu0 0.0
    %1335 = vmatpush1.msra.mxu0 %v1300
    %1336 = vmatprep.subr.mxu0 0.0
    %1337 = vmatpush1.msra.mxu0 %v1299
    %1338 = vmatprep.subr.mxu0 0.0
    %1339 = vmatpush1.msra.mxu0 %v1298
    %1340 = vmatprep.subr.mxu0 0.0
    %1341 = vmatpush1.msra.mxu0 %v1297
    %1342 = vmatprep.subr.mxu0 0.0
    %1343 = vmatpush1.msra.mxu0 %v1296
    %1344 = vmatprep.subr.mxu0 0.0
    %1345 = vmatpush2.msra.mxu0 0.0
    %1346 = vmatprep.subr.mxu0 0.0
    %1347 = vmatpush2.msra.mxu0 0.0
    %1348 = vmatprep.subr.mxu0 0.0
    %1349 = vmatpush2.msra.mxu0 0.0
    %1350 = vmatprep.subr.mxu0 0.0
    %1351 = vmatpush2.msra.mxu0 0.0
    %1352 = vmatprep.subr.mxu0 0.0
    %1353 = vmatpush2.msra.mxu0 0.0
    %1354 = vmatprep.subr.mxu0 0.0
    %1355 = vmatpush2.msra.mxu0 0.0
    %1356 = vmatprep.subr.mxu0 0.0
    %1357 = vmatpush2.msra.mxu0 0.0
    %1358 = vmatprep.subr.mxu0 0.0
    %1359 = vmatpush2.msra.mxu0 0.0
    %1360 = vmatprep.subr.mxu0 0.0
    %1361 = vmatpush2.msra.mxu0 0.0
    %1362 = vmatprep.subr.mxu0 0.0
    %1363 = vmatpush2.msra.mxu0 0.0
    %1364 = vmatprep.subr.mxu0 0.0
    %1365 = vmatpush2.msra.mxu0 0.0
    %1366 = vmatprep.subr.mxu0 0.0
    %1367 = vmatpush2.msra.mxu0 0.0
    %1368 = vmatprep.subr.mxu0 0.0
    %1369 = vmatpush2.msra.mxu0 0.0
    %1370 = vmatprep.subr.mxu0 0.0
    %1371 = vmatpush2.msra.mxu0 0.0
    %1372 = vmatprep.subr.mxu0 0.0
    %1373 = vmatpush2.msra.mxu0 0.0
    %1374 = vmatprep.subr.mxu0 0.0
    %1375 = vmatpush2.msra.mxu0 0.0
    %1376 = vmatprep.mubr.f32.mxu0 0.0
    %1377 = vmatmul.mubr.f32.gmra.mxu0 %v1198
    %v1378 = vpop.f32.mrf.mxu0
    %v1379 = vadd.f32 0.0, %v1378
    %v1380 = vpop.f32.mrf.mxu0
    %1381 = vdwg.mxu0
    %v1382 = vadd.f32 %v1295, %v1379
    %v1383 = vxor.u32 %v1382, 2147483648
    %v1384 = vmul.f32 %v1383, 1.442695
    %v1385 = vpow.pop %v1384
    %v1386 = vadd.f32 %v1385, 1.0
    %v1387 = vrcp.pop %v1386
    %v1388 = vmul.f32 1.0, %v1387
    %v1389 = vtanh.pop %v1382
    %1390 = vrot.lane.b32.xlu0 %v1388, 96
    %v1391 = vpop.permute.xlu0 %1390
    %1392 = vrot.lane.b32.xlu0 %v1389, 64
    %v1393 = vpop.permute.xlu0 %1392
    %1394 = vrot.lane.b32.xlu0 %v1388, 32
    %v1395 = vpop.permute.xlu0 %1394
    %v1396 = vmul.f32 %v1391, %v1196
    %v1397 = vmul.f32 %v1388, %v1393
    %v1398 = vadd.f32 %v1396, %v1397
    %v1399 = vtanh.pop %v1398
    %v1400 = vmul.f32 %v1395, %v1399
    %v1401 = vld [vmem:[#allocation10] sm:$0xff]
    %v1402 = vld [vmem:[#allocation10 + $0x8] sm:$0xff]
    %v1403 = vld [vmem:[#allocation10 + $0x10] sm:$0xff]
    %v1404 = vld [vmem:[#allocation10 + $0x18] sm:$0xff]
    %v1405 = vld [vmem:[#allocation10 + $0x20] sm:$0xff]
    %v1406 = vld [vmem:[#allocation10 + $0x28] sm:$0xff]
    %v1407 = vld [vmem:[#allocation10 + $0x30] sm:$0xff]
    %v1408 = vld [vmem:[#allocation10 + $0x38] sm:$0xff]
    %v1409 = vld [vmem:[#allocation10 + $0x40] sm:$0xff]
    %v1410 = vld [vmem:[#allocation10 + $0x48] sm:$0xff]
    %v1411 = vld [vmem:[#allocation10 + $0x50] sm:$0xff]
    %v1412 = vld [vmem:[#allocation10 + $0x58] sm:$0xff]
    %v1413 = vld [vmem:[#allocation10 + $0x60] sm:$0xff]
    %v1414 = vld [vmem:[#allocation10 + $0x68] sm:$0xff]
    %v1415 = vld [vmem:[#allocation10 + $0x70] sm:$0xff]
    %v1416 = vld [vmem:[#allocation10 + $0x78] sm:$0xff]
    %v1417 = vld [vmem:[%s4] sm:$0x1]
    %v1419 = vlaneseq
    %v1420 = vshrl.u32 %v1419, 7
    %v1421 = vsub.s32 0, %v1420
    %v1422 = vrot.slane %v1417, %v1421
    %1424 = vmatprep.subr.mxu0 0.0
    %1425 = vmatpush1.msra.mxu0 %v1416
    %1426 = vmatprep.subr.mxu0 0.0
    %1427 = vmatpush1.msra.mxu0 %v1415
    %1428 = vmatprep.subr.mxu0 0.0
    %1429 = vmatpush1.msra.mxu0 %v1414
    %1430 = vmatprep.subr.mxu0 0.0
    %1431 = vmatpush1.msra.mxu0 %v1413
    %1432 = vmatprep.subr.mxu0 0.0
    %1433 = vmatpush1.msra.mxu0 %v1412
    %1434 = vmatprep.subr.mxu0 0.0
    %1435 = vmatpush1.msra.mxu0 %v1411
    %1436 = vmatprep.subr.mxu0 0.0
    %1437 = vmatpush1.msra.mxu0 %v1410
    %1438 = vmatprep.subr.mxu0 0.0
    %1439 = vmatpush1.msra.mxu0 %v1409
    %1440 = vmatprep.subr.mxu0 0.0
    %1441 = vmatpush1.msra.mxu0 %v1408
    %1442 = vmatprep.subr.mxu0 0.0
    %1443 = vmatpush1.msra.mxu0 %v1407
    %1444 = vmatprep.subr.mxu0 0.0
    %1445 = vmatpush1.msra.mxu0 %v1406
    %1446 = vmatprep.subr.mxu0 0.0
    %1447 = vmatpush1.msra.mxu0 %v1405
    %1448 = vmatprep.subr.mxu0 0.0
    %1449 = vmatpush1.msra.mxu0 %v1404
    %1450 = vmatprep.subr.mxu0 0.0
    %1451 = vmatpush1.msra.mxu0 %v1403
    %1452 = vmatprep.subr.mxu0 0.0
    %1453 = vmatpush1.msra.mxu0 %v1402
    %1454 = vmatprep.subr.mxu0 0.0
    %1455 = vmatpush1.msra.mxu0 %v1401
    %1456 = vmatprep.subr.mxu0 0.0
    %1457 = vmatpush2.msra.mxu0 0.0
    %1458 = vmatprep.subr.mxu0 0.0
    %1459 = vmatpush2.msra.mxu0 0.0
    %1460 = vmatprep.subr.mxu0 0.0
    %1461 = vmatpush2.msra.mxu0 0.0
    %1462 = vmatprep.subr.mxu0 0.0
    %1463 = vmatpush2.msra.mxu0 0.0
    %1464 = vmatprep.subr.mxu0 0.0
    %1465 = vmatpush2.msra.mxu0 0.0
    %1466 = vmatprep.subr.mxu0 0.0
    %1467 = vmatpush2.msra.mxu0 0.0
    %1468 = vmatprep.subr.mxu0 0.0
    %1469 = vmatpush2.msra.mxu0 0.0
    %1470 = vmatprep.subr.mxu0 0.0
    %1471 = vmatpush2.msra.mxu0 0.0
    %1472 = vmatprep.subr.mxu0 0.0
    %1473 = vmatpush2.msra.mxu0 0.0
    %1474 = vmatprep.subr.mxu0 0.0
    %1475 = vmatpush2.msra.mxu0 0.0
    %1476 = vmatprep.subr.mxu0 0.0
    %1477 = vmatpush2.msra.mxu0 0.0
    %1478 = vmatprep.subr.mxu0 0.0
    %1479 = vmatpush2.msra.mxu0 0.0
    %1480 = vmatprep.subr.mxu0 0.0
    %1481 = vmatpush2.msra.mxu0 0.0
    %1482 = vmatprep.subr.mxu0 0.0
    %1483 = vmatpush2.msra.mxu0 0.0
    %1484 = vmatprep.subr.mxu0 0.0
    %1485 = vmatpush2.msra.mxu0 0.0
    %1486 = vmatprep.subr.mxu0 0.0
    %1487 = vmatpush2.msra.mxu0 0.0
    %1488 = vmatprep.mubr.f32.mxu0 0.0
    %1489 = vmatmul.mubr.f32.gmra.mxu0 %v1400
    %v1490 = vpop.f32.mrf.mxu0
    %v1491 = vadd.f32 %v1422, %v1490
    %v1492 = vpop.f32.mrf.mxu0
    %1493 = vdwg.mxu0
    %s1494 = scalar_lea.vmem [#allocation2], 48
    %1495 = vst [vmem:[%s1494] sm:$0xff] %v1491
    %s1496 = scalar_lea.vmem [#allocation4], 56
    %v1497 = vld [vmem:[%s1496] sm:$0xff]
    %v1498 = vld [vmem:[#allocation7] sm:$0xff]
    %v1499 = vld [vmem:[#allocation7 + $0x8] sm:$0xff]
    %v1500 = vld [vmem:[#allocation7 + $0x10] sm:$0xff]
    %v1501 = vld [vmem:[#allocation7 + $0x18] sm:$0xff]
    %v1502 = vld [vmem:[#allocation7 + $0x20] sm:$0xff]
    %v1503 = vld [vmem:[#allocation7 + $0x28] sm:$0xff]
    %v1504 = vld [vmem:[#allocation7 + $0x30] sm:$0xff]
    %v1505 = vld [vmem:[#allocation7 + $0x38] sm:$0xff]
    %v1506 = vld [vmem:[#allocation7 + $0x40] sm:$0xff]
    %v1507 = vld [vmem:[#allocation7 + $0x48] sm:$0xff]
    %v1508 = vld [vmem:[#allocation7 + $0x50] sm:$0xff]
    %v1509 = vld [vmem:[#allocation7 + $0x58] sm:$0xff]
    %v1510 = vld [vmem:[#allocation7 + $0x60] sm:$0xff]
    %v1511 = vld [vmem:[#allocation7 + $0x68] sm:$0xff]
    %v1512 = vld [vmem:[#allocation7 + $0x70] sm:$0xff]
    %v1513 = vld [vmem:[#allocation7 + $0x78] sm:$0xff]
    %1514 = vmatprep.subr.mxu0 0.0
    %1515 = vmatpush1.msra.mxu0 %v1513
    %1516 = vmatprep.subr.mxu0 0.0
    %1517 = vmatpush1.msra.mxu0 %v1512
    %1518 = vmatprep.subr.mxu0 0.0
    %1519 = vmatpush1.msra.mxu0 %v1511
    %1520 = vmatprep.subr.mxu0 0.0
    %1521 = vmatpush1.msra.mxu0 %v1510
    %1522 = vmatprep.subr.mxu0 0.0
    %1523 = vmatpush1.msra.mxu0 %v1509
    %1524 = vmatprep.subr.mxu0 0.0
    %1525 = vmatpush1.msra.mxu0 %v1508
    %1526 = vmatprep.subr.mxu0 0.0
    %1527 = vmatpush1.msra.mxu0 %v1507
    %1528 = vmatprep.subr.mxu0 0.0
    %1529 = vmatpush1.msra.mxu0 %v1506
    %1530 = vmatprep.subr.mxu0 0.0
    %1531 = vmatpush1.msra.mxu0 %v1505
    %1532 = vmatprep.subr.mxu0 0.0
    %1533 = vmatpush1.msra.mxu0 %v1504
    %1534 = vmatprep.subr.mxu0 0.0
    %1535 = vmatpush1.msra.mxu0 %v1503
    %1536 = vmatprep.subr.mxu0 0.0
    %1537 = vmatpush1.msra.mxu0 %v1502
    %1538 = vmatprep.subr.mxu0 0.0
    %1539 = vmatpush1.msra.mxu0 %v1501
    %1540 = vmatprep.subr.mxu0 0.0
    %1541 = vmatpush1.msra.mxu0 %v1500
    %1542 = vmatprep.subr.mxu0 0.0
    %1543 = vmatpush1.msra.mxu0 %v1499
    %1544 = vmatprep.subr.mxu0 0.0
    %1545 = vmatpush1.msra.mxu0 %v1498
    %1546 = vmatprep.subr.mxu0 0.0
    %1547 = vmatpush2.msra.mxu0 0.0
    %1548 = vmatprep.subr.mxu0 0.0
    %1549 = vmatpush2.msra.mxu0 0.0
    %1550 = vmatprep.subr.mxu0 0.0
    %1551 = vmatpush2.msra.mxu0 0.0
    %1552 = vmatprep.subr.mxu0 0.0
    %1553 = vmatpush2.msra.mxu0 0.0
    %1554 = vmatprep.subr.mxu0 0.0
    %1555 = vmatpush2.msra.mxu0 0.0
    %1556 = vmatprep.subr.mxu0 0.0
    %1557 = vmatpush2.msra.mxu0 0.0
    %1558 = vmatprep.subr.mxu0 0.0
    %1559 = vmatpush2.msra.mxu0 0.0
    %1560 = vmatprep.subr.mxu0 0.0
    %1561 = vmatpush2.msra.mxu0 0.0
    %1562 = vmatprep.subr.mxu0 0.0
    %1563 = vmatpush2.msra.mxu0 0.0
    %1564 = vmatprep.subr.mxu0 0.0
    %1565 = vmatpush2.msra.mxu0 0.0
    %1566 = vmatprep.subr.mxu0 0.0
    %1567 = vmatpush2.msra.mxu0 0.0
    %1568 = vmatprep.subr.mxu0 0.0
    %1569 = vmatpush2.msra.mxu0 0.0
    %1570 = vmatprep.subr.mxu0 0.0
    %1571 = vmatpush2.msra.mxu0 0.0
    %1572 = vmatprep.subr.mxu0 0.0
    %1573 = vmatpush2.msra.mxu0 0.0
    %1574 = vmatprep.subr.mxu0 0.0
    %1575 = vmatpush2.msra.mxu0 0.0
    %1576 = vmatprep.subr.mxu0 0.0
    %1577 = vmatpush2.msra.mxu0 0.0
    %1578 = vmatprep.mubr.f32.mxu0 0.0
    %1579 = vmatmul.mubr.f32.gmra.mxu0 %v1400
    %v1580 = vpop.f32.mrf.mxu0
    %v1581 = vadd.f32 0.0, %v1580
    %v1582 = vpop.f32.mrf.mxu0
    %1583 = vdwg.mxu0
    %v1584 = vadd.f32 %v1497, %v1581
    %v1585 = vxor.u32 %v1584, 2147483648
    %v1586 = vmul.f32 %v1585, 1.442695
    %v1587 = vpow.pop %v1586
    %v1588 = vadd.f32 %v1587, 1.0
    %v1589 = vrcp.pop %v1588
    %v1590 = vmul.f32 1.0, %v1589
    %v1591 = vtanh.pop %v1584
    %1592 = vrot.lane.b32.xlu0 %v1590, 96
    %v1593 = vpop.permute.xlu0 %1592
    %1594 = vrot.lane.b32.xlu0 %v1591, 64
    %v1595 = vpop.permute.xlu0 %1594
    %1596 = vrot.lane.b32.xlu0 %v1590, 32
    %v1597 = vpop.permute.xlu0 %1596
    %v1598 = vmul.f32 %v1593, %v1398
    %v1599 = vmul.f32 %v1590, %v1595
    %v1600 = vadd.f32 %v1598, %v1599
    %v1601 = vtanh.pop %v1600
    %v1602 = vmul.f32 %v1597, %v1601
    %v1603 = vld [vmem:[#allocation10] sm:$0xff]
    %v1604 = vld [vmem:[#allocation10 + $0x8] sm:$0xff]
    %v1605 = vld [vmem:[#allocation10 + $0x10] sm:$0xff]
    %v1606 = vld [vmem:[#allocation10 + $0x18] sm:$0xff]
    %v1607 = vld [vmem:[#allocation10 + $0x20] sm:$0xff]
    %v1608 = vld [vmem:[#allocation10 + $0x28] sm:$0xff]
    %v1609 = vld [vmem:[#allocation10 + $0x30] sm:$0xff]
    %v1610 = vld [vmem:[#allocation10 + $0x38] sm:$0xff]
    %v1611 = vld [vmem:[#allocation10 + $0x40] sm:$0xff]
    %v1612 = vld [vmem:[#allocation10 + $0x48] sm:$0xff]
    %v1613 = vld [vmem:[#allocation10 + $0x50] sm:$0xff]
    %v1614 = vld [vmem:[#allocation10 + $0x58] sm:$0xff]
    %v1615 = vld [vmem:[#allocation10 + $0x60] sm:$0xff]
    %v1616 = vld [vmem:[#allocation10 + $0x68] sm:$0xff]
    %v1617 = vld [vmem:[#allocation10 + $0x70] sm:$0xff]
    %v1618 = vld [vmem:[#allocation10 + $0x78] sm:$0xff]
    %v1619 = vld [vmem:[%s4] sm:$0x1]
    %v1621 = vlaneseq
    %v1622 = vshrl.u32 %v1621, 7
    %v1623 = vsub.s32 0, %v1622
    %v1624 = vrot.slane %v1619, %v1623
    %1626 = vmatprep.subr.mxu0 0.0
    %1627 = vmatpush1.msra.mxu0 %v1618
    %1628 = vmatprep.subr.mxu0 0.0
    %1629 = vmatpush1.msra.mxu0 %v1617
    %1630 = vmatprep.subr.mxu0 0.0
    %1631 = vmatpush1.msra.mxu0 %v1616
    %1632 = vmatprep.subr.mxu0 0.0
    %1633 = vmatpush1.msra.mxu0 %v1615
    %1634 = vmatprep.subr.mxu0 0.0
    %1635 = vmatpush1.msra.mxu0 %v1614
    %1636 = vmatprep.subr.mxu0 0.0
    %1637 = vmatpush1.msra.mxu0 %v1613
    %1638 = vmatprep.subr.mxu0 0.0
    %1639 = vmatpush1.msra.mxu0 %v1612
    %1640 = vmatprep.subr.mxu0 0.0
    %1641 = vmatpush1.msra.mxu0 %v1611
    %1642 = vmatprep.subr.mxu0 0.0
    %1643 = vmatpush1.msra.mxu0 %v1610
    %1644 = vmatprep.subr.mxu0 0.0
    %1645 = vmatpush1.msra.mxu0 %v1609
    %1646 = vmatprep.subr.mxu0 0.0
    %1647 = vmatpush1.msra.mxu0 %v1608
    %1648 = vmatprep.subr.mxu0 0.0
    %1649 = vmatpush1.msra.mxu0 %v1607
    %1650 = vmatprep.subr.mxu0 0.0
    %1651 = vmatpush1.msra.mxu0 %v1606
    %1652 = vmatprep.subr.mxu0 0.0
    %1653 = vmatpush1.msra.mxu0 %v1605
    %1654 = vmatprep.subr.mxu0 0.0
    %1655 = vmatpush1.msra.mxu0 %v1604
    %1656 = vmatprep.subr.mxu0 0.0
    %1657 = vmatpush1.msra.mxu0 %v1603
    %1658 = vmatprep.subr.mxu0 0.0
    %1659 = vmatpush2.msra.mxu0 0.0
    %1660 = vmatprep.subr.mxu0 0.0
    %1661 = vmatpush2.msra.mxu0 0.0
    %1662 = vmatprep.subr.mxu0 0.0
    %1663 = vmatpush2.msra.mxu0 0.0
    %1664 = vmatprep.subr.mxu0 0.0
    %1665 = vmatpush2.msra.mxu0 0.0
    %1666 = vmatprep.subr.mxu0 0.0
    %1667 = vmatpush2.msra.mxu0 0.0
    %1668 = vmatprep.subr.mxu0 0.0
    %1669 = vmatpush2.msra.mxu0 0.0
    %1670 = vmatprep.subr.mxu0 0.0
    %1671 = vmatpush2.msra.mxu0 0.0
    %1672 = vmatprep.subr.mxu0 0.0
    %1673 = vmatpush2.msra.mxu0 0.0
    %1674 = vmatprep.subr.mxu0 0.0
    %1675 = vmatpush2.msra.mxu0 0.0
    %1676 = vmatprep.subr.mxu0 0.0
    %1677 = vmatpush2.msra.mxu0 0.0
    %1678 = vmatprep.subr.mxu0 0.0
    %1679 = vmatpush2.msra.mxu0 0.0
    %1680 = vmatprep.subr.mxu0 0.0
    %1681 = vmatpush2.msra.mxu0 0.0
    %1682 = vmatprep.subr.mxu0 0.0
    %1683 = vmatpush2.msra.mxu0 0.0
    %1684 = vmatprep.subr.mxu0 0.0
    %1685 = vmatpush2.msra.mxu0 0.0
    %1686 = vmatprep.subr.mxu0 0.0
    %1687 = vmatpush2.msra.mxu0 0.0
    %1688 = vmatprep.subr.mxu0 0.0
    %1689 = vmatpush2.msra.mxu0 0.0
    %1690 = vmatprep.mubr.f32.mxu0 0.0
    %1691 = vmatmul.mubr.f32.gmra.mxu0 %v1602
    %v1692 = vpop.f32.mrf.mxu0
    %v1693 = vadd.f32 %v1624, %v1692
    %v1694 = vpop.f32.mrf.mxu0
    %1695 = vdwg.mxu0
    %s1696 = scalar_lea.vmem [#allocation2], 56
    %1697 = vst [vmem:[%s1696] sm:$0xff] %v1693
    %v1698 = vld [vmem:[#allocation2] sm:$0xff]
    %v1699 = vld [vmem:[#allocation9] sm:$0xff]
    %v1700 = vld [vmem:[#allocation9 + $0x8] sm:$0xff]
    %v1701 = vld [vmem:[#allocation9 + $0x10] sm:$0xff]
    %v1702 = vld [vmem:[#allocation9 + $0x18] sm:$0xff]
    %v1703 = vld [vmem:[#allocation9 + $0x20] sm:$0xff]
    %v1704 = vld [vmem:[#allocation9 + $0x28] sm:$0xff]
    %v1705 = vld [vmem:[#allocation9 + $0x30] sm:$0xff]
    %v1706 = vld [vmem:[#allocation9 + $0x38] sm:$0xff]
    %v1707 = vld [vmem:[#allocation9 + $0x40] sm:$0xff]
    %v1708 = vld [vmem:[#allocation9 + $0x48] sm:$0xff]
    %v1709 = vld [vmem:[#allocation9 + $0x50] sm:$0xff]
    %v1710 = vld [vmem:[#allocation9 + $0x58] sm:$0xff]
    %v1711 = vld [vmem:[#allocation9 + $0x60] sm:$0xff]
    %v1712 = vld [vmem:[#allocation9 + $0x68] sm:$0xff]
    %v1713 = vld [vmem:[#allocation9 + $0x70] sm:$0xff]
    %v1714 = vld [vmem:[#allocation9 + $0x78] sm:$0xff]
    %1715 = vmatprep.subr.mxu0 0.0
    %1716 = vmatpush1.msra.mxu0 %v1714
    %1717 = vmatprep.subr.mxu0 0.0
    %1718 = vmatpush1.msra.mxu0 %v1713
    %1719 = vmatprep.subr.mxu0 0.0
    %1720 = vmatpush1.msra.mxu0 %v1712
    %1721 = vmatprep.subr.mxu0 0.0
    %1722 = vmatpush1.msra.mxu0 %v1711
    %1723 = vmatprep.subr.mxu0 0.0
    %1724 = vmatpush1.msra.mxu0 %v1710
    %1725 = vmatprep.subr.mxu0 0.0
    %1726 = vmatpush1.msra.mxu0 %v1709
    %1727 = vmatprep.subr.mxu0 0.0
    %1728 = vmatpush1.msra.mxu0 %v1708
    %1729 = vmatprep.subr.mxu0 0.0
    %1730 = vmatpush1.msra.mxu0 %v1707
    %1731 = vmatprep.subr.mxu0 0.0
    %1732 = vmatpush1.msra.mxu0 %v1706
    %1733 = vmatprep.subr.mxu0 0.0
    %1734 = vmatpush1.msra.mxu0 %v1705
    %1735 = vmatprep.subr.mxu0 0.0
    %1736 = vmatpush1.msra.mxu0 %v1704
    %1737 = vmatprep.subr.mxu0 0.0
    %1738 = vmatpush1.msra.mxu0 %v1703
    %1739 = vmatprep.subr.mxu0 0.0
    %1740 = vmatpush1.msra.mxu0 %v1702
    %1741 = vmatprep.subr.mxu0 0.0
    %1742 = vmatpush1.msra.mxu0 %v1701
    %1743 = vmatprep.subr.mxu0 0.0
    %1744 = vmatpush1.msra.mxu0 %v1700
    %1745 = vmatprep.subr.mxu0 0.0
    %1746 = vmatpush1.msra.mxu0 %v1699
    %1747 = vmatprep.subr.mxu0 0.0
    %1748 = vmatpush2.msra.mxu0 0.0
    %1749 = vmatprep.subr.mxu0 0.0
    %1750 = vmatpush2.msra.mxu0 0.0
    %1751 = vmatprep.subr.mxu0 0.0
    %1752 = vmatpush2.msra.mxu0 0.0
    %1753 = vmatprep.subr.mxu0 0.0
    %1754 = vmatpush2.msra.mxu0 0.0
    %1755 = vmatprep.subr.mxu0 0.0
    %1756 = vmatpush2.msra.mxu0 0.0
    %1757 = vmatprep.subr.mxu0 0.0
    %1758 = vmatpush2.msra.mxu0 0.0
    %1759 = vmatprep.subr.mxu0 0.0
    %1760 = vmatpush2.msra.mxu0 0.0
    %1761 = vmatprep.subr.mxu0 0.0
    %1762 = vmatpush2.msra.mxu0 0.0
    %1763 = vmatprep.subr.mxu0 0.0
    %1764 = vmatpush2.msra.mxu0 0.0
    %1765 = vmatprep.subr.mxu0 0.0
    %1766 = vmatpush2.msra.mxu0 0.0
    %1767 = vmatprep.subr.mxu0 0.0
    %1768 = vmatpush2.msra.mxu0 0.0
    %1769 = vmatprep.subr.mxu0 0.0
    %1770 = vmatpush2.msra.mxu0 0.0
    %1771 = vmatprep.subr.mxu0 0.0
    %1772 = vmatpush2.msra.mxu0 0.0
    %1773 = vmatprep.subr.mxu0 0.0
    %1774 = vmatpush2.msra.mxu0 0.0
    %1775 = vmatprep.subr.mxu0 0.0
    %1776 = vmatpush2.msra.mxu0 0.0
    %1777 = vmatprep.subr.mxu0 0.0
    %1778 = vmatpush2.msra.mxu0 0.0
    %1779 = vmatprep.mubr.f32.mxu0 0.0
    %1780 = vmatmul.mubr.f32.gmra.mxu0 0.0
    %v1781 = vpop.f32.mrf.mxu0
    %v1782 = vadd.f32 0.0, %v1781
    %v1783 = vpop.f32.mrf.mxu0
    %1784 = vdwg.mxu0
    %v1785 = vadd.f32 %v1698, %v1782
    %v1786 = vxor.u32 %v1785, 2147483648
    %v1787 = vmul.f32 %v1786, 1.442695
    %v1788 = vpow.pop %v1787
    %v1789 = vadd.f32 %v1788, 1.0
    %v1790 = vrcp.pop %v1789
    %v1791 = vmul.f32 1.0, %v1790
    %v1792 = vtanh.pop %v1785
    %1793 = vrot.lane.b32.xlu0 %v1791, 96
    %v1794 = vpop.permute.xlu0 %1793
    %1795 = vrot.lane.b32.xlu0 %v1792, 64
    %v1796 = vpop.permute.xlu0 %1795
    %1797 = vrot.lane.b32.xlu0 %v1791, 32
    %v1798 = vpop.permute.xlu0 %1797
    %v1799 = vmul.f32 %v1794, 0.0
    %v1800 = vmul.f32 %v1791, %v1796
    %v1801 = vadd.f32 %v1799, %v1800
    %v1802 = vtanh.pop %v1801
    %v1803 = vmul.f32 %v1798, %v1802
    %v1804 = vld [vmem:[%s5] sm:$0x1]
    %v1805 = vlaneseq
    %v1806 = vshrl.u32 %v1805, 7
    %v1807 = vsub.s32 0, %v1806
    %v1808 = vrot.slane %v1804, %v1807
    %v1809 = vmul.f32 %v1803, %v1808
    %v1810 = vadd.f32 %v1809, 0.0
    %v1811 = vld [vmem:[%s484] sm:$0xff]
    %1812 = vmatprep.subr.mxu0 0.0
    %1813 = vmatpush1.msra.mxu0 %v1714
    %1814 = vmatprep.subr.mxu0 0.0
    %1815 = vmatpush1.msra.mxu0 %v1713
    %1816 = vmatprep.subr.mxu0 0.0
    %1817 = vmatpush1.msra.mxu0 %v1712
    %1818 = vmatprep.subr.mxu0 0.0
    %1819 = vmatpush1.msra.mxu0 %v1711
    %1820 = vmatprep.subr.mxu0 0.0
    %1821 = vmatpush1.msra.mxu0 %v1710
    %1822 = vmatprep.subr.mxu0 0.0
    %1823 = vmatpush1.msra.mxu0 %v1709
    %1824 = vmatprep.subr.mxu0 0.0
    %1825 = vmatpush1.msra.mxu0 %v1708
    %1826 = vmatprep.subr.mxu0 0.0
    %1827 = vmatpush1.msra.mxu0 %v1707
    %1828 = vmatprep.subr.mxu0 0.0
    %1829 = vmatpush1.msra.mxu0 %v1706
    %1830 = vmatprep.subr.mxu0 0.0
    %1831 = vmatpush1.msra.mxu0 %v1705
    %1832 = vmatprep.subr.mxu0 0.0
    %1833 = vmatpush1.msra.mxu0 %v1704
    %1834 = vmatprep.subr.mxu0 0.0
    %1835 = vmatpush1.msra.mxu0 %v1703
    %1836 = vmatprep.subr.mxu0 0.0
    %1837 = vmatpush1.msra.mxu0 %v1702
    %1838 = vmatprep.subr.mxu0 0.0
    %1839 = vmatpush1.msra.mxu0 %v1701
    %1840 = vmatprep.subr.mxu0 0.0
    %1841 = vmatpush1.msra.mxu0 %v1700
    %1842 = vmatprep.subr.mxu0 0.0
    %1843 = vmatpush1.msra.mxu0 %v1699
    %1844 = vmatprep.subr.mxu0 0.0
    %1845 = vmatpush2.msra.mxu0 0.0
    %1846 = vmatprep.subr.mxu0 0.0
    %1847 = vmatpush2.msra.mxu0 0.0
    %1848 = vmatprep.subr.mxu0 0.0
    %1849 = vmatpush2.msra.mxu0 0.0
    %1850 = vmatprep.subr.mxu0 0.0
    %1851 = vmatpush2.msra.mxu0 0.0
    %1852 = vmatprep.subr.mxu0 0.0
    %1853 = vmatpush2.msra.mxu0 0.0
    %1854 = vmatprep.subr.mxu0 0.0
    %1855 = vmatpush2.msra.mxu0 0.0
    %1856 = vmatprep.subr.mxu0 0.0
    %1857 = vmatpush2.msra.mxu0 0.0
    %1858 = vmatprep.subr.mxu0 0.0
    %1859 = vmatpush2.msra.mxu0 0.0
    %1860 = vmatprep.subr.mxu0 0.0
    %1861 = vmatpush2.msra.mxu0 0.0
    %1862 = vmatprep.subr.mxu0 0.0
    %1863 = vmatpush2.msra.mxu0 0.0
    %1864 = vmatprep.subr.mxu0 0.0
    %1865 = vmatpush2.msra.mxu0 0.0
    %1866 = vmatprep.subr.mxu0 0.0
    %1867 = vmatpush2.msra.mxu0 0.0
    %1868 = vmatprep.subr.mxu0 0.0
    %1869 = vmatpush2.msra.mxu0 0.0
    %1870 = vmatprep.subr.mxu0 0.0
    %1871 = vmatpush2.msra.mxu0 0.0
    %1872 = vmatprep.subr.mxu0 0.0
    %1873 = vmatpush2.msra.mxu0 0.0
    %1874 = vmatprep.subr.mxu0 0.0
    %1875 = vmatpush2.msra.mxu0 0.0
    %1876 = vmatprep.mubr.f32.mxu0 0.0
    %1877 = vmatmul.mubr.f32.gmra.mxu0 %v1803
    %v1878 = vpop.f32.mrf.mxu0
    %v1879 = vadd.f32 0.0, %v1878
    %v1880 = vpop.f32.mrf.mxu0
    %1881 = vdwg.mxu0
    %v1882 = vadd.f32 %v1811, %v1879
    %v1883 = vxor.u32 %v1882, 2147483648
    %v1884 = vmul.f32 %v1883, 1.442695
    %v1885 = vpow.pop %v1884
    %v1886 = vadd.f32 %v1885, 1.0
    %v1887 = vrcp.pop %v1886
    %v1888 = vmul.f32 1.0, %v1887
    %v1889 = vtanh.pop %v1882
    %1890 = vrot.lane.b32.xlu0 %v1888, 96
    %v1891 = vpop.permute.xlu0 %1890
    %1892 = vrot.lane.b32.xlu0 %v1889, 64
    %v1893 = vpop.permute.xlu0 %1892
    %1894 = vrot.lane.b32.xlu0 %v1888, 32
    %v1895 = vpop.permute.xlu0 %1894
    %v1896 = vmul.f32 %v1891, %v1801
    %v1897 = vmul.f32 %v1888, %v1893
    %v1898 = vadd.f32 %v1896, %v1897
    %v1899 = vtanh.pop %v1898
    %v1900 = vmul.f32 %v1895, %v1899
    %v1901 = vld [vmem:[%s5 + $0x1] sm:$0x1]
    %v1902 = vlaneseq
    %v1903 = vshrl.u32 %v1902, 7
    %v1904 = vsub.s32 0, %v1903
    %v1905 = vrot.slane %v1901, %v1904
    %v1906 = vmul.f32 %v1900, %v1905
    %v1907 = vadd.f32 %v1810, %v1906
    %v1908 = vld [vmem:[%s686] sm:$0xff]
    %1909 = vmatprep.subr.mxu0 0.0
    %1910 = vmatpush1.msra.mxu0 %v1714
    %1911 = vmatprep.subr.mxu0 0.0
    %1912 = vmatpush1.msra.mxu0 %v1713
    %1913 = vmatprep.subr.mxu0 0.0
    %1914 = vmatpush1.msra.mxu0 %v1712
    %1915 = vmatprep.subr.mxu0 0.0
    %1916 = vmatpush1.msra.mxu0 %v1711
    %1917 = vmatprep.subr.mxu0 0.0
    %1918 = vmatpush1.msra.mxu0 %v1710
    %1919 = vmatprep.subr.mxu0 0.0
    %1920 = vmatpush1.msra.mxu0 %v1709
    %1921 = vmatprep.subr.mxu0 0.0
    %1922 = vmatpush1.msra.mxu0 %v1708
    %1923 = vmatprep.subr.mxu0 0.0
    %1924 = vmatpush1.msra.mxu0 %v1707
    %1925 = vmatprep.subr.mxu0 0.0
    %1926 = vmatpush1.msra.mxu0 %v1706
    %1927 = vmatprep.subr.mxu0 0.0
    %1928 = vmatpush1.msra.mxu0 %v1705
    %1929 = vmatprep.subr.mxu0 0.0
    %1930 = vmatpush1.msra.mxu0 %v1704
    %1931 = vmatprep.subr.mxu0 0.0
    %1932 = vmatpush1.msra.mxu0 %v1703
    %1933 = vmatprep.subr.mxu0 0.0
    %1934 = vmatpush1.msra.mxu0 %v1702
    %1935 = vmatprep.subr.mxu0 0.0
    %1936 = vmatpush1.msra.mxu0 %v1701
    %1937 = vmatprep.subr.mxu0 0.0
    %1938 = vmatpush1.msra.mxu0 %v1700
    %1939 = vmatprep.subr.mxu0 0.0
    %1940 = vmatpush1.msra.mxu0 %v1699
    %1941 = vmatprep.subr.mxu0 0.0
    %1942 = vmatpush2.msra.mxu0 0.0
    %1943 = vmatprep.subr.mxu0 0.0
    %1944 = vmatpush2.msra.mxu0 0.0
    %1945 = vmatprep.subr.mxu0 0.0
    %1946 = vmatpush2.msra.mxu0 0.0
    %1947 = vmatprep.subr.mxu0 0.0
    %1948 = vmatpush2.msra.mxu0 0.0
    %1949 = vmatprep.subr.mxu0 0.0
    %1950 = vmatpush2.msra.mxu0 0.0
    %1951 = vmatprep.subr.mxu0 0.0
    %1952 = vmatpush2.msra.mxu0 0.0
    %1953 = vmatprep.subr.mxu0 0.0
    %1954 = vmatpush2.msra.mxu0 0.0
    %1955 = vmatprep.subr.mxu0 0.0
    %1956 = vmatpush2.msra.mxu0 0.0
    %1957 = vmatprep.subr.mxu0 0.0
    %1958 = vmatpush2.msra.mxu0 0.0
    %1959 = vmatprep.subr.mxu0 0.0
    %1960 = vmatpush2.msra.mxu0 0.0
    %1961 = vmatprep.subr.mxu0 0.0
    %1962 = vmatpush2.msra.mxu0 0.0
    %1963 = vmatprep.subr.mxu0 0.0
    %1964 = vmatpush2.msra.mxu0 0.0
    %1965 = vmatprep.subr.mxu0 0.0
    %1966 = vmatpush2.msra.mxu0 0.0
    %1967 = vmatprep.subr.mxu0 0.0
    %1968 = vmatpush2.msra.mxu0 0.0
    %1969 = vmatprep.subr.mxu0 0.0
    %1970 = vmatpush2.msra.mxu0 0.0
    %1971 = vmatprep.subr.mxu0 0.0
    %1972 = vmatpush2.msra.mxu0 0.0
    %1973 = vmatprep.mubr.f32.mxu0 0.0
    %1974 = vmatmul.mubr.f32.gmra.mxu0 %v1900
    %v1975 = vpop.f32.mrf.mxu0
    %v1976 = vadd.f32 0.0, %v1975
    %v1977 = vpop.f32.mrf.mxu0
    %1978 = vdwg.mxu0
    %v1979 = vadd.f32 %v1908, %v1976
    %v1980 = vxor.u32 %v1979, 2147483648
    %v1981 = vmul.f32 %v1980, 1.442695
    %v1982 = vpow.pop %v1981
    %v1983 = vadd.f32 %v1982, 1.0
    %v1984 = vrcp.pop %v1983
    %v1985 = vmul.f32 1.0, %v1984
    %v1986 = vtanh.pop %v1979
    %1987 = vrot.lane.b32.xlu0 %v1985, 96
    %v1988 = vpop.permute.xlu0 %1987
    %1989 = vrot.lane.b32.xlu0 %v1986, 64
    %v1990 = vpop.permute.xlu0 %1989
    %1991 = vrot.lane.b32.xlu0 %v1985, 32
    %v1992 = vpop.permute.xlu0 %1991
    %v1993 = vmul.f32 %v1988, %v1898
    %v1994 = vmul.f32 %v1985, %v1990
    %v1995 = vadd.f32 %v1993, %v1994
    %v1996 = vtanh.pop %v1995
    %v1997 = vmul.f32 %v1992, %v1996
    %v1998 = vld [vmem:[%s5 + $0x2] sm:$0x1]
    %v1999 = vlaneseq
    %v2000 = vshrl.u32 %v1999, 7
    %v2001 = vsub.s32 0, %v2000
    %v2002 = vrot.slane %v1998, %v2001
    %v2003 = vmul.f32 %v1997, %v2002
    %v2004 = vadd.f32 %v1907, %v2003
    %v2005 = vld [vmem:[%s888] sm:$0xff]
    %2006 = vmatprep.subr.mxu0 0.0
    %2007 = vmatpush1.msra.mxu0 %v1714
    %2008 = vmatprep.subr.mxu0 0.0
    %2009 = vmatpush1.msra.mxu0 %v1713
    %2010 = vmatprep.subr.mxu0 0.0
    %2011 = vmatpush1.msra.mxu0 %v1712
    %2012 = vmatprep.subr.mxu0 0.0
    %2013 = vmatpush1.msra.mxu0 %v1711
    %2014 = vmatprep.subr.mxu0 0.0
    %2015 = vmatpush1.msra.mxu0 %v1710
    %2016 = vmatprep.subr.mxu0 0.0
    %2017 = vmatpush1.msra.mxu0 %v1709
    %2018 = vmatprep.subr.mxu0 0.0
    %2019 = vmatpush1.msra.mxu0 %v1708
    %2020 = vmatprep.subr.mxu0 0.0
    %2021 = vmatpush1.msra.mxu0 %v1707
    %2022 = vmatprep.subr.mxu0 0.0
    %2023 = vmatpush1.msra.mxu0 %v1706
    %2024 = vmatprep.subr.mxu0 0.0
    %2025 = vmatpush1.msra.mxu0 %v1705
    %2026 = vmatprep.subr.mxu0 0.0
    %2027 = vmatpush1.msra.mxu0 %v1704
    %2028 = vmatprep.subr.mxu0 0.0
    %2029 = vmatpush1.msra.mxu0 %v1703
    %2030 = vmatprep.subr.mxu0 0.0
    %2031 = vmatpush1.msra.mxu0 %v1702
    %2032 = vmatprep.subr.mxu0 0.0
    %2033 = vmatpush1.msra.mxu0 %v1701
    %2034 = vmatprep.subr.mxu0 0.0
    %2035 = vmatpush1.msra.mxu0 %v1700
    %2036 = vmatprep.subr.mxu0 0.0
    %2037 = vmatpush1.msra.mxu0 %v1699
    %2038 = vmatprep.subr.mxu0 0.0
    %2039 = vmatpush2.msra.mxu0 0.0
    %2040 = vmatprep.subr.mxu0 0.0
    %2041 = vmatpush2.msra.mxu0 0.0
    %2042 = vmatprep.subr.mxu0 0.0
    %2043 = vmatpush2.msra.mxu0 0.0
    %2044 = vmatprep.subr.mxu0 0.0
    %2045 = vmatpush2.msra.mxu0 0.0
    %2046 = vmatprep.subr.mxu0 0.0
    %2047 = vmatpush2.msra.mxu0 0.0
    %2048 = vmatprep.subr.mxu0 0.0
    %2049 = vmatpush2.msra.mxu0 0.0
    %2050 = vmatprep.subr.mxu0 0.0
    %2051 = vmatpush2.msra.mxu0 0.0
    %2052 = vmatprep.subr.mxu0 0.0
    %2053 = vmatpush2.msra.mxu0 0.0
    %2054 = vmatprep.subr.mxu0 0.0
    %2055 = vmatpush2.msra.mxu0 0.0
    %2056 = vmatprep.subr.mxu0 0.0
    %2057 = vmatpush2.msra.mxu0 0.0
    %2058 = vmatprep.subr.mxu0 0.0
    %2059 = vmatpush2.msra.mxu0 0.0
    %2060 = vmatprep.subr.mxu0 0.0
    %2061 = vmatpush2.msra.mxu0 0.0
    %2062 = vmatprep.subr.mxu0 0.0
    %2063 = vmatpush2.msra.mxu0 0.0
    %2064 = vmatprep.subr.mxu0 0.0
    %2065 = vmatpush2.msra.mxu0 0.0
    %2066 = vmatprep.subr.mxu0 0.0
    %2067 = vmatpush2.msra.mxu0 0.0
    %2068 = vmatprep.subr.mxu0 0.0
    %2069 = vmatpush2.msra.mxu0 0.0
    %2070 = vmatprep.mubr.f32.mxu0 0.0
    %2071 = vmatmul.mubr.f32.gmra.mxu0 %v1997
    %v2072 = vpop.f32.mrf.mxu0
    %v2073 = vadd.f32 0.0, %v2072
    %v2074 = vpop.f32.mrf.mxu0
    %2075 = vdwg.mxu0
    %v2076 = vadd.f32 %v2005, %v2073
    %v2077 = vxor.u32 %v2076, 2147483648
    %v2078 = vmul.f32 %v2077, 1.442695
    %v2079 = vpow.pop %v2078
    %v2080 = vadd.f32 %v2079, 1.0
    %v2081 = vrcp.pop %v2080
    %v2082 = vmul.f32 1.0, %v2081
    %v2083 = vtanh.pop %v2076
    %2084 = vrot.lane.b32.xlu0 %v2082, 96
    %v2085 = vpop.permute.xlu0 %2084
    %2086 = vrot.lane.b32.xlu0 %v2083, 64
    %v2087 = vpop.permute.xlu0 %2086
    %2088 = vrot.lane.b32.xlu0 %v2082, 32
    %v2089 = vpop.permute.xlu0 %2088
    %v2090 = vmul.f32 %v2085, %v1995
    %v2091 = vmul.f32 %v2082, %v2087
    %v2092 = vadd.f32 %v2090, %v2091
    %v2093 = vtanh.pop %v2092
    %v2094 = vmul.f32 %v2089, %v2093
    %v2095 = vld [vmem:[%s5 + $0x3] sm:$0x1]
    %v2096 = vlaneseq
    %v2097 = vshrl.u32 %v2096, 7
    %v2098 = vsub.s32 0, %v2097
    %v2099 = vrot.slane %v2095, %v2098
    %v2100 = vmul.f32 %v2094, %v2099
    %v2101 = vadd.f32 %v2004, %v2100
    %v2102 = vld [vmem:[%s1090] sm:$0xff]
    %2103 = vmatprep.subr.mxu0 0.0
    %2104 = vmatpush1.msra.mxu0 %v1714
    %2105 = vmatprep.subr.mxu0 0.0
    %2106 = vmatpush1.msra.mxu0 %v1713
    %2107 = vmatprep.subr.mxu0 0.0
    %2108 = vmatpush1.msra.mxu0 %v1712
    %2109 = vmatprep.subr.mxu0 0.0
    %2110 = vmatpush1.msra.mxu0 %v1711
    %2111 = vmatprep.subr.mxu0 0.0
    %2112 = vmatpush1.msra.mxu0 %v1710
    %2113 = vmatprep.subr.mxu0 0.0
    %2114 = vmatpush1.msra.mxu0 %v1709
    %2115 = vmatprep.subr.mxu0 0.0
    %2116 = vmatpush1.msra.mxu0 %v1708
    %2117 = vmatprep.subr.mxu0 0.0
    %2118 = vmatpush1.msra.mxu0 %v1707
    %2119 = vmatprep.subr.mxu0 0.0
    %2120 = vmatpush1.msra.mxu0 %v1706
    %2121 = vmatprep.subr.mxu0 0.0
    %2122 = vmatpush1.msra.mxu0 %v1705
    %2123 = vmatprep.subr.mxu0 0.0
    %2124 = vmatpush1.msra.mxu0 %v1704
    %2125 = vmatprep.subr.mxu0 0.0
    %2126 = vmatpush1.msra.mxu0 %v1703
    %2127 = vmatprep.subr.mxu0 0.0
    %2128 = vmatpush1.msra.mxu0 %v1702
    %2129 = vmatprep.subr.mxu0 0.0
    %2130 = vmatpush1.msra.mxu0 %v1701
    %2131 = vmatprep.subr.mxu0 0.0
    %2132 = vmatpush1.msra.mxu0 %v1700
    %2133 = vmatprep.subr.mxu0 0.0
    %2134 = vmatpush1.msra.mxu0 %v1699
    %2135 = vmatprep.subr.mxu0 0.0
    %2136 = vmatpush2.msra.mxu0 0.0
    %2137 = vmatprep.subr.mxu0 0.0
    %2138 = vmatpush2.msra.mxu0 0.0
    %2139 = vmatprep.subr.mxu0 0.0
    %2140 = vmatpush2.msra.mxu0 0.0
    %2141 = vmatprep.subr.mxu0 0.0
    %2142 = vmatpush2.msra.mxu0 0.0
    %2143 = vmatprep.subr.mxu0 0.0
    %2144 = vmatpush2.msra.mxu0 0.0
    %2145 = vmatprep.subr.mxu0 0.0
    %2146 = vmatpush2.msra.mxu0 0.0
    %2147 = vmatprep.subr.mxu0 0.0
    %2148 = vmatpush2.msra.mxu0 0.0
    %2149 = vmatprep.subr.mxu0 0.0
    %2150 = vmatpush2.msra.mxu0 0.0
    %2151 = vmatprep.subr.mxu0 0.0
    %2152 = vmatpush2.msra.mxu0 0.0
    %2153 = vmatprep.subr.mxu0 0.0
    %2154 = vmatpush2.msra.mxu0 0.0
    %2155 = vmatprep.subr.mxu0 0.0
    %2156 = vmatpush2.msra.mxu0 0.0
    %2157 = vmatprep.subr.mxu0 0.0
    %2158 = vmatpush2.msra.mxu0 0.0
    %2159 = vmatprep.subr.mxu0 0.0
    %2160 = vmatpush2.msra.mxu0 0.0
    %2161 = vmatprep.subr.mxu0 0.0
    %2162 = vmatpush2.msra.mxu0 0.0
    %2163 = vmatprep.subr.mxu0 0.0
    %2164 = vmatpush2.msra.mxu0 0.0
    %2165 = vmatprep.subr.mxu0 0.0
    %2166 = vmatpush2.msra.mxu0 0.0
    %2167 = vmatprep.mubr.f32.mxu0 0.0
    %2168 = vmatmul.mubr.f32.gmra.mxu0 %v2094
    %v2169 = vpop.f32.mrf.mxu0
    %v2170 = vadd.f32 0.0, %v2169
    %v2171 = vpop.f32.mrf.mxu0
    %2172 = vdwg.mxu0
    %v2173 = vadd.f32 %v2102, %v2170
    %v2174 = vxor.u32 %v2173, 2147483648
    %v2175 = vmul.f32 %v2174, 1.442695
    %v2176 = vpow.pop %v2175
    %v2177 = vadd.f32 %v2176, 1.0
    %v2178 = vrcp.pop %v2177
    %v2179 = vmul.f32 1.0, %v2178
    %v2180 = vtanh.pop %v2173
    %2181 = vrot.lane.b32.xlu0 %v2179, 96
    %v2182 = vpop.permute.xlu0 %2181
    %2183 = vrot.lane.b32.xlu0 %v2180, 64
    %v2184 = vpop.permute.xlu0 %2183
    %2185 = vrot.lane.b32.xlu0 %v2179, 32
    %v2186 = vpop.permute.xlu0 %2185
    %v2187 = vmul.f32 %v2182, %v2092
    %v2188 = vmul.f32 %v2179, %v2184
    %v2189 = vadd.f32 %v2187, %v2188
    %v2190 = vtanh.pop %v2189
    %v2191 = vmul.f32 %v2186, %v2190
    %v2192 = vld [vmem:[%s5 + $0x4] sm:$0x1]
    %v2193 = vlaneseq
    %v2194 = vshrl.u32 %v2193, 7
    %v2195 = vsub.s32 0, %v2194
    %v2196 = vrot.slane %v2192, %v2195
    %v2197 = vmul.f32 %v2191, %v2196
    %v2198 = vadd.f32 %v2101, %v2197
    %v2199 = vld [vmem:[%s1292] sm:$0xff]
    %2200 = vmatprep.subr.mxu0 0.0
    %2201 = vmatpush1.msra.mxu0 %v1714
    %2202 = vmatprep.subr.mxu0 0.0
    %2203 = vmatpush1.msra.mxu0 %v1713
    %2204 = vmatprep.subr.mxu0 0.0
    %2205 = vmatpush1.msra.mxu0 %v1712
    %2206 = vmatprep.subr.mxu0 0.0
    %2207 = vmatpush1.msra.mxu0 %v1711
    %2208 = vmatprep.subr.mxu0 0.0
    %2209 = vmatpush1.msra.mxu0 %v1710
    %2210 = vmatprep.subr.mxu0 0.0
    %2211 = vmatpush1.msra.mxu0 %v1709
    %2212 = vmatprep.subr.mxu0 0.0
    %2213 = vmatpush1.msra.mxu0 %v1708
    %2214 = vmatprep.subr.mxu0 0.0
    %2215 = vmatpush1.msra.mxu0 %v1707
    %2216 = vmatprep.subr.mxu0 0.0
    %2217 = vmatpush1.msra.mxu0 %v1706
    %2218 = vmatprep.subr.mxu0 0.0
    %2219 = vmatpush1.msra.mxu0 %v1705
    %2220 = vmatprep.subr.mxu0 0.0
    %2221 = vmatpush1.msra.mxu0 %v1704
    %2222 = vmatprep.subr.mxu0 0.0
    %2223 = vmatpush1.msra.mxu0 %v1703
    %2224 = vmatprep.subr.mxu0 0.0
    %2225 = vmatpush1.msra.mxu0 %v1702
    %2226 = vmatprep.subr.mxu0 0.0
    %2227 = vmatpush1.msra.mxu0 %v1701
    %2228 = vmatprep.subr.mxu0 0.0
    %2229 = vmatpush1.msra.mxu0 %v1700
    %2230 = vmatprep.subr.mxu0 0.0
    %2231 = vmatpush1.msra.mxu0 %v1699
    %2232 = vmatprep.subr.mxu0 0.0
    %2233 = vmatpush2.msra.mxu0 0.0
    %2234 = vmatprep.subr.mxu0 0.0
    %2235 = vmatpush2.msra.mxu0 0.0
    %2236 = vmatprep.subr.mxu0 0.0
    %2237 = vmatpush2.msra.mxu0 0.0
    %2238 = vmatprep.subr.mxu0 0.0
    %2239 = vmatpush2.msra.mxu0 0.0
    %2240 = vmatprep.subr.mxu0 0.0
    %2241 = vmatpush2.msra.mxu0 0.0
    %2242 = vmatprep.subr.mxu0 0.0
    %2243 = vmatpush2.msra.mxu0 0.0
    %2244 = vmatprep.subr.mxu0 0.0
    %2245 = vmatpush2.msra.mxu0 0.0
    %2246 = vmatprep.subr.mxu0 0.0
    %2247 = vmatpush2.msra.mxu0 0.0
    %2248 = vmatprep.subr.mxu0 0.0
    %2249 = vmatpush2.msra.mxu0 0.0
    %2250 = vmatprep.subr.mxu0 0.0
    %2251 = vmatpush2.msra.mxu0 0.0
    %2252 = vmatprep.subr.mxu0 0.0
    %2253 = vmatpush2.msra.mxu0 0.0
    %2254 = vmatprep.subr.mxu0 0.0
    %2255 = vmatpush2.msra.mxu0 0.0
    %2256 = vmatprep.subr.mxu0 0.0
    %2257 = vmatpush2.msra.mxu0 0.0
    %2258 = vmatprep.subr.mxu0 0.0
    %2259 = vmatpush2.msra.mxu0 0.0
    %2260 = vmatprep.subr.mxu0 0.0
    %2261 = vmatpush2.msra.mxu0 0.0
    %2262 = vmatprep.subr.mxu0 0.0
    %2263 = vmatpush2.msra.mxu0 0.0
    %2264 = vmatprep.mubr.f32.mxu0 0.0
    %2265 = vmatmul.mubr.f32.gmra.mxu0 %v2191
    %v2266 = vpop.f32.mrf.mxu0
    %v2267 = vadd.f32 0.0, %v2266
    %v2268 = vpop.f32.mrf.mxu0
    %2269 = vdwg.mxu0
    %v2270 = vadd.f32 %v2199, %v2267
    %v2271 = vxor.u32 %v2270, 2147483648
    %v2272 = vmul.f32 %v2271, 1.442695
    %v2273 = vpow.pop %v2272
    %v2274 = vadd.f32 %v2273, 1.0
    %v2275 = vrcp.pop %v2274
    %v2276 = vmul.f32 1.0, %v2275
    %v2277 = vtanh.pop %v2270
    %2278 = vrot.lane.b32.xlu0 %v2276, 96
    %v2279 = vpop.permute.xlu0 %2278
    %2280 = vrot.lane.b32.xlu0 %v2277, 64
    %v2281 = vpop.permute.xlu0 %2280
    %2282 = vrot.lane.b32.xlu0 %v2276, 32
    %v2283 = vpop.permute.xlu0 %2282
    %v2284 = vmul.f32 %v2279, %v2189
    %v2285 = vmul.f32 %v2276, %v2281
    %v2286 = vadd.f32 %v2284, %v2285
    %v2287 = vtanh.pop %v2286
    %v2288 = vmul.f32 %v2283, %v2287
    %v2289 = vld [vmem:[%s5 + $0x5] sm:$0x1]
    %v2290 = vlaneseq
    %v2291 = vshrl.u32 %v2290, 7
    %v2292 = vsub.s32 0, %v2291
    %v2293 = vrot.slane %v2289, %v2292
    %v2294 = vmul.f32 %v2288, %v2293
    %v2295 = vadd.f32 %v2198, %v2294
    %v2296 = vld [vmem:[%s1494] sm:$0xff]
    %2297 = vmatprep.subr.mxu0 0.0
    %2298 = vmatpush1.msra.mxu0 %v1714
    %2299 = vmatprep.subr.mxu0 0.0
    %2300 = vmatpush1.msra.mxu0 %v1713
    %2301 = vmatprep.subr.mxu0 0.0
    %2302 = vmatpush1.msra.mxu0 %v1712
    %2303 = vmatprep.subr.mxu0 0.0
    %2304 = vmatpush1.msra.mxu0 %v1711
    %2305 = vmatprep.subr.mxu0 0.0
    %2306 = vmatpush1.msra.mxu0 %v1710
    %2307 = vmatprep.subr.mxu0 0.0
    %2308 = vmatpush1.msra.mxu0 %v1709
    %2309 = vmatprep.subr.mxu0 0.0
    %2310 = vmatpush1.msra.mxu0 %v1708
    %2311 = vmatprep.subr.mxu0 0.0
    %2312 = vmatpush1.msra.mxu0 %v1707
    %2313 = vmatprep.subr.mxu0 0.0
    %2314 = vmatpush1.msra.mxu0 %v1706
    %2315 = vmatprep.subr.mxu0 0.0
    %2316 = vmatpush1.msra.mxu0 %v1705
    %2317 = vmatprep.subr.mxu0 0.0
    %2318 = vmatpush1.msra.mxu0 %v1704
    %2319 = vmatprep.subr.mxu0 0.0
    %2320 = vmatpush1.msra.mxu0 %v1703
    %2321 = vmatprep.subr.mxu0 0.0
    %2322 = vmatpush1.msra.mxu0 %v1702
    %2323 = vmatprep.subr.mxu0 0.0
    %2324 = vmatpush1.msra.mxu0 %v1701
    %2325 = vmatprep.subr.mxu0 0.0
    %2326 = vmatpush1.msra.mxu0 %v1700
    %2327 = vmatprep.subr.mxu0 0.0
    %2328 = vmatpush1.msra.mxu0 %v1699
    %2329 = vmatprep.subr.mxu0 0.0
    %2330 = vmatpush2.msra.mxu0 0.0
    %2331 = vmatprep.subr.mxu0 0.0
    %2332 = vmatpush2.msra.mxu0 0.0
    %2333 = vmatprep.subr.mxu0 0.0
    %2334 = vmatpush2.msra.mxu0 0.0
    %2335 = vmatprep.subr.mxu0 0.0
    %2336 = vmatpush2.msra.mxu0 0.0
    %2337 = vmatprep.subr.mxu0 0.0
    %2338 = vmatpush2.msra.mxu0 0.0
    %2339 = vmatprep.subr.mxu0 0.0
    %2340 = vmatpush2.msra.mxu0 0.0
    %2341 = vmatprep.subr.mxu0 0.0
    %2342 = vmatpush2.msra.mxu0 0.0
    %2343 = vmatprep.subr.mxu0 0.0
    %2344 = vmatpush2.msra.mxu0 0.0
    %2345 = vmatprep.subr.mxu0 0.0
    %2346 = vmatpush2.msra.mxu0 0.0
    %2347 = vmatprep.subr.mxu0 0.0
    %2348 = vmatpush2.msra.mxu0 0.0
    %2349 = vmatprep.subr.mxu0 0.0
    %2350 = vmatpush2.msra.mxu0 0.0
    %2351 = vmatprep.subr.mxu0 0.0
    %2352 = vmatpush2.msra.mxu0 0.0
    %2353 = vmatprep.subr.mxu0 0.0
    %2354 = vmatpush2.msra.mxu0 0.0
    %2355 = vmatprep.subr.mxu0 0.0
    %2356 = vmatpush2.msra.mxu0 0.0
    %2357 = vmatprep.subr.mxu0 0.0
    %2358 = vmatpush2.msra.mxu0 0.0
    %2359 = vmatprep.subr.mxu0 0.0
    %2360 = vmatpush2.msra.mxu0 0.0
    %2361 = vmatprep.mubr.f32.mxu0 0.0
    %2362 = vmatmul.mubr.f32.gmra.mxu0 %v2288
    %v2363 = vpop.f32.mrf.mxu0
    %v2364 = vadd.f32 0.0, %v2363
    %v2365 = vpop.f32.mrf.mxu0
    %2366 = vdwg.mxu0
    %v2367 = vadd.f32 %v2296, %v2364
    %v2368 = vxor.u32 %v2367, 2147483648
    %v2369 = vmul.f32 %v2368, 1.442695
    %v2370 = vpow.pop %v2369
    %v2371 = vadd.f32 %v2370, 1.0
    %v2372 = vrcp.pop %v2371
    %v2373 = vmul.f32 1.0, %v2372
    %v2374 = vtanh.pop %v2367
    %2375 = vrot.lane.b32.xlu0 %v2373, 96
    %v2376 = vpop.permute.xlu0 %2375
    %2377 = vrot.lane.b32.xlu0 %v2374, 64
    %v2378 = vpop.permute.xlu0 %2377
    %2379 = vrot.lane.b32.xlu0 %v2373, 32
    %v2380 = vpop.permute.xlu0 %2379
    %v2381 = vmul.f32 %v2376, %v2286
    %v2382 = vmul.f32 %v2373, %v2378
    %v2383 = vadd.f32 %v2381, %v2382
    %v2384 = vtanh.pop %v2383
    %v2385 = vmul.f32 %v2380, %v2384
    %v2386 = vld [vmem:[%s5 + $0x6] sm:$0x1]
    %v2387 = vlaneseq
    %v2388 = vshrl.u32 %v2387, 7
    %v2389 = vsub.s32 0, %v2388
    %v2390 = vrot.slane %v2386, %v2389
    %v2391 = vmul.f32 %v2385, %v2390
    %v2392 = vadd.f32 %v2295, %v2391
    %v2393 = vld [vmem:[%s1696] sm:$0xff]
    %2394 = vmatprep.subr.mxu0 0.0
    %2395 = vmatpush1.msra.mxu0 %v1714
    %2396 = vmatprep.subr.mxu0 0.0
    %2397 = vmatpush1.msra.mxu0 %v1713
    %2398 = vmatprep.subr.mxu0 0.0
    %2399 = vmatpush1.msra.mxu0 %v1712
    %2400 = vmatprep.subr.mxu0 0.0
    %2401 = vmatpush1.msra.mxu0 %v1711
    %2402 = vmatprep.subr.mxu0 0.0
    %2403 = vmatpush1.msra.mxu0 %v1710
    %2404 = vmatprep.subr.mxu0 0.0
    %2405 = vmatpush1.msra.mxu0 %v1709
    %2406 = vmatprep.subr.mxu0 0.0
    %2407 = vmatpush1.msra.mxu0 %v1708
    %2408 = vmatprep.subr.mxu0 0.0
    %2409 = vmatpush1.msra.mxu0 %v1707
    %2410 = vmatprep.subr.mxu0 0.0
    %2411 = vmatpush1.msra.mxu0 %v1706
    %2412 = vmatprep.subr.mxu0 0.0
    %2413 = vmatpush1.msra.mxu0 %v1705
    %2414 = vmatprep.subr.mxu0 0.0
    %2415 = vmatpush1.msra.mxu0 %v1704
    %2416 = vmatprep.subr.mxu0 0.0
    %2417 = vmatpush1.msra.mxu0 %v1703
    %2418 = vmatprep.subr.mxu0 0.0
    %2419 = vmatpush1.msra.mxu0 %v1702
    %2420 = vmatprep.subr.mxu0 0.0
    %2421 = vmatpush1.msra.mxu0 %v1701
    %2422 = vmatprep.subr.mxu0 0.0
    %2423 = vmatpush1.msra.mxu0 %v1700
    %2424 = vmatprep.subr.mxu0 0.0
    %2425 = vmatpush1.msra.mxu0 %v1699
    %2426 = vmatprep.subr.mxu0 0.0
    %2427 = vmatpush2.msra.mxu0 0.0
    %2428 = vmatprep.subr.mxu0 0.0
    %2429 = vmatpush2.msra.mxu0 0.0
    %2430 = vmatprep.subr.mxu0 0.0
    %2431 = vmatpush2.msra.mxu0 0.0
    %2432 = vmatprep.subr.mxu0 0.0
    %2433 = vmatpush2.msra.mxu0 0.0
    %2434 = vmatprep.subr.mxu0 0.0
    %2435 = vmatpush2.msra.mxu0 0.0
    %2436 = vmatprep.subr.mxu0 0.0
    %2437 = vmatpush2.msra.mxu0 0.0
    %2438 = vmatprep.subr.mxu0 0.0
    %2439 = vmatpush2.msra.mxu0 0.0
    %2440 = vmatprep.subr.mxu0 0.0
    %2441 = vmatpush2.msra.mxu0 0.0
    %2442 = vmatprep.subr.mxu0 0.0
    %2443 = vmatpush2.msra.mxu0 0.0
    %2444 = vmatprep.subr.mxu0 0.0
    %2445 = vmatpush2.msra.mxu0 0.0
    %2446 = vmatprep.subr.mxu0 0.0
    %2447 = vmatpush2.msra.mxu0 0.0
    %2448 = vmatprep.subr.mxu0 0.0
    %2449 = vmatpush2.msra.mxu0 0.0
    %2450 = vmatprep.subr.mxu0 0.0
    %2451 = vmatpush2.msra.mxu0 0.0
    %2452 = vmatprep.subr.mxu0 0.0
    %2453 = vmatpush2.msra.mxu0 0.0
    %2454 = vmatprep.subr.mxu0 0.0
    %2455 = vmatpush2.msra.mxu0 0.0
    %2456 = vmatprep.subr.mxu0 0.0
    %2457 = vmatpush2.msra.mxu0 0.0
    %2458 = vmatprep.mubr.f32.mxu0 0.0
    %2459 = vmatmul.mubr.f32.gmra.mxu0 %v2385
    %v2460 = vpop.f32.mrf.mxu0
    %v2461 = vadd.f32 0.0, %v2460
    %v2462 = vpop.f32.mrf.mxu0
    %2463 = vdwg.mxu0
    %v2464 = vadd.f32 %v2393, %v2461
    %v2465 = vxor.u32 %v2464, 2147483648
    %v2466 = vmul.f32 %v2465, 1.442695
    %v2467 = vpow.pop %v2466
    %v2468 = vadd.f32 %v2467, 1.0
    %v2469 = vrcp.pop %v2468
    %v2470 = vmul.f32 1.0, %v2469
    %v2471 = vtanh.pop %v2464
    %2472 = vrot.lane.b32.xlu0 %v2470, 96
    %v2473 = vpop.permute.xlu0 %2472
    %2474 = vrot.lane.b32.xlu0 %v2471, 64
    %v2475 = vpop.permute.xlu0 %2474
    %2476 = vrot.lane.b32.xlu0 %v2470, 32
    %v2477 = vpop.permute.xlu0 %2476
    %v2478 = vmul.f32 %v2473, %v2383
    %v2479 = vmul.f32 %v2470, %v2475
    %v2480 = vadd.f32 %v2478, %v2479
    %v2481 = vtanh.pop %v2480
    %v2482 = vmul.f32 %v2477, %v2481
    %v2483 = vld [vmem:[%s5 + $0x7] sm:$0x1]
    %v2484 = vlaneseq
    %v2485 = vshrl.u32 %v2484, 7
    %v2486 = vsub.s32 0, %v2485
    %v2487 = vrot.slane %v2483, %v2486
    %v2488 = vmul.f32 %v2482, %v2487
    %v2489 = vadd.f32 %v2392, %v2488
    %v2490 = vld [vmem:[#allocation3] sm:$0x1]
    %2492 = vset.pattern.permute.xlu0 0
    %2493 = vperm.xlu0 %2492, %v2490
    %v2494 = vpop.permute.xlu0 %2493
    %v2496 = vlaneseq
    %v2497 = vshrl.u32 %v2496, 7
    %v2498 = vsub.s32 0, %v2497
    %v2499 = vrot.slane %v2494, %v2498
    %2500 = vmatprep.subr.mxu0 0.0
    %2501 = vmatpush1.xpose.msra.mxu0 0.0
    %2502 = vmatprep.subr.mxu0 0.0
    %2503 = vmatpush1.xpose.msra.mxu0 0.0
    %2504 = vmatprep.subr.mxu0 0.0
    %2505 = vmatpush1.xpose.msra.mxu0 0.0
    %2506 = vmatprep.subr.mxu0 0.0
    %2507 = vmatpush1.xpose.msra.mxu0 0.0
    %2508 = vmatprep.subr.mxu0 0.0
    %2509 = vmatpush1.xpose.msra.mxu0 0.0
    %2510 = vmatprep.subr.mxu0 0.0
    %2511 = vmatpush1.xpose.msra.mxu0 0.0
    %2512 = vmatprep.subr.mxu0 0.0
    %2513 = vmatpush1.xpose.msra.mxu0 0.0
    %2514 = vmatprep.subr.mxu0 0.0
    %2515 = vmatpush1.xpose.msra.mxu0 0.0
    %2516 = vmatprep.subr.mxu0 0.0
    %2517 = vmatpush1.xpose.msra.mxu0 0.0
    %2518 = vmatprep.subr.mxu0 0.0
    %2519 = vmatpush1.xpose.msra.mxu0 0.0
    %2520 = vmatprep.subr.mxu0 0.0
    %2521 = vmatpush1.xpose.msra.mxu0 0.0
    %2522 = vmatprep.subr.mxu0 0.0
    %2523 = vmatpush1.xpose.msra.mxu0 0.0
    %2524 = vmatprep.subr.mxu0 0.0
    %2525 = vmatpush1.xpose.msra.mxu0 0.0
    %2526 = vmatprep.subr.mxu0 0.0
    %2527 = vmatpush1.xpose.msra.mxu0 0.0
    %2528 = vmatprep.subr.mxu0 0.0
    %2529 = vmatpush1.xpose.msra.mxu0 0.0
    %2530 = vmatprep.subr.mxu0 0.0
    %2531 = vmatpush1.xpose.msra.mxu0 %v2489
    %2532 = vmatprep.subr.mxu0 0.0
    %2533 = vmatpush2.xpose.msra.mxu0 0.0
    %2534 = vmatprep.subr.mxu0 0.0
    %2535 = vmatpush2.xpose.msra.mxu0 0.0
    %2536 = vmatprep.subr.mxu0 0.0
    %2537 = vmatpush2.xpose.msra.mxu0 0.0
    %2538 = vmatprep.subr.mxu0 0.0
    %2539 = vmatpush2.xpose.msra.mxu0 0.0
    %2540 = vmatprep.subr.mxu0 0.0
    %2541 = vmatpush2.xpose.msra.mxu0 0.0
    %2542 = vmatprep.subr.mxu0 0.0
    %2543 = vmatpush2.xpose.msra.mxu0 0.0
    %2544 = vmatprep.subr.mxu0 0.0
    %2545 = vmatpush2.xpose.msra.mxu0 0.0
    %2546 = vmatprep.subr.mxu0 0.0
    %2547 = vmatpush2.xpose.msra.mxu0 0.0
    %2548 = vmatprep.subr.mxu0 0.0
    %2549 = vmatpush2.xpose.msra.mxu0 0.0
    %2550 = vmatprep.subr.mxu0 0.0
    %2551 = vmatpush2.xpose.msra.mxu0 0.0
    %2552 = vmatprep.subr.mxu0 0.0
    %2553 = vmatpush2.xpose.msra.mxu0 0.0
    %2554 = vmatprep.subr.mxu0 0.0
    %2555 = vmatpush2.xpose.msra.mxu0 0.0
    %2556 = vmatprep.subr.mxu0 0.0
    %2557 = vmatpush2.xpose.msra.mxu0 0.0
    %2558 = vmatprep.subr.mxu0 0.0
    %2559 = vmatpush2.xpose.msra.mxu0 0.0
    %2560 = vmatprep.subr.mxu0 0.0
    %2561 = vmatpush2.xpose.msra.mxu0 0.0
    %2562 = vmatprep.subr.mxu0 0.0
    %2563 = vmatpush2.xpose.msra.mxu0 0.0
    %2564 = vmatprep.mubr.f32.mxu0 0.0
    %2565 = vmatmul.mubr.f32.gmra.mxu0 1.0
    %v2566 = vpop.f32.mrf.mxu0
    %v2567 = vadd.f32 %v2499, %v2566
    %v2568 = vpop.f32.mrf.mxu0
    %2569 = vdwg.mxu0
    %vm2570 = vcmask 57344
    %2571 = vst.msk [vmem:[#allocation12] sm:$0x1] %vm2570, %v2567
    // Predicated region
    $region46: #{tpu_custom_call.1} parent=1 // pred_check
      _
    $region47: #{tpu_custom_call.1} parent=1 // pred_check_branch
      %2573 = sbr.rel (0) target = $region49
    $region48: #{tpu_custom_call.1} parent=1 // pred_region
      %s2575 = ssub.s32 16, 16
      %2576 = vsyncadd [#allocation6], %s2575
      %s2578 = sshll.u32 [#allocation12], 4
      %s2579 = int_to_ptr.vmem [resolvable:$true] %s2578
      %2581 = dma.vmem_to_hbm [thread:$0]  %s2579, 16, %s7, [#allocation6]
    $region49: #{tpu_custom_call.1} parent=1 // pred_fallthru
      _
    // Predicated region
    $region50: #{tpu_custom_call.1} parent=1 // pred_check
      _
    $region51: #{tpu_custom_call.1} parent=1 // pred_check_branch
      %2583 = sbr.rel (0) target = $region53
    $region52: #{tpu_custom_call.1} parent=1 // pred_region
      %2584 = dma.done [#allocation6], 16
    $region53: #{tpu_custom_call.1} parent=1 // pred_fallthru
      _
    %2585 = vsyncpa [#allocation5], 1
    %2586 = vsyncpa [#allocation8], 1
    %2587 = vsyncpa [#allocation11], 1
    %2588 = vsyncpa [#allocation6], 1

</llo_original>
